<compile_context>
chip_gen: v6e
topology: v6e:2x2x1
jax: 0.10.0
libtpu: 0.0.40
codegen_flags: <defaults>
</compile_context>

<pallas_src>
import functools

import jax
import jax.numpy as jnp
from jax.experimental import pallas as pl
from jax.experimental.pallas import tpu as pltpu


# ------------------------------ fused kernel ------------------------------- #

def _fused_transformer_kernel(
    x_ref, pe_ref, emb_w_ref, emb_b_ref,
    wq_ref, bq_ref, wk_ref, bk_ref, wv_ref, bv_ref,
    wo_ref, bo_ref, n1w_ref, n1b_ref,
    w1_ref, b1_ref, w2_ref, b2_ref, n2w_ref, n2b_ref,
    fc_w_ref, fc_b_ref, out_ref,
    *, nhead, num_layers, batch, seq_len):
  """Embedding -> PE -> num_layers x post-norm encoder layer -> last step -> fc.

  Activations live as (B*S, D) f32 values in VMEM for the whole kernel.
  All matmul weights are bf16 in (in, out) layout; biases / LN params are f32.
  """
  N = batch * seq_len
  D = emb_w_ref.shape[1]
  dh = D // nhead
  scale = 1.0 / (dh ** 0.5)
  bf16 = jnp.bfloat16
  f32 = jnp.float32

  # Per-head 0/1 lane masks over the d_model axis.  Multiplying Q (or V) by
  # head h's mask restricts the score contraction / output columns to that
  # head — equivalent to slicing the head out, with no lane slicing needed.
  lane = jax.lax.broadcasted_iota(jnp.int32, (1, 1, D), 2)
  head_masks = [((lane >= hd * dh) & (lane < (hd + 1) * dh)).astype(f32)
                for hd in range(nhead)]

  # --- embedding + positional encoding ---
  xb = x_ref[...].astype(bf16)                                         # (N, I)
  h = jnp.dot(xb, emb_w_ref[...], preferred_element_type=f32)          # (N, D)
  h = h + emb_b_ref[...] + pe_ref[...]                                 # f32

  # --- encoder layers (static unroll; weights indexed by leading stack axis) ---
  for l in range(num_layers):
    hb = h.astype(bf16)

    # Fused projections over all heads: 3 matmuls instead of 3*nhead.
    q = jnp.dot(hb, wq_ref[l], preferred_element_type=f32) + bq_ref[l]  # (N, D)
    k = jnp.dot(hb, wk_ref[l], preferred_element_type=f32) + bk_ref[l]
    v = jnp.dot(hb, wv_ref[l], preferred_element_type=f32) + bv_ref[l]
    q3 = q.reshape(batch, seq_len, D)                                  # f32
    k3 = k.reshape(batch, seq_len, D).astype(bf16)
    v3 = v.reshape(batch, seq_len, D)                                  # f32

    attn_pre = jnp.zeros((batch, seq_len, D), f32)
    for hd in range(nhead):
      m = head_masks[hd]                                               # (1,1,D)
      qh = (q3 * m).astype(bf16)         # only head hd's dims contribute
      s = jnp.einsum('bqd,bkd->bqk', qh, k3,
                     preferred_element_type=f32) * scale               # (B,S,S)
      s = s - jnp.max(s, axis=-1, keepdims=True)
      p = jnp.exp(s)
      p = p * pl.reciprocal(jnp.sum(p, axis=-1, keepdims=True), approx=True)
      vh = (v3 * m).astype(bf16)         # only head hd's output columns
      attn_pre = attn_pre + jnp.einsum('bqk,bkd->bqd', p.astype(bf16), vh,
                                       preferred_element_type=f32)

    # Single fused output projection over all heads.
    attn = jnp.dot(attn_pre.reshape(N, D).astype(bf16), wo_ref[l],
                   preferred_element_type=f32) + bo_ref[l]             # (N, D)

    # residual + LayerNorm 1 (post-norm, eps=1e-5, biased variance)
    h = h + attn
    mu = jnp.mean(h, axis=-1, keepdims=True)
    var = jnp.mean((h - mu) ** 2, axis=-1, keepdims=True)
    h = (h - mu) * jax.lax.rsqrt(var + 1e-5) * n1w_ref[l] + n1b_ref[l]

    # feed-forward: linear1 -> relu -> linear2 (dropout = identity)
    ff = jnp.dot(h.astype(bf16), w1_ref[l], preferred_element_type=f32) + b1_ref[l]
    ff = jnp.maximum(ff, 0.0)
    ff = jnp.dot(ff.astype(bf16), w2_ref[l], preferred_element_type=f32) + b2_ref[l]

    # residual + LayerNorm 2
    h = h + ff
    mu = jnp.mean(h, axis=-1, keepdims=True)
    var = jnp.mean((h - mu) ** 2, axis=-1, keepdims=True)
    h = (h - mu) * jax.lax.rsqrt(var + 1e-5) * n2w_ref[l] + n2b_ref[l]

  # --- last timestep -> fc (only the (B, O) result ever leaves VMEM) ---
  last = h.reshape(batch, seq_len, D)[:, seq_len - 1, :]               # (B, D)
  out = jnp.dot(last.astype(bf16), fc_w_ref[...],
                preferred_element_type=f32) + fc_b_ref[...]            # (B, O)
  out_ref[...] = out.astype(out_ref.dtype)


# ------------------------- param layout preparation ------------------------ #

def _prepare_params(params):
  """PyTorch-convention params -> kernel layout.

  * matmul weights transposed to (in, out), cast to bf16, stacked over layers
  * biases / LayerNorm params stay f32, stacked over layers
  """
  D = params["emb_w"].shape[0]
  layers = params["layers"]
  bf16 = jnp.bfloat16

  def stack(fn):
    return jnp.stack([fn(lp) for lp in layers])

  return dict(
      emb_w=params["emb_w"].T.astype(bf16),                     # (I, D)
      emb_b=params["emb_b"],                                    # (1, D)
      pe=params["pe"],                                          # (S, D)
      wq=stack(lambda lp: lp["wqkv"][0 * D:1 * D].T).astype(bf16),   # (L, D, D)
      wk=stack(lambda lp: lp["wqkv"][1 * D:2 * D].T).astype(bf16),
      wv=stack(lambda lp: lp["wqkv"][2 * D:3 * D].T).astype(bf16),
      bq=stack(lambda lp: lp["bqkv"][:, 0 * D:1 * D]),               # (L, 1, D)
      bk=stack(lambda lp: lp["bqkv"][:, 1 * D:2 * D]),
      bv=stack(lambda lp: lp["bqkv"][:, 2 * D:3 * D]),
      wo=stack(lambda lp: lp["wo"].T).astype(bf16),             # (L, D, D)
      bo=stack(lambda lp: lp["bo"]),                            # (L, 1, D)
      n1w=stack(lambda lp: lp["n1w"]),
      n1b=stack(lambda lp: lp["n1b"]),
      w1=stack(lambda lp: lp["w1"].T).astype(bf16),             # (L, D, F)
      b1=stack(lambda lp: lp["b1"]),                            # (L, 1, F)
      w2=stack(lambda lp: lp["w2"].T).astype(bf16),             # (L, F, D)
      b2=stack(lambda lp: lp["b2"]),                            # (L, 1, D)
      n2w=stack(lambda lp: lp["n2w"]),
      n2b=stack(lambda lp: lp["n2b"]),
      fc_w=params["fc_w"].T.astype(bf16),                       # (D, O)
      fc_b=params["fc_b"],                                      # (1, O)
  )


# --------------------------------- wrapper ---------------------------------- #

def transformer_main_forward(x, params, *, nhead):
  """Matches TransformerMain.forward (eval mode). x: (B, S, input_size) f32."""
  B, S, I = x.shape
  num_layers = len(params["layers"])
  p = _prepare_params(params)
  O = p["fc_w"].shape[1]

  x2 = x.reshape(B * S, I)                    # flatten batch*seq for the MXU
  pe_tiled = jnp.tile(p["pe"][:S], (B, 1))    # (B*S, D), matches row layout

  kern = functools.partial(_fused_transformer_kernel, nhead=nhead,
                           num_layers=num_layers, batch=B, seq_len=S)

  # Single invocation (no grid): every operand is small enough to live whole
  # in VMEM on v5e/v6e/v7x at these shapes.
  # TODO(synk): if d_model/dim_feedforward/seq_len scale up, tile the FF and
  # projection weights over a reduction grid axis to stay under v7x's 64 MiB.
  return pl.pallas_call(
      kern,
      out_shape=jax.ShapeDtypeStruct((B, O), jnp.float32),
      compiler_params=pltpu.CompilerParams(vmem_limit_bytes=32 * 1024 * 1024),
  )(x2, pe_tiled, p["emb_w"], p["emb_b"],
    p["wq"], p["bq"], p["wk"], p["bk"], p["wv"], p["bv"],
    p["wo"], p["bo"], p["n1w"], p["n1b"],
    p["w1"], p["b1"], p["w2"], p["b2"], p["n2w"], p["n2b"],
    p["fc_w"], p["fc_b"])


# ---------------------------- parameter setup ------------------------------ #

def _positional_encoding(seq_len, d_model):
  position = jnp.arange(seq_len, dtype=jnp.float32)[:, None]
  div_term = jnp.exp(jnp.arange(0, d_model, 2, dtype=jnp.float32)
                     * (-jnp.log(10000.0) / d_model))
  ang = position * div_term                               # (seq, d_model/2)
  pe = jnp.stack([jnp.sin(ang), jnp.cos(ang)], axis=-1)   # interleave sin/cos
  return pe.reshape(seq_len, d_model)


def _linear_init(key, out_dim, in_dim):
  kw, kb = jax.random.split(key)
  bound = 1.0 / (in_dim ** 0.5)
  w = jax.random.uniform(kw, (out_dim, in_dim), jnp.float32, -bound, bound)
  b = jax.random.uniform(kb, (1, out_dim), jnp.float32, -bound, bound)
  return w, b


def init_params(key, *, input_size, d_model, nhead, num_encoder_layers,
                dim_feedforward, output_len, seq_len):
  keys = jax.random.split(key, 2 + num_encoder_layers)
  emb_w, emb_b = _linear_init(keys[0], d_model, input_size)
  fc_w, fc_b = _linear_init(keys[1], output_len, d_model)

  layers = []
  for li in range(num_encoder_layers):
    lk = jax.random.split(keys[2 + li], 4)
    wqkv, bqkv = _linear_init(lk[0], 3 * d_model, d_model)
    wo, bo = _linear_init(lk[1], d_model, d_model)
    w1, b1 = _linear_init(lk[2], dim_feedforward, d_model)
    w2, b2 = _linear_init(lk[3], d_model, dim_feedforward)
    layers.append(dict(
        wqkv=wqkv, bqkv=bqkv, wo=wo, bo=bo,
        w1=w1, b1=b1, w2=w2, b2=b2,
        n1w=jnp.ones((1, d_model), jnp.float32),
        n1b=jnp.zeros((1, d_model), jnp.float32),
        n2w=jnp.ones((1, d_model), jnp.float32),
        n2b=jnp.zeros((1, d_model), jnp.float32),
    ))

  return dict(
      emb_w=emb_w, emb_b=emb_b,
      fc_w=fc_w, fc_b=fc_b,
      pe=_positional_encoding(seq_len, d_model),
      layers=layers,
  )


# --------------------------------- main ------------------------------------ #

if __name__ == "__main__":
  # Small shapes consistent with the module's forward.
  B, S = 2, 8                 # batch, sequence length
  input_size = 4
  d_model = 32
  nhead = 4
  num_encoder_layers = 2
  dim_feedforward = 64
  output_len = 3
  # dropout=0.1 in __init__, but forward is evaluated in eval mode -> identity.

  key = jax.random.PRNGKey(0)
  kp, kx = jax.random.split(key)
  params = init_params(kp, input_size=input_size, d_model=d_model,
                       nhead=nhead, num_encoder_layers=num_encoder_layers,
                       dim_feedforward=dim_feedforward,
                       output_len=output_len, seq_len=S)

  x = jax.random.normal(kx, (B, S, input_size), dtype=jnp.float32)

  fwd = jax.jit(functools.partial(transformer_main_forward, nhead=nhead))
  out = fwd(x, params)
  out = jax.block_until_ready(out)
  assert out.shape == (B, output_len), out.shape
  assert bool(jnp.all(jnp.isfinite(out)))
  print("KERNEL_OK")
</pallas_src>

<mosaic_0001>
module attributes {stable_mosaic.version = 11 : i64} {
  func.func @_fused_transformer_kernel(%arg0: memref<16x4xf32, #tpu.memory_space<vmem>>, %arg1: memref<16x32xf32, #tpu.memory_space<vmem>>, %arg2: memref<4x32xbf16, #tpu.memory_space<vmem>>, %arg3: memref<1x32xf32, #tpu.memory_space<vmem>>, %arg4: memref<2x32x32xbf16, #tpu.memory_space<vmem>>, %arg5: memref<2x1x32xf32, #tpu.memory_space<vmem>>, %arg6: memref<2x32x32xbf16, #tpu.memory_space<vmem>>, %arg7: memref<2x1x32xf32, #tpu.memory_space<vmem>>, %arg8: memref<2x32x32xbf16, #tpu.memory_space<vmem>>, %arg9: memref<2x1x32xf32, #tpu.memory_space<vmem>>, %arg10: memref<2x32x32xbf16, #tpu.memory_space<vmem>>, %arg11: memref<2x1x32xf32, #tpu.memory_space<vmem>>, %arg12: memref<2x1x32xf32, #tpu.memory_space<vmem>>, %arg13: memref<2x1x32xf32, #tpu.memory_space<vmem>>, %arg14: memref<2x32x64xbf16, #tpu.memory_space<vmem>>, %arg15: memref<2x1x64xf32, #tpu.memory_space<vmem>>, %arg16: memref<2x64x32xbf16, #tpu.memory_space<vmem>>, %arg17: memref<2x1x32xf32, #tpu.memory_space<vmem>>, %arg18: memref<2x1x32xf32, #tpu.memory_space<vmem>>, %arg19: memref<2x1x32xf32, #tpu.memory_space<vmem>>, %arg20: memref<32x3xbf16, #tpu.memory_space<vmem>>, %arg21: memref<1x3xf32, #tpu.memory_space<vmem>>, %arg22: memref<2x3xf32, #tpu.memory_space<vmem>>) attributes {dimension_semantics = [], scalar_prefetch = 0 : i64, scratch_operands = 0 : i64, tpu.core_type = #tpu.core_type<tc>} {
    %0 = tpu.iota {dimensions = array<i32: 2>} : vector<1x1x32xi32>
    %c0_i32 = arith.constant 0 : i32
    %1 = vector.broadcast %c0_i32 : i32 to vector<1x1x32xi32>
    %2 = arith.cmpi sge, %0, %1 : vector<1x1x32xi32>
    %c8_i32 = arith.constant 8 : i32
    %3 = vector.broadcast %c8_i32 : i32 to vector<1x1x32xi32>
    %4 = arith.cmpi slt, %0, %3 : vector<1x1x32xi32>
    %5 = arith.andi %2, %4 : vector<1x1x32xi1>
    %6 = arith.extui %5 : vector<1x1x32xi1> to vector<1x1x32xi32>
    %7 = arith.sitofp %6 : vector<1x1x32xi32> to vector<1x1x32xf32>
    %c8_i32_0 = arith.constant 8 : i32
    %8 = vector.broadcast %c8_i32_0 : i32 to vector<1x1x32xi32>
    %9 = arith.cmpi sge, %0, %8 : vector<1x1x32xi32>
    %c16_i32 = arith.constant 16 : i32
    %10 = vector.broadcast %c16_i32 : i32 to vector<1x1x32xi32>
    %11 = arith.cmpi slt, %0, %10 : vector<1x1x32xi32>
    %12 = arith.andi %9, %11 : vector<1x1x32xi1>
    %13 = arith.extui %12 : vector<1x1x32xi1> to vector<1x1x32xi32>
    %14 = arith.sitofp %13 : vector<1x1x32xi32> to vector<1x1x32xf32>
    %c16_i32_1 = arith.constant 16 : i32
    %15 = vector.broadcast %c16_i32_1 : i32 to vector<1x1x32xi32>
    %16 = arith.cmpi sge, %0, %15 : vector<1x1x32xi32>
    %c24_i32 = arith.constant 24 : i32
    %17 = vector.broadcast %c24_i32 : i32 to vector<1x1x32xi32>
    %18 = arith.cmpi slt, %0, %17 : vector<1x1x32xi32>
    %19 = arith.andi %16, %18 : vector<1x1x32xi1>
    %20 = arith.extui %19 : vector<1x1x32xi1> to vector<1x1x32xi32>
    %21 = arith.sitofp %20 : vector<1x1x32xi32> to vector<1x1x32xf32>
    %c24_i32_2 = arith.constant 24 : i32
    %22 = vector.broadcast %c24_i32_2 : i32 to vector<1x1x32xi32>
    %23 = arith.cmpi sge, %0, %22 : vector<1x1x32xi32>
    %c32_i32 = arith.constant 32 : i32
    %24 = vector.broadcast %c32_i32 : i32 to vector<1x1x32xi32>
    %25 = arith.cmpi slt, %0, %24 : vector<1x1x32xi32>
    %26 = arith.andi %23, %25 : vector<1x1x32xi1>
    %27 = arith.extui %26 : vector<1x1x32xi1> to vector<1x1x32xi32>
    %28 = arith.sitofp %27 : vector<1x1x32xi32> to vector<1x1x32xf32>
    %c0 = arith.constant 0 : index
    %c0_3 = arith.constant 0 : index
    %29 = vector.load %arg0[%c0, %c0_3] : memref<16x4xf32, #tpu.memory_space<vmem>>, vector<16x4xf32>
    %30 = arith.truncf %29 : vector<16x4xf32> to vector<16x4xbf16>
    %c0_4 = arith.constant 0 : index
    %c0_5 = arith.constant 0 : index
    %31 = vector.load %arg2[%c0_4, %c0_5] : memref<4x32xbf16, #tpu.memory_space<vmem>>, vector<4x32xbf16>
    %cst = arith.constant dense<0.000000e+00> : vector<16x32xf32>
    %32 = tpu.matmul %30, %31, %cst {dimension_numbers = #tpu.dot_dimension_numbers<[1], [0], [0], [1], [0, 0, 1, 1], [], []>} : vector<16x4xbf16>, vector<4x32xbf16>, vector<16x32xf32> -> vector<16x32xf32>
    %c0_6 = arith.constant 0 : index
    %c0_7 = arith.constant 0 : index
    %33 = vector.load %arg3[%c0_6, %c0_7] : memref<1x32xf32, #tpu.memory_space<vmem>>, vector<1x32xf32>
    %34 = vector.broadcast %33 : vector<1x32xf32> to vector<16x32xf32>
    %35 = arith.addf %32, %34 : vector<16x32xf32>
    %c0_8 = arith.constant 0 : index
    %c0_9 = arith.constant 0 : index
    %36 = vector.load %arg1[%c0_8, %c0_9] : memref<16x32xf32, #tpu.memory_space<vmem>>, vector<16x32xf32>
    %37 = arith.addf %35, %36 : vector<16x32xf32>
    %38 = arith.truncf %37 : vector<16x32xf32> to vector<16x32xbf16>
    %c0_10 = arith.constant 0 : index
    %c0_11 = arith.constant 0 : index
    %c0_12 = arith.constant 0 : index
    %39 = vector.load %arg4[%c0_10, %c0_11, %c0_12] : memref<2x32x32xbf16, #tpu.memory_space<vmem>>, vector<1x32x32xbf16>
    %40 = vector.shape_cast %39 : vector<1x32x32xbf16> to vector<32x32xbf16>
    %cst_13 = arith.constant dense<0.000000e+00> : vector<16x32xf32>
    %41 = tpu.matmul %38, %40, %cst_13 {dimension_numbers = #tpu.dot_dimension_numbers<[1], [0], [0], [1], [0, 0, 1, 1], [], []>} : vector<16x32xbf16>, vector<32x32xbf16>, vector<16x32xf32> -> vector<16x32xf32>
    %c0_14 = arith.constant 0 : index
    %c0_15 = arith.constant 0 : index
    %c0_16 = arith.constant 0 : index
    %42 = vector.load %arg5[%c0_14, %c0_15, %c0_16] : memref<2x1x32xf32, #tpu.memory_space<vmem>>, vector<1x1x32xf32>
    %43 = vector.shape_cast %42 : vector<1x1x32xf32> to vector<1x32xf32>
    %44 = vector.broadcast %43 : vector<1x32xf32> to vector<16x32xf32>
    %45 = arith.addf %41, %44 : vector<16x32xf32>
    %c0_17 = arith.constant 0 : index
    %c0_18 = arith.constant 0 : index
    %c0_19 = arith.constant 0 : index
    %46 = vector.load %arg6[%c0_17, %c0_18, %c0_19] : memref<2x32x32xbf16, #tpu.memory_space<vmem>>, vector<1x32x32xbf16>
    %47 = vector.shape_cast %46 : vector<1x32x32xbf16> to vector<32x32xbf16>
    %cst_20 = arith.constant dense<0.000000e+00> : vector<16x32xf32>
    %48 = tpu.matmul %38, %47, %cst_20 {dimension_numbers = #tpu.dot_dimension_numbers<[1], [0], [0], [1], [0, 0, 1, 1], [], []>} : vector<16x32xbf16>, vector<32x32xbf16>, vector<16x32xf32> -> vector<16x32xf32>
    %c0_21 = arith.constant 0 : index
    %c0_22 = arith.constant 0 : index
    %c0_23 = arith.constant 0 : index
    %49 = vector.load %arg7[%c0_21, %c0_22, %c0_23] : memref<2x1x32xf32, #tpu.memory_space<vmem>>, vector<1x1x32xf32>
    %50 = vector.shape_cast %49 : vector<1x1x32xf32> to vector<1x32xf32>
    %51 = vector.broadcast %50 : vector<1x32xf32> to vector<16x32xf32>
    %52 = arith.addf %48, %51 : vector<16x32xf32>
    %c0_24 = arith.constant 0 : index
    %c0_25 = arith.constant 0 : index
    %c0_26 = arith.constant 0 : index
    %53 = vector.load %arg8[%c0_24, %c0_25, %c0_26] : memref<2x32x32xbf16, #tpu.memory_space<vmem>>, vector<1x32x32xbf16>
    %54 = vector.shape_cast %53 : vector<1x32x32xbf16> to vector<32x32xbf16>
    %cst_27 = arith.constant dense<0.000000e+00> : vector<16x32xf32>
    %55 = tpu.matmul %38, %54, %cst_27 {dimension_numbers = #tpu.dot_dimension_numbers<[1], [0], [0], [1], [0, 0, 1, 1], [], []>} : vector<16x32xbf16>, vector<32x32xbf16>, vector<16x32xf32> -> vector<16x32xf32>
    %c0_28 = arith.constant 0 : index
    %c0_29 = arith.constant 0 : index
    %c0_30 = arith.constant 0 : index
    %56 = vector.load %arg9[%c0_28, %c0_29, %c0_30] : memref<2x1x32xf32, #tpu.memory_space<vmem>>, vector<1x1x32xf32>
    %57 = vector.shape_cast %56 : vector<1x1x32xf32> to vector<1x32xf32>
    %58 = vector.broadcast %57 : vector<1x32xf32> to vector<16x32xf32>
    %59 = arith.addf %55, %58 : vector<16x32xf32>
    %60 = vector.shape_cast %45 : vector<16x32xf32> to vector<2x8x32xf32>
    %61 = vector.shape_cast %52 : vector<16x32xf32> to vector<2x8x32xf32>
    %62 = arith.truncf %61 : vector<2x8x32xf32> to vector<2x8x32xbf16>
    %63 = vector.shape_cast %59 : vector<16x32xf32> to vector<2x8x32xf32>
    %cst_31 = arith.constant 0.000000e+00 : f32
    %64 = vector.broadcast %cst_31 : f32 to vector<2x8x32xf32>
    %65 = vector.broadcast %7 : vector<1x1x32xf32> to vector<2x8x32xf32>
    %66 = arith.mulf %60, %65 : vector<2x8x32xf32>
    %67 = arith.truncf %66 : vector<2x8x32xf32> to vector<2x8x32xbf16>
    "tpu.trace_start"() <{level = 10 : i32, message = "bqd,bkd->bqk"}> : () -> ()
    %cst_32 = arith.constant dense<0.000000e+00> : vector<2x8x8xf32>
    %68 = tpu.matmul %67, %62, %cst_32 {dimension_numbers = #tpu.dot_dimension_numbers<[2], [2], [1], [1], [0, 0, 0, 1, 1, 1], [0], [0]>} : vector<2x8x32xbf16>, vector<2x8x32xbf16>, vector<2x8x8xf32> -> vector<2x8x8xf32>
    "tpu.trace_stop"() : () -> ()
    %cst_33 = arith.constant 0.353553385 : f32
    %69 = vector.broadcast %cst_33 : f32 to vector<2x8x8xf32>
    %70 = arith.mulf %68, %69 : vector<2x8x8xf32>
    %cst_34 = arith.constant dense<0xFF800000> : vector<2x8xf32>
    %71 = vector.multi_reduction <maximumf>, %70, %cst_34 [2] : vector<2x8x8xf32> to vector<2x8xf32>
    %72 = vector.shape_cast %71 : vector<2x8xf32> to vector<2x8x1xf32>
    %73 = vector.broadcast %72 : vector<2x8x1xf32> to vector<2x8x8xf32>
    %74 = arith.subf %70, %73 : vector<2x8x8xf32>
    %75 = math.exp %74 : vector<2x8x8xf32>
    %cst_35 = arith.constant dense<0.000000e+00> : vector<2x8xf32>
    %76 = vector.multi_reduction <add>, %75, %cst_35 [2] : vector<2x8x8xf32> to vector<2x8xf32>
    %77 = vector.shape_cast %76 : vector<2x8xf32> to vector<2x8x1xf32>
    %78 = tpu.reciprocal %77 {approx = true} : vector<2x8x1xf32> -> vector<2x8x1xf32>
    %79 = vector.broadcast %78 : vector<2x8x1xf32> to vector<2x8x8xf32>
    %80 = arith.mulf %75, %79 : vector<2x8x8xf32>
    %81 = vector.broadcast %7 : vector<1x1x32xf32> to vector<2x8x32xf32>
    %82 = arith.mulf %63, %81 : vector<2x8x32xf32>
    %83 = arith.truncf %82 : vector<2x8x32xf32> to vector<2x8x32xbf16>
    %84 = arith.truncf %80 : vector<2x8x8xf32> to vector<2x8x8xbf16>
    "tpu.trace_start"() <{level = 10 : i32, message = "bqk,bkd->bqd"}> : () -> ()
    %cst_36 = arith.constant dense<0.000000e+00> : vector<2x8x32xf32>
    %85 = tpu.matmul %84, %83, %cst_36 {dimension_numbers = #tpu.dot_dimension_numbers<[2], [1], [1], [2], [0, 0, 0, 1, 1, 2], [0], [0]>} : vector<2x8x8xbf16>, vector<2x8x32xbf16>, vector<2x8x32xf32> -> vector<2x8x32xf32>
    "tpu.trace_stop"() : () -> ()
    %86 = arith.addf %64, %85 : vector<2x8x32xf32>
    %87 = vector.broadcast %14 : vector<1x1x32xf32> to vector<2x8x32xf32>
    %88 = arith.mulf %60, %87 : vector<2x8x32xf32>
    %89 = arith.truncf %88 : vector<2x8x32xf32> to vector<2x8x32xbf16>
    "tpu.trace_start"() <{level = 10 : i32, message = "bqd,bkd->bqk"}> : () -> ()
    %cst_37 = arith.constant dense<0.000000e+00> : vector<2x8x8xf32>
    %90 = tpu.matmul %89, %62, %cst_37 {dimension_numbers = #tpu.dot_dimension_numbers<[2], [2], [1], [1], [0, 0, 0, 1, 1, 1], [0], [0]>} : vector<2x8x32xbf16>, vector<2x8x32xbf16>, vector<2x8x8xf32> -> vector<2x8x8xf32>
    "tpu.trace_stop"() : () -> ()
    %cst_38 = arith.constant 0.353553385 : f32
    %91 = vector.broadcast %cst_38 : f32 to vector<2x8x8xf32>
    %92 = arith.mulf %90, %91 : vector<2x8x8xf32>
    %cst_39 = arith.constant dense<0xFF800000> : vector<2x8xf32>
    %93 = vector.multi_reduction <maximumf>, %92, %cst_39 [2] : vector<2x8x8xf32> to vector<2x8xf32>
    %94 = vector.shape_cast %93 : vector<2x8xf32> to vector<2x8x1xf32>
    %95 = vector.broadcast %94 : vector<2x8x1xf32> to vector<2x8x8xf32>
    %96 = arith.subf %92, %95 : vector<2x8x8xf32>
    %97 = math.exp %96 : vector<2x8x8xf32>
    %cst_40 = arith.constant dense<0.000000e+00> : vector<2x8xf32>
    %98 = vector.multi_reduction <add>, %97, %cst_40 [2] : vector<2x8x8xf32> to vector<2x8xf32>
    %99 = vector.shape_cast %98 : vector<2x8xf32> to vector<2x8x1xf32>
    %100 = tpu.reciprocal %99 {approx = true} : vector<2x8x1xf32> -> vector<2x8x1xf32>
    %101 = vector.broadcast %100 : vector<2x8x1xf32> to vector<2x8x8xf32>
    %102 = arith.mulf %97, %101 : vector<2x8x8xf32>
    %103 = vector.broadcast %14 : vector<1x1x32xf32> to vector<2x8x32xf32>
    %104 = arith.mulf %63, %103 : vector<2x8x32xf32>
    %105 = arith.truncf %104 : vector<2x8x32xf32> to vector<2x8x32xbf16>
    %106 = arith.truncf %102 : vector<2x8x8xf32> to vector<2x8x8xbf16>
    "tpu.trace_start"() <{level = 10 : i32, message = "bqk,bkd->bqd"}> : () -> ()
    %cst_41 = arith.constant dense<0.000000e+00> : vector<2x8x32xf32>
    %107 = tpu.matmul %106, %105, %cst_41 {dimension_numbers = #tpu.dot_dimension_numbers<[2], [1], [1], [2], [0, 0, 0, 1, 1, 2], [0], [0]>} : vector<2x8x8xbf16>, vector<2x8x32xbf16>, vector<2x8x32xf32> -> vector<2x8x32xf32>
    "tpu.trace_stop"() : () -> ()
    %108 = arith.addf %86, %107 : vector<2x8x32xf32>
    %109 = vector.broadcast %21 : vector<1x1x32xf32> to vector<2x8x32xf32>
    %110 = arith.mulf %60, %109 : vector<2x8x32xf32>
    %111 = arith.truncf %110 : vector<2x8x32xf32> to vector<2x8x32xbf16>
    "tpu.trace_start"() <{level = 10 : i32, message = "bqd,bkd->bqk"}> : () -> ()
    %cst_42 = arith.constant dense<0.000000e+00> : vector<2x8x8xf32>
    %112 = tpu.matmul %111, %62, %cst_42 {dimension_numbers = #tpu.dot_dimension_numbers<[2], [2], [1], [1], [0, 0, 0, 1, 1, 1], [0], [0]>} : vector<2x8x32xbf16>, vector<2x8x32xbf16>, vector<2x8x8xf32> -> vector<2x8x8xf32>
    "tpu.trace_stop"() : () -> ()
    %cst_43 = arith.constant 0.353553385 : f32
    %113 = vector.broadcast %cst_43 : f32 to vector<2x8x8xf32>
    %114 = arith.mulf %112, %113 : vector<2x8x8xf32>
    %cst_44 = arith.constant dense<0xFF800000> : vector<2x8xf32>
    %115 = vector.multi_reduction <maximumf>, %114, %cst_44 [2] : vector<2x8x8xf32> to vector<2x8xf32>
    %116 = vector.shape_cast %115 : vector<2x8xf32> to vector<2x8x1xf32>
    %117 = vector.broadcast %116 : vector<2x8x1xf32> to vector<2x8x8xf32>
    %118 = arith.subf %114, %117 : vector<2x8x8xf32>
    %119 = math.exp %118 : vector<2x8x8xf32>
    %cst_45 = arith.constant dense<0.000000e+00> : vector<2x8xf32>
    %120 = vector.multi_reduction <add>, %119, %cst_45 [2] : vector<2x8x8xf32> to vector<2x8xf32>
    %121 = vector.shape_cast %120 : vector<2x8xf32> to vector<2x8x1xf32>
    %122 = tpu.reciprocal %121 {approx = true} : vector<2x8x1xf32> -> vector<2x8x1xf32>
    %123 = vector.broadcast %122 : vector<2x8x1xf32> to vector<2x8x8xf32>
    %124 = arith.mulf %119, %123 : vector<2x8x8xf32>
    %125 = vector.broadcast %21 : vector<1x1x32xf32> to vector<2x8x32xf32>
    %126 = arith.mulf %63, %125 : vector<2x8x32xf32>
    %127 = arith.truncf %126 : vector<2x8x32xf32> to vector<2x8x32xbf16>
    %128 = arith.truncf %124 : vector<2x8x8xf32> to vector<2x8x8xbf16>
    "tpu.trace_start"() <{level = 10 : i32, message = "bqk,bkd->bqd"}> : () -> ()
    %cst_46 = arith.constant dense<0.000000e+00> : vector<2x8x32xf32>
    %129 = tpu.matmul %128, %127, %cst_46 {dimension_numbers = #tpu.dot_dimension_numbers<[2], [1], [1], [2], [0, 0, 0, 1, 1, 2], [0], [0]>} : vector<2x8x8xbf16>, vector<2x8x32xbf16>, vector<2x8x32xf32> -> vector<2x8x32xf32>
    "tpu.trace_stop"() : () -> ()
    %130 = arith.addf %108, %129 : vector<2x8x32xf32>
    %131 = vector.broadcast %28 : vector<1x1x32xf32> to vector<2x8x32xf32>
    %132 = arith.mulf %60, %131 : vector<2x8x32xf32>
    %133 = arith.truncf %132 : vector<2x8x32xf32> to vector<2x8x32xbf16>
    "tpu.trace_start"() <{level = 10 : i32, message = "bqd,bkd->bqk"}> : () -> ()
    %cst_47 = arith.constant dense<0.000000e+00> : vector<2x8x8xf32>
    %134 = tpu.matmul %133, %62, %cst_47 {dimension_numbers = #tpu.dot_dimension_numbers<[2], [2], [1], [1], [0, 0, 0, 1, 1, 1], [0], [0]>} : vector<2x8x32xbf16>, vector<2x8x32xbf16>, vector<2x8x8xf32> -> vector<2x8x8xf32>
    "tpu.trace_stop"() : () -> ()
    %cst_48 = arith.constant 0.353553385 : f32
    %135 = vector.broadcast %cst_48 : f32 to vector<2x8x8xf32>
    %136 = arith.mulf %134, %135 : vector<2x8x8xf32>
    %cst_49 = arith.constant dense<0xFF800000> : vector<2x8xf32>
    %137 = vector.multi_reduction <maximumf>, %136, %cst_49 [2] : vector<2x8x8xf32> to vector<2x8xf32>
    %138 = vector.shape_cast %137 : vector<2x8xf32> to vector<2x8x1xf32>
    %139 = vector.broadcast %138 : vector<2x8x1xf32> to vector<2x8x8xf32>
    %140 = arith.subf %136, %139 : vector<2x8x8xf32>
    %141 = math.exp %140 : vector<2x8x8xf32>
    %cst_50 = arith.constant dense<0.000000e+00> : vector<2x8xf32>
    %142 = vector.multi_reduction <add>, %141, %cst_50 [2] : vector<2x8x8xf32> to vector<2x8xf32>
    %143 = vector.shape_cast %142 : vector<2x8xf32> to vector<2x8x1xf32>
    %144 = tpu.reciprocal %143 {approx = true} : vector<2x8x1xf32> -> vector<2x8x1xf32>
    %145 = vector.broadcast %144 : vector<2x8x1xf32> to vector<2x8x8xf32>
    %146 = arith.mulf %141, %145 : vector<2x8x8xf32>
    %147 = vector.broadcast %28 : vector<1x1x32xf32> to vector<2x8x32xf32>
    %148 = arith.mulf %63, %147 : vector<2x8x32xf32>
    %149 = arith.truncf %148 : vector<2x8x32xf32> to vector<2x8x32xbf16>
    %150 = arith.truncf %146 : vector<2x8x8xf32> to vector<2x8x8xbf16>
    "tpu.trace_start"() <{level = 10 : i32, message = "bqk,bkd->bqd"}> : () -> ()
    %cst_51 = arith.constant dense<0.000000e+00> : vector<2x8x32xf32>
    %151 = tpu.matmul %150, %149, %cst_51 {dimension_numbers = #tpu.dot_dimension_numbers<[2], [1], [1], [2], [0, 0, 0, 1, 1, 2], [0], [0]>} : vector<2x8x8xbf16>, vector<2x8x32xbf16>, vector<2x8x32xf32> -> vector<2x8x32xf32>
    "tpu.trace_stop"() : () -> ()
    %152 = arith.addf %130, %151 : vector<2x8x32xf32>
    %153 = vector.shape_cast %152 : vector<2x8x32xf32> to vector<16x32xf32>
    %154 = arith.truncf %153 : vector<16x32xf32> to vector<16x32xbf16>
    %c0_52 = arith.constant 0 : index
    %c0_53 = arith.constant 0 : index
    %c0_54 = arith.constant 0 : index
    %155 = vector.load %arg10[%c0_52, %c0_53, %c0_54] : memref<2x32x32xbf16, #tpu.memory_space<vmem>>, vector<1x32x32xbf16>
    %156 = vector.shape_cast %155 : vector<1x32x32xbf16> to vector<32x32xbf16>
    %cst_55 = arith.constant dense<0.000000e+00> : vector<16x32xf32>
    %157 = tpu.matmul %154, %156, %cst_55 {dimension_numbers = #tpu.dot_dimension_numbers<[1], [0], [0], [1], [0, 0, 1, 1], [], []>} : vector<16x32xbf16>, vector<32x32xbf16>, vector<16x32xf32> -> vector<16x32xf32>
    %c0_56 = arith.constant 0 : index
    %c0_57 = arith.constant 0 : index
    %c0_58 = arith.constant 0 : index
    %158 = vector.load %arg11[%c0_56, %c0_57, %c0_58] : memref<2x1x32xf32, #tpu.memory_space<vmem>>, vector<1x1x32xf32>
    %159 = vector.shape_cast %158 : vector<1x1x32xf32> to vector<1x32xf32>
    %160 = vector.broadcast %159 : vector<1x32xf32> to vector<16x32xf32>
    %161 = arith.addf %157, %160 : vector<16x32xf32>
    %162 = arith.addf %37, %161 : vector<16x32xf32>
    %cst_59 = arith.constant dense<0.000000e+00> : vector<16xf32>
    %163 = vector.multi_reduction <add>, %162, %cst_59 [1] : vector<16x32xf32> to vector<16xf32>
    %164 = vector.shape_cast %163 : vector<16xf32> to vector<16x1xf32>
    %cst_60 = arith.constant 3.200000e+01 : f32
    %165 = vector.broadcast %cst_60 : f32 to vector<16x1xf32>
    %166 = arith.divf %164, %165 : vector<16x1xf32>
    %167 = vector.broadcast %166 : vector<16x1xf32> to vector<16x32xf32>
    %168 = arith.subf %162, %167 : vector<16x32xf32>
    %169 = arith.mulf %168, %168 : vector<16x32xf32>
    %cst_61 = arith.constant dense<0.000000e+00> : vector<16xf32>
    %170 = vector.multi_reduction <add>, %169, %cst_61 [1] : vector<16x32xf32> to vector<16xf32>
    %171 = vector.shape_cast %170 : vector<16xf32> to vector<16x1xf32>
    %cst_62 = arith.constant 3.200000e+01 : f32
    %172 = vector.broadcast %cst_62 : f32 to vector<16x1xf32>
    %173 = arith.divf %171, %172 : vector<16x1xf32>
    %174 = vector.broadcast %166 : vector<16x1xf32> to vector<16x32xf32>
    %175 = arith.subf %162, %174 : vector<16x32xf32>
    %cst_63 = arith.constant 9.99999974E-6 : f32
    %176 = vector.broadcast %cst_63 : f32 to vector<16x1xf32>
    %177 = arith.addf %173, %176 : vector<16x1xf32>
    %178 = math.rsqrt %177 : vector<16x1xf32>
    %179 = vector.broadcast %178 : vector<16x1xf32> to vector<16x32xf32>
    %180 = arith.mulf %175, %179 : vector<16x32xf32>
    %c0_64 = arith.constant 0 : index
    %c0_65 = arith.constant 0 : index
    %c0_66 = arith.constant 0 : index
    %181 = vector.load %arg12[%c0_64, %c0_65, %c0_66] : memref<2x1x32xf32, #tpu.memory_space<vmem>>, vector<1x1x32xf32>
    %182 = vector.shape_cast %181 : vector<1x1x32xf32> to vector<1x32xf32>
    %183 = vector.broadcast %182 : vector<1x32xf32> to vector<16x32xf32>
    %184 = arith.mulf %180, %183 : vector<16x32xf32>
    %c0_67 = arith.constant 0 : index
    %c0_68 = arith.constant 0 : index
    %c0_69 = arith.constant 0 : index
    %185 = vector.load %arg13[%c0_67, %c0_68, %c0_69] : memref<2x1x32xf32, #tpu.memory_space<vmem>>, vector<1x1x32xf32>
    %186 = vector.shape_cast %185 : vector<1x1x32xf32> to vector<1x32xf32>
    %187 = vector.broadcast %186 : vector<1x32xf32> to vector<16x32xf32>
    %188 = arith.addf %184, %187 : vector<16x32xf32>
    %189 = arith.truncf %188 : vector<16x32xf32> to vector<16x32xbf16>
    %c0_70 = arith.constant 0 : index
    %c0_71 = arith.constant 0 : index
    %c0_72 = arith.constant 0 : index
    %190 = vector.load %arg14[%c0_70, %c0_71, %c0_72] : memref<2x32x64xbf16, #tpu.memory_space<vmem>>, vector<1x32x64xbf16>
    %191 = vector.shape_cast %190 : vector<1x32x64xbf16> to vector<32x64xbf16>
    %cst_73 = arith.constant dense<0.000000e+00> : vector<16x64xf32>
    %192 = tpu.matmul %189, %191, %cst_73 {dimension_numbers = #tpu.dot_dimension_numbers<[1], [0], [0], [1], [0, 0, 1, 1], [], []>} : vector<16x32xbf16>, vector<32x64xbf16>, vector<16x64xf32> -> vector<16x64xf32>
    %c0_74 = arith.constant 0 : index
    %c0_75 = arith.constant 0 : index
    %c0_76 = arith.constant 0 : index
    %193 = vector.load %arg15[%c0_74, %c0_75, %c0_76] : memref<2x1x64xf32, #tpu.memory_space<vmem>>, vector<1x1x64xf32>
    %194 = vector.shape_cast %193 : vector<1x1x64xf32> to vector<1x64xf32>
    %195 = vector.broadcast %194 : vector<1x64xf32> to vector<16x64xf32>
    %196 = arith.addf %192, %195 : vector<16x64xf32>
    %cst_77 = arith.constant 0.000000e+00 : f32
    %197 = vector.broadcast %cst_77 : f32 to vector<16x64xf32>
    %198 = arith.maximumf %196, %197 : vector<16x64xf32>
    %199 = arith.truncf %198 : vector<16x64xf32> to vector<16x64xbf16>
    %c0_78 = arith.constant 0 : index
    %c0_79 = arith.constant 0 : index
    %c0_80 = arith.constant 0 : index
    %200 = vector.load %arg16[%c0_78, %c0_79, %c0_80] : memref<2x64x32xbf16, #tpu.memory_space<vmem>>, vector<1x64x32xbf16>
    %201 = vector.shape_cast %200 : vector<1x64x32xbf16> to vector<64x32xbf16>
    %cst_81 = arith.constant dense<0.000000e+00> : vector<16x32xf32>
    %202 = tpu.matmul %199, %201, %cst_81 {dimension_numbers = #tpu.dot_dimension_numbers<[1], [0], [0], [1], [0, 0, 1, 1], [], []>} : vector<16x64xbf16>, vector<64x32xbf16>, vector<16x32xf32> -> vector<16x32xf32>
    %c0_82 = arith.constant 0 : index
    %c0_83 = arith.constant 0 : index
    %c0_84 = arith.constant 0 : index
    %203 = vector.load %arg17[%c0_82, %c0_83, %c0_84] : memref<2x1x32xf32, #tpu.memory_space<vmem>>, vector<1x1x32xf32>
    %204 = vector.shape_cast %203 : vector<1x1x32xf32> to vector<1x32xf32>
    %205 = vector.broadcast %204 : vector<1x32xf32> to vector<16x32xf32>
    %206 = arith.addf %202, %205 : vector<16x32xf32>
    %207 = arith.addf %188, %206 : vector<16x32xf32>
    %cst_85 = arith.constant dense<0.000000e+00> : vector<16xf32>
    %208 = vector.multi_reduction <add>, %207, %cst_85 [1] : vector<16x32xf32> to vector<16xf32>
    %209 = vector.shape_cast %208 : vector<16xf32> to vector<16x1xf32>
    %cst_86 = arith.constant 3.200000e+01 : f32
    %210 = vector.broadcast %cst_86 : f32 to vector<16x1xf32>
    %211 = arith.divf %209, %210 : vector<16x1xf32>
    %212 = vector.broadcast %211 : vector<16x1xf32> to vector<16x32xf32>
    %213 = arith.subf %207, %212 : vector<16x32xf32>
    %214 = arith.mulf %213, %213 : vector<16x32xf32>
    %cst_87 = arith.constant dense<0.000000e+00> : vector<16xf32>
    %215 = vector.multi_reduction <add>, %214, %cst_87 [1] : vector<16x32xf32> to vector<16xf32>
    %216 = vector.shape_cast %215 : vector<16xf32> to vector<16x1xf32>
    %cst_88 = arith.constant 3.200000e+01 : f32
    %217 = vector.broadcast %cst_88 : f32 to vector<16x1xf32>
    %218 = arith.divf %216, %217 : vector<16x1xf32>
    %219 = vector.broadcast %211 : vector<16x1xf32> to vector<16x32xf32>
    %220 = arith.subf %207, %219 : vector<16x32xf32>
    %cst_89 = arith.constant 9.99999974E-6 : f32
    %221 = vector.broadcast %cst_89 : f32 to vector<16x1xf32>
    %222 = arith.addf %218, %221 : vector<16x1xf32>
    %223 = math.rsqrt %222 : vector<16x1xf32>
    %224 = vector.broadcast %223 : vector<16x1xf32> to vector<16x32xf32>
    %225 = arith.mulf %220, %224 : vector<16x32xf32>
    %c0_90 = arith.constant 0 : index
    %c0_91 = arith.constant 0 : index
    %c0_92 = arith.constant 0 : index
    %226 = vector.load %arg18[%c0_90, %c0_91, %c0_92] : memref<2x1x32xf32, #tpu.memory_space<vmem>>, vector<1x1x32xf32>
    %227 = vector.shape_cast %226 : vector<1x1x32xf32> to vector<1x32xf32>
    %228 = vector.broadcast %227 : vector<1x32xf32> to vector<16x32xf32>
    %229 = arith.mulf %225, %228 : vector<16x32xf32>
    %c0_93 = arith.constant 0 : index
    %c0_94 = arith.constant 0 : index
    %c0_95 = arith.constant 0 : index
    %230 = vector.load %arg19[%c0_93, %c0_94, %c0_95] : memref<2x1x32xf32, #tpu.memory_space<vmem>>, vector<1x1x32xf32>
    %231 = vector.shape_cast %230 : vector<1x1x32xf32> to vector<1x32xf32>
    %232 = vector.broadcast %231 : vector<1x32xf32> to vector<16x32xf32>
    %233 = arith.addf %229, %232 : vector<16x32xf32>
    %234 = arith.truncf %233 : vector<16x32xf32> to vector<16x32xbf16>
    %c1 = arith.constant 1 : index
    %c0_96 = arith.constant 0 : index
    %c0_97 = arith.constant 0 : index
    %235 = vector.load %arg4[%c1, %c0_96, %c0_97] : memref<2x32x32xbf16, #tpu.memory_space<vmem>>, vector<1x32x32xbf16>
    %236 = vector.shape_cast %235 : vector<1x32x32xbf16> to vector<32x32xbf16>
    %cst_98 = arith.constant dense<0.000000e+00> : vector<16x32xf32>
    %237 = tpu.matmul %234, %236, %cst_98 {dimension_numbers = #tpu.dot_dimension_numbers<[1], [0], [0], [1], [0, 0, 1, 1], [], []>} : vector<16x32xbf16>, vector<32x32xbf16>, vector<16x32xf32> -> vector<16x32xf32>
    %c1_99 = arith.constant 1 : index
    %c0_100 = arith.constant 0 : index
    %c0_101 = arith.constant 0 : index
    %238 = vector.load %arg5[%c1_99, %c0_100, %c0_101] : memref<2x1x32xf32, #tpu.memory_space<vmem>>, vector<1x1x32xf32>
    %239 = vector.shape_cast %238 : vector<1x1x32xf32> to vector<1x32xf32>
    %240 = vector.broadcast %239 : vector<1x32xf32> to vector<16x32xf32>
    %241 = arith.addf %237, %240 : vector<16x32xf32>
    %c1_102 = arith.constant 1 : index
    %c0_103 = arith.constant 0 : index
    %c0_104 = arith.constant 0 : index
    %242 = vector.load %arg6[%c1_102, %c0_103, %c0_104] : memref<2x32x32xbf16, #tpu.memory_space<vmem>>, vector<1x32x32xbf16>
    %243 = vector.shape_cast %242 : vector<1x32x32xbf16> to vector<32x32xbf16>
    %cst_105 = arith.constant dense<0.000000e+00> : vector<16x32xf32>
    %244 = tpu.matmul %234, %243, %cst_105 {dimension_numbers = #tpu.dot_dimension_numbers<[1], [0], [0], [1], [0, 0, 1, 1], [], []>} : vector<16x32xbf16>, vector<32x32xbf16>, vector<16x32xf32> -> vector<16x32xf32>
    %c1_106 = arith.constant 1 : index
    %c0_107 = arith.constant 0 : index
    %c0_108 = arith.constant 0 : index
    %245 = vector.load %arg7[%c1_106, %c0_107, %c0_108] : memref<2x1x32xf32, #tpu.memory_space<vmem>>, vector<1x1x32xf32>
    %246 = vector.shape_cast %245 : vector<1x1x32xf32> to vector<1x32xf32>
    %247 = vector.broadcast %246 : vector<1x32xf32> to vector<16x32xf32>
    %248 = arith.addf %244, %247 : vector<16x32xf32>
    %c1_109 = arith.constant 1 : index
    %c0_110 = arith.constant 0 : index
    %c0_111 = arith.constant 0 : index
    %249 = vector.load %arg8[%c1_109, %c0_110, %c0_111] : memref<2x32x32xbf16, #tpu.memory_space<vmem>>, vector<1x32x32xbf16>
    %250 = vector.shape_cast %249 : vector<1x32x32xbf16> to vector<32x32xbf16>
    %cst_112 = arith.constant dense<0.000000e+00> : vector<16x32xf32>
    %251 = tpu.matmul %234, %250, %cst_112 {dimension_numbers = #tpu.dot_dimension_numbers<[1], [0], [0], [1], [0, 0, 1, 1], [], []>} : vector<16x32xbf16>, vector<32x32xbf16>, vector<16x32xf32> -> vector<16x32xf32>
    %c1_113 = arith.constant 1 : index
    %c0_114 = arith.constant 0 : index
    %c0_115 = arith.constant 0 : index
    %252 = vector.load %arg9[%c1_113, %c0_114, %c0_115] : memref<2x1x32xf32, #tpu.memory_space<vmem>>, vector<1x1x32xf32>
    %253 = vector.shape_cast %252 : vector<1x1x32xf32> to vector<1x32xf32>
    %254 = vector.broadcast %253 : vector<1x32xf32> to vector<16x32xf32>
    %255 = arith.addf %251, %254 : vector<16x32xf32>
    %256 = vector.shape_cast %241 : vector<16x32xf32> to vector<2x8x32xf32>
    %257 = vector.shape_cast %248 : vector<16x32xf32> to vector<2x8x32xf32>
    %258 = arith.truncf %257 : vector<2x8x32xf32> to vector<2x8x32xbf16>
    %259 = vector.shape_cast %255 : vector<16x32xf32> to vector<2x8x32xf32>
    %cst_116 = arith.constant 0.000000e+00 : f32
    %260 = vector.broadcast %cst_116 : f32 to vector<2x8x32xf32>
    %261 = vector.broadcast %7 : vector<1x1x32xf32> to vector<2x8x32xf32>
    %262 = arith.mulf %256, %261 : vector<2x8x32xf32>
    %263 = arith.truncf %262 : vector<2x8x32xf32> to vector<2x8x32xbf16>
    "tpu.trace_start"() <{level = 10 : i32, message = "bqd,bkd->bqk"}> : () -> ()
    %cst_117 = arith.constant dense<0.000000e+00> : vector<2x8x8xf32>
    %264 = tpu.matmul %263, %258, %cst_117 {dimension_numbers = #tpu.dot_dimension_numbers<[2], [2], [1], [1], [0, 0, 0, 1, 1, 1], [0], [0]>} : vector<2x8x32xbf16>, vector<2x8x32xbf16>, vector<2x8x8xf32> -> vector<2x8x8xf32>
    "tpu.trace_stop"() : () -> ()
    %cst_118 = arith.constant 0.353553385 : f32
    %265 = vector.broadcast %cst_118 : f32 to vector<2x8x8xf32>
    %266 = arith.mulf %264, %265 : vector<2x8x8xf32>
    %cst_119 = arith.constant dense<0xFF800000> : vector<2x8xf32>
    %267 = vector.multi_reduction <maximumf>, %266, %cst_119 [2] : vector<2x8x8xf32> to vector<2x8xf32>
    %268 = vector.shape_cast %267 : vector<2x8xf32> to vector<2x8x1xf32>
    %269 = vector.broadcast %268 : vector<2x8x1xf32> to vector<2x8x8xf32>
    %270 = arith.subf %266, %269 : vector<2x8x8xf32>
    %271 = math.exp %270 : vector<2x8x8xf32>
    %cst_120 = arith.constant dense<0.000000e+00> : vector<2x8xf32>
    %272 = vector.multi_reduction <add>, %271, %cst_120 [2] : vector<2x8x8xf32> to vector<2x8xf32>
    %273 = vector.shape_cast %272 : vector<2x8xf32> to vector<2x8x1xf32>
    %274 = tpu.reciprocal %273 {approx = true} : vector<2x8x1xf32> -> vector<2x8x1xf32>
    %275 = vector.broadcast %274 : vector<2x8x1xf32> to vector<2x8x8xf32>
    %276 = arith.mulf %271, %275 : vector<2x8x8xf32>
    %277 = vector.broadcast %7 : vector<1x1x32xf32> to vector<2x8x32xf32>
    %278 = arith.mulf %259, %277 : vector<2x8x32xf32>
    %279 = arith.truncf %278 : vector<2x8x32xf32> to vector<2x8x32xbf16>
    %280 = arith.truncf %276 : vector<2x8x8xf32> to vector<2x8x8xbf16>
    "tpu.trace_start"() <{level = 10 : i32, message = "bqk,bkd->bqd"}> : () -> ()
    %cst_121 = arith.constant dense<0.000000e+00> : vector<2x8x32xf32>
    %281 = tpu.matmul %280, %279, %cst_121 {dimension_numbers = #tpu.dot_dimension_numbers<[2], [1], [1], [2], [0, 0, 0, 1, 1, 2], [0], [0]>} : vector<2x8x8xbf16>, vector<2x8x32xbf16>, vector<2x8x32xf32> -> vector<2x8x32xf32>
    "tpu.trace_stop"() : () -> ()
    %282 = arith.addf %260, %281 : vector<2x8x32xf32>
    %283 = vector.broadcast %14 : vector<1x1x32xf32> to vector<2x8x32xf32>
    %284 = arith.mulf %256, %283 : vector<2x8x32xf32>
    %285 = arith.truncf %284 : vector<2x8x32xf32> to vector<2x8x32xbf16>
    "tpu.trace_start"() <{level = 10 : i32, message = "bqd,bkd->bqk"}> : () -> ()
    %cst_122 = arith.constant dense<0.000000e+00> : vector<2x8x8xf32>
    %286 = tpu.matmul %285, %258, %cst_122 {dimension_numbers = #tpu.dot_dimension_numbers<[2], [2], [1], [1], [0, 0, 0, 1, 1, 1], [0], [0]>} : vector<2x8x32xbf16>, vector<2x8x32xbf16>, vector<2x8x8xf32> -> vector<2x8x8xf32>
    "tpu.trace_stop"() : () -> ()
    %cst_123 = arith.constant 0.353553385 : f32
    %287 = vector.broadcast %cst_123 : f32 to vector<2x8x8xf32>
    %288 = arith.mulf %286, %287 : vector<2x8x8xf32>
    %cst_124 = arith.constant dense<0xFF800000> : vector<2x8xf32>
    %289 = vector.multi_reduction <maximumf>, %288, %cst_124 [2] : vector<2x8x8xf32> to vector<2x8xf32>
    %290 = vector.shape_cast %289 : vector<2x8xf32> to vector<2x8x1xf32>
    %291 = vector.broadcast %290 : vector<2x8x1xf32> to vector<2x8x8xf32>
    %292 = arith.subf %288, %291 : vector<2x8x8xf32>
    %293 = math.exp %292 : vector<2x8x8xf32>
    %cst_125 = arith.constant dense<0.000000e+00> : vector<2x8xf32>
    %294 = vector.multi_reduction <add>, %293, %cst_125 [2] : vector<2x8x8xf32> to vector<2x8xf32>
    %295 = vector.shape_cast %294 : vector<2x8xf32> to vector<2x8x1xf32>
    %296 = tpu.reciprocal %295 {approx = true} : vector<2x8x1xf32> -> vector<2x8x1xf32>
    %297 = vector.broadcast %296 : vector<2x8x1xf32> to vector<2x8x8xf32>
    %298 = arith.mulf %293, %297 : vector<2x8x8xf32>
    %299 = vector.broadcast %14 : vector<1x1x32xf32> to vector<2x8x32xf32>
    %300 = arith.mulf %259, %299 : vector<2x8x32xf32>
    %301 = arith.truncf %300 : vector<2x8x32xf32> to vector<2x8x32xbf16>
    %302 = arith.truncf %298 : vector<2x8x8xf32> to vector<2x8x8xbf16>
    "tpu.trace_start"() <{level = 10 : i32, message = "bqk,bkd->bqd"}> : () -> ()
    %cst_126 = arith.constant dense<0.000000e+00> : vector<2x8x32xf32>
    %303 = tpu.matmul %302, %301, %cst_126 {dimension_numbers = #tpu.dot_dimension_numbers<[2], [1], [1], [2], [0, 0, 0, 1, 1, 2], [0], [0]>} : vector<2x8x8xbf16>, vector<2x8x32xbf16>, vector<2x8x32xf32> -> vector<2x8x32xf32>
    "tpu.trace_stop"() : () -> ()
    %304 = arith.addf %282, %303 : vector<2x8x32xf32>
    %305 = vector.broadcast %21 : vector<1x1x32xf32> to vector<2x8x32xf32>
    %306 = arith.mulf %256, %305 : vector<2x8x32xf32>
    %307 = arith.truncf %306 : vector<2x8x32xf32> to vector<2x8x32xbf16>
    "tpu.trace_start"() <{level = 10 : i32, message = "bqd,bkd->bqk"}> : () -> ()
    %cst_127 = arith.constant dense<0.000000e+00> : vector<2x8x8xf32>
    %308 = tpu.matmul %307, %258, %cst_127 {dimension_numbers = #tpu.dot_dimension_numbers<[2], [2], [1], [1], [0, 0, 0, 1, 1, 1], [0], [0]>} : vector<2x8x32xbf16>, vector<2x8x32xbf16>, vector<2x8x8xf32> -> vector<2x8x8xf32>
    "tpu.trace_stop"() : () -> ()
    %cst_128 = arith.constant 0.353553385 : f32
    %309 = vector.broadcast %cst_128 : f32 to vector<2x8x8xf32>
    %310 = arith.mulf %308, %309 : vector<2x8x8xf32>
    %cst_129 = arith.constant dense<0xFF800000> : vector<2x8xf32>
    %311 = vector.multi_reduction <maximumf>, %310, %cst_129 [2] : vector<2x8x8xf32> to vector<2x8xf32>
    %312 = vector.shape_cast %311 : vector<2x8xf32> to vector<2x8x1xf32>
    %313 = vector.broadcast %312 : vector<2x8x1xf32> to vector<2x8x8xf32>
    %314 = arith.subf %310, %313 : vector<2x8x8xf32>
    %315 = math.exp %314 : vector<2x8x8xf32>
    %cst_130 = arith.constant dense<0.000000e+00> : vector<2x8xf32>
    %316 = vector.multi_reduction <add>, %315, %cst_130 [2] : vector<2x8x8xf32> to vector<2x8xf32>
    %317 = vector.shape_cast %316 : vector<2x8xf32> to vector<2x8x1xf32>
    %318 = tpu.reciprocal %317 {approx = true} : vector<2x8x1xf32> -> vector<2x8x1xf32>
    %319 = vector.broadcast %318 : vector<2x8x1xf32> to vector<2x8x8xf32>
    %320 = arith.mulf %315, %319 : vector<2x8x8xf32>
    %321 = vector.broadcast %21 : vector<1x1x32xf32> to vector<2x8x32xf32>
    %322 = arith.mulf %259, %321 : vector<2x8x32xf32>
    %323 = arith.truncf %322 : vector<2x8x32xf32> to vector<2x8x32xbf16>
    %324 = arith.truncf %320 : vector<2x8x8xf32> to vector<2x8x8xbf16>
    "tpu.trace_start"() <{level = 10 : i32, message = "bqk,bkd->bqd"}> : () -> ()
    %cst_131 = arith.constant dense<0.000000e+00> : vector<2x8x32xf32>
    %325 = tpu.matmul %324, %323, %cst_131 {dimension_numbers = #tpu.dot_dimension_numbers<[2], [1], [1], [2], [0, 0, 0, 1, 1, 2], [0], [0]>} : vector<2x8x8xbf16>, vector<2x8x32xbf16>, vector<2x8x32xf32> -> vector<2x8x32xf32>
    "tpu.trace_stop"() : () -> ()
    %326 = arith.addf %304, %325 : vector<2x8x32xf32>
    %327 = vector.broadcast %28 : vector<1x1x32xf32> to vector<2x8x32xf32>
    %328 = arith.mulf %256, %327 : vector<2x8x32xf32>
    %329 = arith.truncf %328 : vector<2x8x32xf32> to vector<2x8x32xbf16>
    "tpu.trace_start"() <{level = 10 : i32, message = "bqd,bkd->bqk"}> : () -> ()
    %cst_132 = arith.constant dense<0.000000e+00> : vector<2x8x8xf32>
    %330 = tpu.matmul %329, %258, %cst_132 {dimension_numbers = #tpu.dot_dimension_numbers<[2], [2], [1], [1], [0, 0, 0, 1, 1, 1], [0], [0]>} : vector<2x8x32xbf16>, vector<2x8x32xbf16>, vector<2x8x8xf32> -> vector<2x8x8xf32>
    "tpu.trace_stop"() : () -> ()
    %cst_133 = arith.constant 0.353553385 : f32
    %331 = vector.broadcast %cst_133 : f32 to vector<2x8x8xf32>
    %332 = arith.mulf %330, %331 : vector<2x8x8xf32>
    %cst_134 = arith.constant dense<0xFF800000> : vector<2x8xf32>
    %333 = vector.multi_reduction <maximumf>, %332, %cst_134 [2] : vector<2x8x8xf32> to vector<2x8xf32>
    %334 = vector.shape_cast %333 : vector<2x8xf32> to vector<2x8x1xf32>
    %335 = vector.broadcast %334 : vector<2x8x1xf32> to vector<2x8x8xf32>
    %336 = arith.subf %332, %335 : vector<2x8x8xf32>
    %337 = math.exp %336 : vector<2x8x8xf32>
    %cst_135 = arith.constant dense<0.000000e+00> : vector<2x8xf32>
    %338 = vector.multi_reduction <add>, %337, %cst_135 [2] : vector<2x8x8xf32> to vector<2x8xf32>
    %339 = vector.shape_cast %338 : vector<2x8xf32> to vector<2x8x1xf32>
    %340 = tpu.reciprocal %339 {approx = true} : vector<2x8x1xf32> -> vector<2x8x1xf32>
    %341 = vector.broadcast %340 : vector<2x8x1xf32> to vector<2x8x8xf32>
    %342 = arith.mulf %337, %341 : vector<2x8x8xf32>
    %343 = vector.broadcast %28 : vector<1x1x32xf32> to vector<2x8x32xf32>
    %344 = arith.mulf %259, %343 : vector<2x8x32xf32>
    %345 = arith.truncf %344 : vector<2x8x32xf32> to vector<2x8x32xbf16>
    %346 = arith.truncf %342 : vector<2x8x8xf32> to vector<2x8x8xbf16>
    "tpu.trace_start"() <{level = 10 : i32, message = "bqk,bkd->bqd"}> : () -> ()
    %cst_136 = arith.constant dense<0.000000e+00> : vector<2x8x32xf32>
    %347 = tpu.matmul %346, %345, %cst_136 {dimension_numbers = #tpu.dot_dimension_numbers<[2], [1], [1], [2], [0, 0, 0, 1, 1, 2], [0], [0]>} : vector<2x8x8xbf16>, vector<2x8x32xbf16>, vector<2x8x32xf32> -> vector<2x8x32xf32>
    "tpu.trace_stop"() : () -> ()
    %348 = arith.addf %326, %347 : vector<2x8x32xf32>
    %349 = vector.shape_cast %348 : vector<2x8x32xf32> to vector<16x32xf32>
    %350 = arith.truncf %349 : vector<16x32xf32> to vector<16x32xbf16>
    %c1_137 = arith.constant 1 : index
    %c0_138 = arith.constant 0 : index
    %c0_139 = arith.constant 0 : index
    %351 = vector.load %arg10[%c1_137, %c0_138, %c0_139] : memref<2x32x32xbf16, #tpu.memory_space<vmem>>, vector<1x32x32xbf16>
    %352 = vector.shape_cast %351 : vector<1x32x32xbf16> to vector<32x32xbf16>
    %cst_140 = arith.constant dense<0.000000e+00> : vector<16x32xf32>
    %353 = tpu.matmul %350, %352, %cst_140 {dimension_numbers = #tpu.dot_dimension_numbers<[1], [0], [0], [1], [0, 0, 1, 1], [], []>} : vector<16x32xbf16>, vector<32x32xbf16>, vector<16x32xf32> -> vector<16x32xf32>
    %c1_141 = arith.constant 1 : index
    %c0_142 = arith.constant 0 : index
    %c0_143 = arith.constant 0 : index
    %354 = vector.load %arg11[%c1_141, %c0_142, %c0_143] : memref<2x1x32xf32, #tpu.memory_space<vmem>>, vector<1x1x32xf32>
    %355 = vector.shape_cast %354 : vector<1x1x32xf32> to vector<1x32xf32>
    %356 = vector.broadcast %355 : vector<1x32xf32> to vector<16x32xf32>
    %357 = arith.addf %353, %356 : vector<16x32xf32>
    %358 = arith.addf %233, %357 : vector<16x32xf32>
    %cst_144 = arith.constant dense<0.000000e+00> : vector<16xf32>
    %359 = vector.multi_reduction <add>, %358, %cst_144 [1] : vector<16x32xf32> to vector<16xf32>
    %360 = vector.shape_cast %359 : vector<16xf32> to vector<16x1xf32>
    %cst_145 = arith.constant 3.200000e+01 : f32
    %361 = vector.broadcast %cst_145 : f32 to vector<16x1xf32>
    %362 = arith.divf %360, %361 : vector<16x1xf32>
    %363 = vector.broadcast %362 : vector<16x1xf32> to vector<16x32xf32>
    %364 = arith.subf %358, %363 : vector<16x32xf32>
    %365 = arith.mulf %364, %364 : vector<16x32xf32>
    %cst_146 = arith.constant dense<0.000000e+00> : vector<16xf32>
    %366 = vector.multi_reduction <add>, %365, %cst_146 [1] : vector<16x32xf32> to vector<16xf32>
    %367 = vector.shape_cast %366 : vector<16xf32> to vector<16x1xf32>
    %cst_147 = arith.constant 3.200000e+01 : f32
    %368 = vector.broadcast %cst_147 : f32 to vector<16x1xf32>
    %369 = arith.divf %367, %368 : vector<16x1xf32>
    %370 = vector.broadcast %362 : vector<16x1xf32> to vector<16x32xf32>
    %371 = arith.subf %358, %370 : vector<16x32xf32>
    %cst_148 = arith.constant 9.99999974E-6 : f32
    %372 = vector.broadcast %cst_148 : f32 to vector<16x1xf32>
    %373 = arith.addf %369, %372 : vector<16x1xf32>
    %374 = math.rsqrt %373 : vector<16x1xf32>
    %375 = vector.broadcast %374 : vector<16x1xf32> to vector<16x32xf32>
    %376 = arith.mulf %371, %375 : vector<16x32xf32>
    %c1_149 = arith.constant 1 : index
    %c0_150 = arith.constant 0 : index
    %c0_151 = arith.constant 0 : index
    %377 = vector.load %arg12[%c1_149, %c0_150, %c0_151] : memref<2x1x32xf32, #tpu.memory_space<vmem>>, vector<1x1x32xf32>
    %378 = vector.shape_cast %377 : vector<1x1x32xf32> to vector<1x32xf32>
    %379 = vector.broadcast %378 : vector<1x32xf32> to vector<16x32xf32>
    %380 = arith.mulf %376, %379 : vector<16x32xf32>
    %c1_152 = arith.constant 1 : index
    %c0_153 = arith.constant 0 : index
    %c0_154 = arith.constant 0 : index
    %381 = vector.load %arg13[%c1_152, %c0_153, %c0_154] : memref<2x1x32xf32, #tpu.memory_space<vmem>>, vector<1x1x32xf32>
    %382 = vector.shape_cast %381 : vector<1x1x32xf32> to vector<1x32xf32>
    %383 = vector.broadcast %382 : vector<1x32xf32> to vector<16x32xf32>
    %384 = arith.addf %380, %383 : vector<16x32xf32>
    %385 = arith.truncf %384 : vector<16x32xf32> to vector<16x32xbf16>
    %c1_155 = arith.constant 1 : index
    %c0_156 = arith.constant 0 : index
    %c0_157 = arith.constant 0 : index
    %386 = vector.load %arg14[%c1_155, %c0_156, %c0_157] : memref<2x32x64xbf16, #tpu.memory_space<vmem>>, vector<1x32x64xbf16>
    %387 = vector.shape_cast %386 : vector<1x32x64xbf16> to vector<32x64xbf16>
    %cst_158 = arith.constant dense<0.000000e+00> : vector<16x64xf32>
    %388 = tpu.matmul %385, %387, %cst_158 {dimension_numbers = #tpu.dot_dimension_numbers<[1], [0], [0], [1], [0, 0, 1, 1], [], []>} : vector<16x32xbf16>, vector<32x64xbf16>, vector<16x64xf32> -> vector<16x64xf32>
    %c1_159 = arith.constant 1 : index
    %c0_160 = arith.constant 0 : index
    %c0_161 = arith.constant 0 : index
    %389 = vector.load %arg15[%c1_159, %c0_160, %c0_161] : memref<2x1x64xf32, #tpu.memory_space<vmem>>, vector<1x1x64xf32>
    %390 = vector.shape_cast %389 : vector<1x1x64xf32> to vector<1x64xf32>
    %391 = vector.broadcast %390 : vector<1x64xf32> to vector<16x64xf32>
    %392 = arith.addf %388, %391 : vector<16x64xf32>
    %cst_162 = arith.constant 0.000000e+00 : f32
    %393 = vector.broadcast %cst_162 : f32 to vector<16x64xf32>
    %394 = arith.maximumf %392, %393 : vector<16x64xf32>
    %395 = arith.truncf %394 : vector<16x64xf32> to vector<16x64xbf16>
    %c1_163 = arith.constant 1 : index
    %c0_164 = arith.constant 0 : index
    %c0_165 = arith.constant 0 : index
    %396 = vector.load %arg16[%c1_163, %c0_164, %c0_165] : memref<2x64x32xbf16, #tpu.memory_space<vmem>>, vector<1x64x32xbf16>
    %397 = vector.shape_cast %396 : vector<1x64x32xbf16> to vector<64x32xbf16>
    %cst_166 = arith.constant dense<0.000000e+00> : vector<16x32xf32>
    %398 = tpu.matmul %395, %397, %cst_166 {dimension_numbers = #tpu.dot_dimension_numbers<[1], [0], [0], [1], [0, 0, 1, 1], [], []>} : vector<16x64xbf16>, vector<64x32xbf16>, vector<16x32xf32> -> vector<16x32xf32>
    %c1_167 = arith.constant 1 : index
    %c0_168 = arith.constant 0 : index
    %c0_169 = arith.constant 0 : index
    %399 = vector.load %arg17[%c1_167, %c0_168, %c0_169] : memref<2x1x32xf32, #tpu.memory_space<vmem>>, vector<1x1x32xf32>
    %400 = vector.shape_cast %399 : vector<1x1x32xf32> to vector<1x32xf32>
    %401 = vector.broadcast %400 : vector<1x32xf32> to vector<16x32xf32>
    %402 = arith.addf %398, %401 : vector<16x32xf32>
    %403 = arith.addf %384, %402 : vector<16x32xf32>
    %cst_170 = arith.constant dense<0.000000e+00> : vector<16xf32>
    %404 = vector.multi_reduction <add>, %403, %cst_170 [1] : vector<16x32xf32> to vector<16xf32>
    %405 = vector.shape_cast %404 : vector<16xf32> to vector<16x1xf32>
    %cst_171 = arith.constant 3.200000e+01 : f32
    %406 = vector.broadcast %cst_171 : f32 to vector<16x1xf32>
    %407 = arith.divf %405, %406 : vector<16x1xf32>
    %408 = vector.broadcast %407 : vector<16x1xf32> to vector<16x32xf32>
    %409 = arith.subf %403, %408 : vector<16x32xf32>
    %410 = arith.mulf %409, %409 : vector<16x32xf32>
    %cst_172 = arith.constant dense<0.000000e+00> : vector<16xf32>
    %411 = vector.multi_reduction <add>, %410, %cst_172 [1] : vector<16x32xf32> to vector<16xf32>
    %412 = vector.shape_cast %411 : vector<16xf32> to vector<16x1xf32>
    %cst_173 = arith.constant 3.200000e+01 : f32
    %413 = vector.broadcast %cst_173 : f32 to vector<16x1xf32>
    %414 = arith.divf %412, %413 : vector<16x1xf32>
    %415 = vector.broadcast %407 : vector<16x1xf32> to vector<16x32xf32>
    %416 = arith.subf %403, %415 : vector<16x32xf32>
    %cst_174 = arith.constant 9.99999974E-6 : f32
    %417 = vector.broadcast %cst_174 : f32 to vector<16x1xf32>
    %418 = arith.addf %414, %417 : vector<16x1xf32>
    %419 = math.rsqrt %418 : vector<16x1xf32>
    %420 = vector.broadcast %419 : vector<16x1xf32> to vector<16x32xf32>
    %421 = arith.mulf %416, %420 : vector<16x32xf32>
    %c1_175 = arith.constant 1 : index
    %c0_176 = arith.constant 0 : index
    %c0_177 = arith.constant 0 : index
    %422 = vector.load %arg18[%c1_175, %c0_176, %c0_177] : memref<2x1x32xf32, #tpu.memory_space<vmem>>, vector<1x1x32xf32>
    %423 = vector.shape_cast %422 : vector<1x1x32xf32> to vector<1x32xf32>
    %424 = vector.broadcast %423 : vector<1x32xf32> to vector<16x32xf32>
    %425 = arith.mulf %421, %424 : vector<16x32xf32>
    %c1_178 = arith.constant 1 : index
    %c0_179 = arith.constant 0 : index
    %c0_180 = arith.constant 0 : index
    %426 = vector.load %arg19[%c1_178, %c0_179, %c0_180] : memref<2x1x32xf32, #tpu.memory_space<vmem>>, vector<1x1x32xf32>
    %427 = vector.shape_cast %426 : vector<1x1x32xf32> to vector<1x32xf32>
    %428 = vector.broadcast %427 : vector<1x32xf32> to vector<16x32xf32>
    %429 = arith.addf %425, %428 : vector<16x32xf32>
    %430 = vector.shape_cast %429 : vector<16x32xf32> to vector<2x8x32xf32>
    %431 = vector.extract_strided_slice %430 {offsets = [0, 7, 0], sizes = [2, 1, 32], strides = [1, 1, 1]} : vector<2x8x32xf32> to vector<2x1x32xf32>
    %432 = vector.shape_cast %431 : vector<2x1x32xf32> to vector<2x32xf32>
    %433 = arith.truncf %432 : vector<2x32xf32> to vector<2x32xbf16>
    %c0_181 = arith.constant 0 : index
    %c0_182 = arith.constant 0 : index
    %434 = vector.load %arg20[%c0_181, %c0_182] : memref<32x3xbf16, #tpu.memory_space<vmem>>, vector<32x3xbf16>
    %cst_183 = arith.constant dense<0.000000e+00> : vector<2x3xf32>
    %435 = tpu.matmul %433, %434, %cst_183 {dimension_numbers = #tpu.dot_dimension_numbers<[1], [0], [0], [1], [0, 0, 1, 1], [], []>} : vector<2x32xbf16>, vector<32x3xbf16>, vector<2x3xf32> -> vector<2x3xf32>
    %c0_184 = arith.constant 0 : index
    %c0_185 = arith.constant 0 : index
    %436 = vector.load %arg21[%c0_184, %c0_185] : memref<1x3xf32, #tpu.memory_space<vmem>>, vector<1x3xf32>
    %437 = vector.broadcast %436 : vector<1x3xf32> to vector<2x3xf32>
    %438 = arith.addf %435, %437 : vector<2x3xf32>
    %c0_186 = arith.constant 0 : index
    %c0_187 = arith.constant 0 : index
    %439 = vector.load %arg22[%c0_186, %c0_187] : memref<2x3xf32, #tpu.memory_space<vmem>>, vector<2x3xf32>
    tpu.vector_store %arg22[%c0_186, %c0_187], %438 {strides = array<i32>} : memref<2x3xf32, #tpu.memory_space<vmem>>, vector<2x3xf32>,
    return
  }
}

</mosaic_0001>

<llo_original>
// kernel: transformer_main_forward.1
$region0: #{transformer_main_forward.1}
  #allocation0 [shape = 'u32[]', space=smem, size = 0x4, offset = 0x4, fixed_abs, tag = 'smem constant byte address 0x4 - core index']
  #allocation1 [shape = 'u32[144,128]{1,0:T(1,128)}', space=vmem, size = 0x12000, scoped, tag = 'internal scratch']
  %s0 = inlined_call_operand.vmem [shape: f32[16,4], index: 0, kind: input, shape index: {}]
  %s1 = inlined_call_operand.vmem [shape: f32[16,32], index: 1, kind: input, shape index: {}]
  %s2 = inlined_call_operand.vmem [shape: bf16[4,32], index: 2, kind: input, shape index: {}]
  %s3 = inlined_call_operand.vmem [shape: f32[1,32], index: 3, kind: input, shape index: {}]
  %s4 = inlined_call_operand.vmem [shape: bf16[2,32,32], index: 4, kind: input, shape index: {}]
  %s5 = inlined_call_operand.vmem [shape: f32[2,1,32], index: 5, kind: input, shape index: {}]
  %s6 = inlined_call_operand.vmem [shape: bf16[2,32,32], index: 6, kind: input, shape index: {}]
  %s7 = inlined_call_operand.vmem [shape: f32[2,1,32], index: 7, kind: input, shape index: {}]
  %s8 = inlined_call_operand.vmem [shape: bf16[2,32,32], index: 8, kind: input, shape index: {}]
  %s9 = inlined_call_operand.vmem [shape: f32[2,1,32], index: 9, kind: input, shape index: {}]
  %s10 = inlined_call_operand.vmem [shape: bf16[2,32,32], index: 10, kind: input, shape index: {}]
  %s11 = inlined_call_operand.vmem [shape: f32[2,1,32], index: 11, kind: input, shape index: {}]
  %s12 = inlined_call_operand.vmem [shape: f32[2,1,32], index: 12, kind: input, shape index: {}]
  %s13 = inlined_call_operand.vmem [shape: f32[2,1,32], index: 13, kind: input, shape index: {}]
  %s14 = inlined_call_operand.vmem [shape: bf16[2,32,64], index: 14, kind: input, shape index: {}]
  %s15 = inlined_call_operand.vmem [shape: f32[2,1,64], index: 15, kind: input, shape index: {}]
  %s16 = inlined_call_operand.vmem [shape: bf16[2,64,32], index: 16, kind: input, shape index: {}]
  %s17 = inlined_call_operand.vmem [shape: f32[2,1,32], index: 17, kind: input, shape index: {}]
  %s18 = inlined_call_operand.vmem [shape: f32[2,1,32], index: 18, kind: input, shape index: {}]
  %s19 = inlined_call_operand.vmem [shape: f32[2,1,32], index: 19, kind: input, shape index: {}]
  %s20 = inlined_call_operand.vmem [shape: bf16[32,3], index: 20, kind: input, shape index: {}]
  %s21 = inlined_call_operand.vmem [shape: f32[1,3], index: 21, kind: input, shape index: {}]
  %s22 = inlined_call_operand.hbm [shape: f32[2,3], index: 22, kind: output, shape index: {}]
  %s23 = sld [smem:[#allocation0]]
  $region98: #{transformer_main_forward.1} parent=0
    _
  %s25 = ssub.s32 1, %s23
  %s26 = scalar_select 0, %s25, %s23
  $region1: #{transformer_main_forward.1} parent=0
    #allocation2 [shape = 'u8[1024]{0}', space=vmem, size = 0x400, scoped, tag = 'output window, operand 0, single buffered']
    #allocation3 [shape = 's32[1]{0}', space=sflag, size = 0x4, scoped, tag = 'scoped memory for transformer_main_forward.1']
    %27 = vsyncpa [#allocation3], 0
    // Predicated region
    $region2: #{transformer_main_forward.1} parent=1 // pred_check
      _
    $region3: #{transformer_main_forward.1} parent=1 // pred_check_branch
      %29 = sbr.rel (0) target = $region5
    $region4: #{transformer_main_forward.1} parent=1 // pred_region
      _
    $region5: #{transformer_main_forward.1} parent=1 // pred_fallthru
      _
    // Predicated region
    $region6: #{transformer_main_forward.1} parent=1 // pred_check
      _
    $region7: #{transformer_main_forward.1} parent=1 // pred_check_branch
      %31 = sbr.rel (0) target = $region9
    $region8: #{transformer_main_forward.1} parent=1 // pred_region
      _
    $region9: #{transformer_main_forward.1} parent=1 // pred_fallthru
      _
    // Predicated region
    $region10: #{transformer_main_forward.1} parent=1 // pred_check
      _
    $region11: #{transformer_main_forward.1} parent=1 // pred_check_branch
      %33 = sbr.rel (0) target = $region13
    $region12: #{transformer_main_forward.1} parent=1 // pred_region
      _
    $region13: #{transformer_main_forward.1} parent=1 // pred_fallthru
      _
    // Predicated region
    $region14: #{transformer_main_forward.1} parent=1 // pred_check
      _
    $region15: #{transformer_main_forward.1} parent=1 // pred_check_branch
      %35 = sbr.rel (0) target = $region17
    $region16: #{transformer_main_forward.1} parent=1 // pred_region
      _
    $region17: #{transformer_main_forward.1} parent=1 // pred_fallthru
      _
    // Predicated region
    $region18: #{transformer_main_forward.1} parent=1 // pred_check
      _
    $region19: #{transformer_main_forward.1} parent=1 // pred_check_branch
      %37 = sbr.rel (0) target = $region21
    $region20: #{transformer_main_forward.1} parent=1 // pred_region
      _
    $region21: #{transformer_main_forward.1} parent=1 // pred_fallthru
      _
    // Predicated region
    $region22: #{transformer_main_forward.1} parent=1 // pred_check
      _
    $region23: #{transformer_main_forward.1} parent=1 // pred_check_branch
      %39 = sbr.rel (0) target = $region25
    $region24: #{transformer_main_forward.1} parent=1 // pred_region
      _
    $region25: #{transformer_main_forward.1} parent=1 // pred_fallthru
      _
    // Predicated region
    $region26: #{transformer_main_forward.1} parent=1 // pred_check
      _
    $region27: #{transformer_main_forward.1} parent=1 // pred_check_branch
      %41 = sbr.rel (0) target = $region29
    $region28: #{transformer_main_forward.1} parent=1 // pred_region
      _
    $region29: #{transformer_main_forward.1} parent=1 // pred_fallthru
      _
    // Predicated region
    $region30: #{transformer_main_forward.1} parent=1 // pred_check
      _
    $region31: #{transformer_main_forward.1} parent=1 // pred_check_branch
      %43 = sbr.rel (0) target = $region33
    $region32: #{transformer_main_forward.1} parent=1 // pred_region
      _
    $region33: #{transformer_main_forward.1} parent=1 // pred_fallthru
      _
    // Predicated region
    $region34: #{transformer_main_forward.1} parent=1 // pred_check
      _
    $region35: #{transformer_main_forward.1} parent=1 // pred_check_branch
      %45 = sbr.rel (0) target = $region37
    $region36: #{transformer_main_forward.1} parent=1 // pred_region
      _
    $region37: #{transformer_main_forward.1} parent=1 // pred_fallthru
      _
    // Predicated region
    $region38: #{transformer_main_forward.1} parent=1 // pred_check
      _
    $region39: #{transformer_main_forward.1} parent=1 // pred_check_branch
      %47 = sbr.rel (0) target = $region41
    $region40: #{transformer_main_forward.1} parent=1 // pred_region
      _
    $region41: #{transformer_main_forward.1} parent=1 // pred_fallthru
      _
    // Predicated region
    $region42: #{transformer_main_forward.1} parent=1 // pred_check
      _
    $region43: #{transformer_main_forward.1} parent=1 // pred_check_branch
      %49 = sbr.rel (0) target = $region45
    $region44: #{transformer_main_forward.1} parent=1 // pred_region
      _
    $region45: #{transformer_main_forward.1} parent=1 // pred_fallthru
      _
    // Predicated region
    $region46: #{transformer_main_forward.1} parent=1 // pred_check
      _
    $region47: #{transformer_main_forward.1} parent=1 // pred_check_branch
      %51 = sbr.rel (0) target = $region49
    $region48: #{transformer_main_forward.1} parent=1 // pred_region
      _
    $region49: #{transformer_main_forward.1} parent=1 // pred_fallthru
      _
    // Predicated region
    $region50: #{transformer_main_forward.1} parent=1 // pred_check
      _
    $region51: #{transformer_main_forward.1} parent=1 // pred_check_branch
      %53 = sbr.rel (0) target = $region53
    $region52: #{transformer_main_forward.1} parent=1 // pred_region
      _
    $region53: #{transformer_main_forward.1} parent=1 // pred_fallthru
      _
    // Predicated region
    $region54: #{transformer_main_forward.1} parent=1 // pred_check
      _
    $region55: #{transformer_main_forward.1} parent=1 // pred_check_branch
      %55 = sbr.rel (0) target = $region57
    $region56: #{transformer_main_forward.1} parent=1 // pred_region
      _
    $region57: #{transformer_main_forward.1} parent=1 // pred_fallthru
      _
    // Predicated region
    $region58: #{transformer_main_forward.1} parent=1 // pred_check
      _
    $region59: #{transformer_main_forward.1} parent=1 // pred_check_branch
      %57 = sbr.rel (0) target = $region61
    $region60: #{transformer_main_forward.1} parent=1 // pred_region
      _
    $region61: #{transformer_main_forward.1} parent=1 // pred_fallthru
      _
    // Predicated region
    $region62: #{transformer_main_forward.1} parent=1 // pred_check
      _
    $region63: #{transformer_main_forward.1} parent=1 // pred_check_branch
      %59 = sbr.rel (0) target = $region65
    $region64: #{transformer_main_forward.1} parent=1 // pred_region
      _
    $region65: #{transformer_main_forward.1} parent=1 // pred_fallthru
      _
    // Predicated region
    $region66: #{transformer_main_forward.1} parent=1 // pred_check
      _
    $region67: #{transformer_main_forward.1} parent=1 // pred_check_branch
      %61 = sbr.rel (0) target = $region69
    $region68: #{transformer_main_forward.1} parent=1 // pred_region
      _
    $region69: #{transformer_main_forward.1} parent=1 // pred_fallthru
      _
    // Predicated region
    $region70: #{transformer_main_forward.1} parent=1 // pred_check
      _
    $region71: #{transformer_main_forward.1} parent=1 // pred_check_branch
      %63 = sbr.rel (0) target = $region73
    $region72: #{transformer_main_forward.1} parent=1 // pred_region
      _
    $region73: #{transformer_main_forward.1} parent=1 // pred_fallthru
      _
    // Predicated region
    $region74: #{transformer_main_forward.1} parent=1 // pred_check
      _
    $region75: #{transformer_main_forward.1} parent=1 // pred_check_branch
      %65 = sbr.rel (0) target = $region77
    $region76: #{transformer_main_forward.1} parent=1 // pred_region
      _
    $region77: #{transformer_main_forward.1} parent=1 // pred_fallthru
      _
    // Predicated region
    $region78: #{transformer_main_forward.1} parent=1 // pred_check
      _
    $region79: #{transformer_main_forward.1} parent=1 // pred_check_branch
      %67 = sbr.rel (0) target = $region81
    $region80: #{transformer_main_forward.1} parent=1 // pred_region
      _
    $region81: #{transformer_main_forward.1} parent=1 // pred_fallthru
      _
    // Predicated region
    $region82: #{transformer_main_forward.1} parent=1 // pred_check
      _
    $region83: #{transformer_main_forward.1} parent=1 // pred_check_branch
      %69 = sbr.rel (0) target = $region85
    $region84: #{transformer_main_forward.1} parent=1 // pred_region
      _
    $region85: #{transformer_main_forward.1} parent=1 // pred_fallthru
      _
    // Predicated region
    $region86: #{transformer_main_forward.1} parent=1 // pred_check
      _
    $region87: #{transformer_main_forward.1} parent=1 // pred_check_branch
      %71 = sbr.rel (0) target = $region89
    $region88: #{transformer_main_forward.1} parent=1 // pred_region
      _
    $region89: #{transformer_main_forward.1} parent=1 // pred_fallthru
      _
    %v73 = vlaneseq
    %v74 = vand.u32 %v73, 127
    %vm75 = vcmp.ge.s32.totalorder %v74, 0
    %vm76 = vcmp.lt.s32.totalorder %v74, 8
    %vm77 = vmand %vm75, %vm76
    %v78 = vsel %vm77, 1, 0
    %v79 = vcvt.s32.f32 %v78
    %vm80 = vcmp.ge.s32.totalorder %v74, 8
    %vm81 = vcmp.lt.s32.totalorder %v74, 16
    %vm82 = vmand %vm80, %vm81
    %v83 = vsel %vm82, 1, 0
    %v84 = vcvt.s32.f32 %v83
    %vm85 = vcmp.ge.s32.totalorder %v74, 16
    %vm86 = vcmp.lt.s32.totalorder %v74, 24
    %vm87 = vmand %vm85, %vm86
    %v88 = vsel %vm87, 1, 0
    %v89 = vcvt.s32.f32 %v88
    %vm90 = vcmp.ge.s32.totalorder %v74, 24
    %vm91 = vcmp.lt.s32.totalorder %v74, 32
    %vm92 = vmand %vm90, %vm91
    %v93 = vsel %vm92, 1, 0
    %v94 = vcvt.s32.f32 %v93
    %v95 = vld [vmem:[%s0] sm:$0xff]
    %v96 = vld [vmem:[%s0 + $0x8] sm:$0xff]
    %v97 = vpack.c.bf16 %v96, %v95
    %v98 = vld [vmem:[%s2] sm:$0x3]
    %v99 = vld [vmem:[%s3] sm:$0x1]
    %v101 = vlaneseq
    %v102 = vshrl.u32 %v101, 7
    %v103 = vsub.s32 0, %v102
    %v104 = vrot.slane %v99, %v103
    %vm106 = vcmask 31744
    %v108 = vsel %vm106, %v97, 0
    %vm110 = vcmask 1041408
    %v112 = vsel %vm110, %v98, 0
    %114 = vmatprep.subr.bf16.mxu0 0
    %115 = vmatpush1.bf16.msra.mxu0 0
    %116 = vmatprep.subr.bf16.mxu0 0
    %117 = vmatpush1.bf16.msra.mxu0 0
    %118 = vmatprep.subr.bf16.mxu0 0
    %119 = vmatpush1.bf16.msra.mxu0 0
    %120 = vmatprep.subr.bf16.mxu0 0
    %121 = vmatpush1.bf16.msra.mxu0 0
    %122 = vmatprep.subr.bf16.mxu0 0
    %123 = vmatpush1.bf16.msra.mxu0 0
    %124 = vmatprep.subr.bf16.mxu0 0
    %125 = vmatpush1.bf16.msra.mxu0 0
    %126 = vmatprep.subr.bf16.mxu0 0
    %127 = vmatpush1.bf16.msra.mxu0 0
    %128 = vmatprep.subr.bf16.mxu0 0
    %129 = vmatpush1.bf16.msra.mxu0 %v112
    %130 = vmatprep.subr.bf16.mxu0 0
    %131 = vmatpush2.bf16.msra.mxu0 0
    %132 = vmatprep.subr.bf16.mxu0 0
    %133 = vmatpush2.bf16.msra.mxu0 0
    %134 = vmatprep.subr.bf16.mxu0 0
    %135 = vmatpush2.bf16.msra.mxu0 0
    %136 = vmatprep.subr.bf16.mxu0 0
    %137 = vmatpush2.bf16.msra.mxu0 0
    %138 = vmatprep.subr.bf16.mxu0 0
    %139 = vmatpush2.bf16.msra.mxu0 0
    %140 = vmatprep.subr.bf16.mxu0 0
    %141 = vmatpush2.bf16.msra.mxu0 0
    %142 = vmatprep.subr.bf16.mxu0 0
    %143 = vmatpush2.bf16.msra.mxu0 0
    %144 = vmatprep.subr.bf16.mxu0 0
    %145 = vmatpush2.bf16.msra.mxu0 0
    %146 = vmatprep.mubr.bf16.mxu0 0
    %147 = vmatmul.mubr.bf16.gmra.mxu0 %v108
    %v148 = vpop.f32.mrf.mxu0
    %v149 = vadd.f32 %v104, %v148
    %v150 = vpop.f32.mrf.mxu0
    %v151 = vpop.f32.mrf.mxu0
    %v152 = vadd.f32 %v104, %v151
    %v153 = vpop.f32.mrf.mxu0
    %154 = vdwg.mxu0
    %v155 = vld [vmem:[%s1] sm:$0xff]
    %v156 = vld [vmem:[%s1 + $0x8] sm:$0xff]
    %v157 = vadd.f32 %v149, %v155
    %v158 = vadd.f32 %v152, %v156
    %v159 = vpack.c.bf16 %v158, %v157
    %v160 = vld [vmem:[%s4] sm:$0xf]
    %v161 = vld [vmem:[%s4 + $0x4] sm:$0xf]
    %v162 = vld [vmem:[%s4 + $0x8] sm:$0xf]
    %v163 = vld [vmem:[%s4 + $0xc] sm:$0xf]
    %v164 = vld [vmem:[%s5] sm:$0x1]
    %v166 = vlaneseq
    %v167 = vshrl.u32 %v166, 7
    %v168 = vsub.s32 0, %v167
    %v169 = vrot.slane %v164, %v168
    %v175 = vunpack.c.l.b16 %v160
    %v176 = vunpack.c.l.b16 %v161
    %v177 = vunpack.c.l.b16 %v162
    %v178 = vunpack.c.l.b16 %v163
    %v179 = vpack.c.b16 %v176, %v175
    %v180 = vpack.c.b16 %v178, %v177
    %vm183 = vcmask 261120
    %v185 = vsel %vm183, %v159, 0
    %187 = vmatprep.subr.bf16.mxu0 0
    %188 = vmatpush1.bf16.msra.mxu0 0
    %189 = vmatprep.subr.bf16.mxu0 0
    %190 = vmatpush1.bf16.msra.mxu0 0
    %191 = vmatprep.subr.bf16.mxu0 0
    %192 = vmatpush1.bf16.msra.mxu0 0
    %193 = vmatprep.subr.bf16.mxu0 0
    %194 = vmatpush1.bf16.msra.mxu0 0
    %195 = vmatprep.subr.bf16.mxu0 0
    %196 = vmatpush1.bf16.msra.mxu0 0
    %197 = vmatprep.subr.bf16.mxu0 0
    %198 = vmatpush1.bf16.msra.mxu0 0
    %199 = vmatprep.subr.bf16.mxu0 0
    %200 = vmatpush1.bf16.msra.mxu0 %v180
    %201 = vmatprep.subr.bf16.mxu0 0
    %202 = vmatpush1.bf16.msra.mxu0 %v179
    %203 = vmatprep.subr.bf16.mxu0 0
    %204 = vmatpush2.bf16.msra.mxu0 0
    %205 = vmatprep.subr.bf16.mxu0 0
    %206 = vmatpush2.bf16.msra.mxu0 0
    %207 = vmatprep.subr.bf16.mxu0 0
    %208 = vmatpush2.bf16.msra.mxu0 0
    %209 = vmatprep.subr.bf16.mxu0 0
    %210 = vmatpush2.bf16.msra.mxu0 0
    %211 = vmatprep.subr.bf16.mxu0 0
    %212 = vmatpush2.bf16.msra.mxu0 0
    %213 = vmatprep.subr.bf16.mxu0 0
    %214 = vmatpush2.bf16.msra.mxu0 0
    %215 = vmatprep.subr.bf16.mxu0 0
    %216 = vmatpush2.bf16.msra.mxu0 0
    %217 = vmatprep.subr.bf16.mxu0 0
    %218 = vmatpush2.bf16.msra.mxu0 0
    %219 = vmatprep.mubr.bf16.mxu0 0
    %220 = vmatmul.mubr.bf16.gmra.mxu0 %v185
    %v221 = vpop.f32.mrf.mxu0
    %v222 = vadd.f32 %v169, %v221
    %v223 = vpop.f32.mrf.mxu0
    %v224 = vpop.f32.mrf.mxu0
    %v225 = vadd.f32 %v169, %v224
    %v226 = vpop.f32.mrf.mxu0
    %227 = vdwg.mxu0
    %v228 = vld [vmem:[%s6] sm:$0xf]
    %v229 = vld [vmem:[%s6 + $0x4] sm:$0xf]
    %v230 = vld [vmem:[%s6 + $0x8] sm:$0xf]
    %v231 = vld [vmem:[%s6 + $0xc] sm:$0xf]
    %v232 = vld [vmem:[%s7] sm:$0x1]
    %v234 = vlaneseq
    %v235 = vshrl.u32 %v234, 7
    %v236 = vsub.s32 0, %v235
    %v237 = vrot.slane %v232, %v236
    %v243 = vunpack.c.l.b16 %v228
    %v244 = vunpack.c.l.b16 %v229
    %v245 = vunpack.c.l.b16 %v230
    %v246 = vunpack.c.l.b16 %v231
    %v247 = vpack.c.b16 %v244, %v243
    %v248 = vpack.c.b16 %v246, %v245
    %251 = vmatprep.subr.bf16.mxu0 0
    %252 = vmatpush1.bf16.msra.mxu0 0
    %253 = vmatprep.subr.bf16.mxu0 0
    %254 = vmatpush1.bf16.msra.mxu0 0
    %255 = vmatprep.subr.bf16.mxu0 0
    %256 = vmatpush1.bf16.msra.mxu0 0
    %257 = vmatprep.subr.bf16.mxu0 0
    %258 = vmatpush1.bf16.msra.mxu0 0
    %259 = vmatprep.subr.bf16.mxu0 0
    %260 = vmatpush1.bf16.msra.mxu0 0
    %261 = vmatprep.subr.bf16.mxu0 0
    %262 = vmatpush1.bf16.msra.mxu0 0
    %263 = vmatprep.subr.bf16.mxu0 0
    %264 = vmatpush1.bf16.msra.mxu0 %v248
    %265 = vmatprep.subr.bf16.mxu0 0
    %266 = vmatpush1.bf16.msra.mxu0 %v247
    %267 = vmatprep.subr.bf16.mxu0 0
    %268 = vmatpush2.bf16.msra.mxu0 0
    %269 = vmatprep.subr.bf16.mxu0 0
    %270 = vmatpush2.bf16.msra.mxu0 0
    %271 = vmatprep.subr.bf16.mxu0 0
    %272 = vmatpush2.bf16.msra.mxu0 0
    %273 = vmatprep.subr.bf16.mxu0 0
    %274 = vmatpush2.bf16.msra.mxu0 0
    %275 = vmatprep.subr.bf16.mxu0 0
    %276 = vmatpush2.bf16.msra.mxu0 0
    %277 = vmatprep.subr.bf16.mxu0 0
    %278 = vmatpush2.bf16.msra.mxu0 0
    %279 = vmatprep.subr.bf16.mxu0 0
    %280 = vmatpush2.bf16.msra.mxu0 0
    %281 = vmatprep.subr.bf16.mxu0 0
    %282 = vmatpush2.bf16.msra.mxu0 0
    %283 = vmatprep.mubr.bf16.mxu0 0
    %284 = vmatmul.mubr.bf16.gmra.mxu0 %v185
    %v285 = vpop.f32.mrf.mxu0
    %v286 = vadd.f32 %v237, %v285
    %v287 = vpop.f32.mrf.mxu0
    %v288 = vpop.f32.mrf.mxu0
    %v289 = vadd.f32 %v237, %v288
    %v290 = vpop.f32.mrf.mxu0
    %291 = vdwg.mxu0
    %v292 = vld [vmem:[%s8] sm:$0xf]
    %v293 = vld [vmem:[%s8 + $0x4] sm:$0xf]
    %v294 = vld [vmem:[%s8 + $0x8] sm:$0xf]
    %v295 = vld [vmem:[%s8 + $0xc] sm:$0xf]
    %v296 = vld [vmem:[%s9] sm:$0x1]
    %v298 = vlaneseq
    %v299 = vshrl.u32 %v298, 7
    %v300 = vsub.s32 0, %v299
    %v301 = vrot.slane %v296, %v300
    %v307 = vunpack.c.l.b16 %v292
    %v308 = vunpack.c.l.b16 %v293
    %v309 = vunpack.c.l.b16 %v294
    %v310 = vunpack.c.l.b16 %v295
    %v311 = vpack.c.b16 %v308, %v307
    %v312 = vpack.c.b16 %v310, %v309
    %315 = vmatprep.subr.bf16.mxu0 0
    %316 = vmatpush1.bf16.msra.mxu0 0
    %317 = vmatprep.subr.bf16.mxu0 0
    %318 = vmatpush1.bf16.msra.mxu0 0
    %319 = vmatprep.subr.bf16.mxu0 0
    %320 = vmatpush1.bf16.msra.mxu0 0
    %321 = vmatprep.subr.bf16.mxu0 0
    %322 = vmatpush1.bf16.msra.mxu0 0
    %323 = vmatprep.subr.bf16.mxu0 0
    %324 = vmatpush1.bf16.msra.mxu0 0
    %325 = vmatprep.subr.bf16.mxu0 0
    %326 = vmatpush1.bf16.msra.mxu0 0
    %327 = vmatprep.subr.bf16.mxu0 0
    %328 = vmatpush1.bf16.msra.mxu0 %v312
    %329 = vmatprep.subr.bf16.mxu0 0
    %330 = vmatpush1.bf16.msra.mxu0 %v311
    %331 = vmatprep.subr.bf16.mxu0 0
    %332 = vmatpush2.bf16.msra.mxu0 0
    %333 = vmatprep.subr.bf16.mxu0 0
    %334 = vmatpush2.bf16.msra.mxu0 0
    %335 = vmatprep.subr.bf16.mxu0 0
    %336 = vmatpush2.bf16.msra.mxu0 0
    %337 = vmatprep.subr.bf16.mxu0 0
    %338 = vmatpush2.bf16.msra.mxu0 0
    %339 = vmatprep.subr.bf16.mxu0 0
    %340 = vmatpush2.bf16.msra.mxu0 0
    %341 = vmatprep.subr.bf16.mxu0 0
    %342 = vmatpush2.bf16.msra.mxu0 0
    %343 = vmatprep.subr.bf16.mxu0 0
    %344 = vmatpush2.bf16.msra.mxu0 0
    %345 = vmatprep.subr.bf16.mxu0 0
    %346 = vmatpush2.bf16.msra.mxu0 0
    %347 = vmatprep.mubr.bf16.mxu0 0
    %348 = vmatmul.mubr.bf16.gmra.mxu0 %v185
    %v349 = vpop.f32.mrf.mxu0
    %v350 = vadd.f32 %v301, %v349
    %v351 = vpop.f32.mrf.mxu0
    %v352 = vpop.f32.mrf.mxu0
    %v353 = vadd.f32 %v301, %v352
    %v354 = vpop.f32.mrf.mxu0
    %355 = vdwg.mxu0
    %v356 = vpack.c.bf16 %v286, %v286
    %v357 = vpack.c.bf16 %v289, %v289
    %v358 = vmul.f32 %v222, %v79
    %v359 = vmul.f32 %v225, %v79
    %v360 = vpack.c.bf16 %v358, %v358
    %v361 = vpack.c.bf16 %v359, %v359
    %v363 = vsel %vm183, %v360, 0
    %v366 = vsel %vm183, %v356, 0
    %368 = vmatprep.subr.bf16.mxu0 0
    %369 = vmatpush1.bf16.xpose.msra.mxu0 0
    %370 = vmatprep.subr.bf16.mxu0 0
    %371 = vmatpush1.bf16.xpose.msra.mxu0 0
    %372 = vmatprep.subr.bf16.mxu0 0
    %373 = vmatpush1.bf16.xpose.msra.mxu0 0
    %374 = vmatprep.subr.bf16.mxu0 0
    %375 = vmatpush1.bf16.xpose.msra.mxu0 0
    %376 = vmatprep.subr.bf16.mxu0 0
    %377 = vmatpush1.bf16.xpose.msra.mxu0 0
    %378 = vmatprep.subr.bf16.mxu0 0
    %379 = vmatpush1.bf16.xpose.msra.mxu0 0
    %380 = vmatprep.subr.bf16.mxu0 0
    %381 = vmatpush1.bf16.xpose.msra.mxu0 0
    %382 = vmatprep.subr.bf16.mxu0 0
    %383 = vmatpush1.bf16.xpose.msra.mxu0 %v366
    %384 = vmatprep.subr.bf16.mxu0 0
    %385 = vmatpush2.bf16.xpose.msra.mxu0 0
    %386 = vmatprep.subr.bf16.mxu0 0
    %387 = vmatpush2.bf16.xpose.msra.mxu0 0
    %388 = vmatprep.subr.bf16.mxu0 0
    %389 = vmatpush2.bf16.xpose.msra.mxu0 0
    %390 = vmatprep.subr.bf16.mxu0 0
    %391 = vmatpush2.bf16.xpose.msra.mxu0 0
    %392 = vmatprep.subr.bf16.mxu0 0
    %393 = vmatpush2.bf16.xpose.msra.mxu0 0
    %394 = vmatprep.subr.bf16.mxu0 0
    %395 = vmatpush2.bf16.xpose.msra.mxu0 0
    %396 = vmatprep.subr.bf16.mxu0 0
    %397 = vmatpush2.bf16.xpose.msra.mxu0 0
    %398 = vmatprep.subr.bf16.mxu0 0
    %399 = vmatpush2.bf16.xpose.msra.mxu0 0
    %400 = vmatprep.mubr.bf16.mxu0 0
    %401 = vmatmul.mubr.bf16.gmra.mxu0 %v363
    %v402 = vpop.f32.mrf.mxu0
    %v403 = vadd.f32 0.0, %v402
    %v404 = vpop.f32.mrf.mxu0
    %v405 = vpop.f32.mrf.mxu0
    %v406 = vpop.f32.mrf.mxu0
    %407 = vdwg.mxu0
    %v409 = vsel %vm183, %v361, 0
    %v412 = vsel %vm183, %v357, 0
    %414 = vmatprep.subr.bf16.mxu0 0
    %415 = vmatpush1.bf16.xpose.msra.mxu0 0
    %416 = vmatprep.subr.bf16.mxu0 0
    %417 = vmatpush1.bf16.xpose.msra.mxu0 0
    %418 = vmatprep.subr.bf16.mxu0 0
    %419 = vmatpush1.bf16.xpose.msra.mxu0 0
    %420 = vmatprep.subr.bf16.mxu0 0
    %421 = vmatpush1.bf16.xpose.msra.mxu0 0
    %422 = vmatprep.subr.bf16.mxu0 0
    %423 = vmatpush1.bf16.xpose.msra.mxu0 0
    %424 = vmatprep.subr.bf16.mxu0 0
    %425 = vmatpush1.bf16.xpose.msra.mxu0 0
    %426 = vmatprep.subr.bf16.mxu0 0
    %427 = vmatpush1.bf16.xpose.msra.mxu0 0
    %428 = vmatprep.subr.bf16.mxu0 0
    %429 = vmatpush1.bf16.xpose.msra.mxu0 %v412
    %430 = vmatprep.subr.bf16.mxu0 0
    %431 = vmatpush2.bf16.xpose.msra.mxu0 0
    %432 = vmatprep.subr.bf16.mxu0 0
    %433 = vmatpush2.bf16.xpose.msra.mxu0 0
    %434 = vmatprep.subr.bf16.mxu0 0
    %435 = vmatpush2.bf16.xpose.msra.mxu0 0
    %436 = vmatprep.subr.bf16.mxu0 0
    %437 = vmatpush2.bf16.xpose.msra.mxu0 0
    %438 = vmatprep.subr.bf16.mxu0 0
    %439 = vmatpush2.bf16.xpose.msra.mxu0 0
    %440 = vmatprep.subr.bf16.mxu0 0
    %441 = vmatpush2.bf16.xpose.msra.mxu0 0
    %442 = vmatprep.subr.bf16.mxu0 0
    %443 = vmatpush2.bf16.xpose.msra.mxu0 0
    %444 = vmatprep.subr.bf16.mxu0 0
    %445 = vmatpush2.bf16.xpose.msra.mxu0 0
    %446 = vmatprep.mubr.bf16.mxu0 0
    %447 = vmatmul.mubr.bf16.gmra.mxu0 %v409
    %v448 = vpop.f32.mrf.mxu0
    %v449 = vadd.f32 0.0, %v448
    %v450 = vpop.f32.mrf.mxu0
    %v451 = vpop.f32.mrf.mxu0
    %v452 = vpop.f32.mrf.mxu0
    %453 = vdwg.mxu0
    %v454 = vmul.f32 %v403, 0.35355338
    %v455 = vmul.f32 %v449, 0.35355338
    %vm456 = vcmask 64512
    %v457 = vsel %vm456, %v454, -inf
    %458 = vmax.xlane.f32.xlu0 %v457
    %v459 = vpop.xlane.xlu0 %458
    %v460 = vsel %vm456, %v455, -inf
    %461 = vmax.xlane.f32.xlu0 %v460
    %v462 = vpop.xlane.xlu0 %461
    %v463 = vsub.f32 %v454, %v459
    %v464 = vsub.f32 %v455, %v462
    %v465 = vmul.f32 %v463, 1.442695
    %v466 = vpow.pop %v465
    %v467 = vmul.f32 %v464, 1.442695
    %v468 = vpow.pop %v467
    %v469 = vsel %vm456, %v466, 0.0
    %470 = vadd.xlane.f32.xlu0 %v469
    %v471 = vpop.xlane.xlu0 %470
    %v472 = vsel %vm456, %v468, 0.0
    %473 = vadd.xlane.f32.xlu0 %v472
    %v474 = vpop.xlane.xlu0 %473
    %v475 = vrcp.pop %v471
    %v476 = vrcp.pop %v474
    %v477 = vmul.f32 %v466, %v475
    %v478 = vmul.f32 %v468, %v476
    %v479 = vmul.f32 %v350, %v79
    %v480 = vmul.f32 %v353, %v79
    %v481 = vpack.c.bf16 %v479, %v479
    %v482 = vpack.c.bf16 %v480, %v480
    %v483 = vpack.c.bf16 %v477, %v477
    %v484 = vpack.c.bf16 %v478, %v478
    %v485 = vmul.f32 %v222, %v84
    %v486 = vmul.f32 %v225, %v84
    %v487 = vpack.c.bf16 %v485, %v485
    %v488 = vpack.c.bf16 %v486, %v486
    %v490 = vsel %vm183, %v487, 0
    %492 = vmatprep.subr.bf16.mxu0 0
    %493 = vmatpush1.bf16.xpose.msra.mxu0 0
    %494 = vmatprep.subr.bf16.mxu0 0
    %495 = vmatpush1.bf16.xpose.msra.mxu0 0
    %496 = vmatprep.subr.bf16.mxu0 0
    %497 = vmatpush1.bf16.xpose.msra.mxu0 0
    %498 = vmatprep.subr.bf16.mxu0 0
    %499 = vmatpush1.bf16.xpose.msra.mxu0 0
    %500 = vmatprep.subr.bf16.mxu0 0
    %501 = vmatpush1.bf16.xpose.msra.mxu0 0
    %502 = vmatprep.subr.bf16.mxu0 0
    %503 = vmatpush1.bf16.xpose.msra.mxu0 0
    %504 = vmatprep.subr.bf16.mxu0 0
    %505 = vmatpush1.bf16.xpose.msra.mxu0 0
    %506 = vmatprep.subr.bf16.mxu0 0
    %507 = vmatpush1.bf16.xpose.msra.mxu0 %v366
    %508 = vmatprep.subr.bf16.mxu0 0
    %509 = vmatpush2.bf16.xpose.msra.mxu0 0
    %510 = vmatprep.subr.bf16.mxu0 0
    %511 = vmatpush2.bf16.xpose.msra.mxu0 0
    %512 = vmatprep.subr.bf16.mxu0 0
    %513 = vmatpush2.bf16.xpose.msra.mxu0 0
    %514 = vmatprep.subr.bf16.mxu0 0
    %515 = vmatpush2.bf16.xpose.msra.mxu0 0
    %516 = vmatprep.subr.bf16.mxu0 0
    %517 = vmatpush2.bf16.xpose.msra.mxu0 0
    %518 = vmatprep.subr.bf16.mxu0 0
    %519 = vmatpush2.bf16.xpose.msra.mxu0 0
    %520 = vmatprep.subr.bf16.mxu0 0
    %521 = vmatpush2.bf16.xpose.msra.mxu0 0
    %522 = vmatprep.subr.bf16.mxu0 0
    %523 = vmatpush2.bf16.xpose.msra.mxu0 0
    %524 = vmatprep.mubr.bf16.mxu0 0
    %525 = vmatmul.mubr.bf16.gmra.mxu0 %v490
    %v526 = vpop.f32.mrf.mxu0
    %v527 = vadd.f32 0.0, %v526
    %v528 = vpop.f32.mrf.mxu0
    %v529 = vpop.f32.mrf.mxu0
    %v530 = vpop.f32.mrf.mxu0
    %531 = vdwg.mxu0
    %v533 = vsel %vm183, %v488, 0
    %535 = vmatprep.subr.bf16.mxu0 0
    %536 = vmatpush1.bf16.xpose.msra.mxu0 0
    %537 = vmatprep.subr.bf16.mxu0 0
    %538 = vmatpush1.bf16.xpose.msra.mxu0 0
    %539 = vmatprep.subr.bf16.mxu0 0
    %540 = vmatpush1.bf16.xpose.msra.mxu0 0
    %541 = vmatprep.subr.bf16.mxu0 0
    %542 = vmatpush1.bf16.xpose.msra.mxu0 0
    %543 = vmatprep.subr.bf16.mxu0 0
    %544 = vmatpush1.bf16.xpose.msra.mxu0 0
    %545 = vmatprep.subr.bf16.mxu0 0
    %546 = vmatpush1.bf16.xpose.msra.mxu0 0
    %547 = vmatprep.subr.bf16.mxu0 0
    %548 = vmatpush1.bf16.xpose.msra.mxu0 0
    %549 = vmatprep.subr.bf16.mxu0 0
    %550 = vmatpush1.bf16.xpose.msra.mxu0 %v412
    %551 = vmatprep.subr.bf16.mxu0 0
    %552 = vmatpush2.bf16.xpose.msra.mxu0 0
    %553 = vmatprep.subr.bf16.mxu0 0
    %554 = vmatpush2.bf16.xpose.msra.mxu0 0
    %555 = vmatprep.subr.bf16.mxu0 0
    %556 = vmatpush2.bf16.xpose.msra.mxu0 0
    %557 = vmatprep.subr.bf16.mxu0 0
    %558 = vmatpush2.bf16.xpose.msra.mxu0 0
    %559 = vmatprep.subr.bf16.mxu0 0
    %560 = vmatpush2.bf16.xpose.msra.mxu0 0
    %561 = vmatprep.subr.bf16.mxu0 0
    %562 = vmatpush2.bf16.xpose.msra.mxu0 0
    %563 = vmatprep.subr.bf16.mxu0 0
    %564 = vmatpush2.bf16.xpose.msra.mxu0 0
    %565 = vmatprep.subr.bf16.mxu0 0
    %566 = vmatpush2.bf16.xpose.msra.mxu0 0
    %567 = vmatprep.mubr.bf16.mxu0 0
    %568 = vmatmul.mubr.bf16.gmra.mxu0 %v533
    %v569 = vpop.f32.mrf.mxu0
    %v570 = vadd.f32 0.0, %v569
    %v571 = vpop.f32.mrf.mxu0
    %v572 = vpop.f32.mrf.mxu0
    %v573 = vpop.f32.mrf.mxu0
    %574 = vdwg.mxu0
    %v575 = vmul.f32 %v527, 0.35355338
    %v576 = vmul.f32 %v570, 0.35355338
    %v577 = vsel %vm456, %v575, -inf
    %578 = vmax.xlane.f32.xlu0 %v577
    %v579 = vpop.xlane.xlu0 %578
    %v580 = vsel %vm456, %v576, -inf
    %581 = vmax.xlane.f32.xlu0 %v580
    %v582 = vpop.xlane.xlu0 %581
    %v583 = vsub.f32 %v575, %v579
    %v584 = vsub.f32 %v576, %v582
    %v585 = vmul.f32 %v583, 1.442695
    %v586 = vpow.pop %v585
    %v587 = vmul.f32 %v584, 1.442695
    %v588 = vpow.pop %v587
    %v589 = vsel %vm456, %v586, 0.0
    %590 = vadd.xlane.f32.xlu0 %v589
    %v591 = vpop.xlane.xlu0 %590
    %v592 = vsel %vm456, %v588, 0.0
    %593 = vadd.xlane.f32.xlu0 %v592
    %v594 = vpop.xlane.xlu0 %593
    %v595 = vrcp.pop %v591
    %v596 = vrcp.pop %v594
    %v597 = vmul.f32 %v586, %v595
    %v598 = vmul.f32 %v588, %v596
    %v599 = vmul.f32 %v350, %v84
    %v600 = vmul.f32 %v353, %v84
    %v601 = vpack.c.bf16 %v599, %v599
    %v602 = vpack.c.bf16 %v600, %v600
    %v603 = vpack.c.bf16 %v597, %v597
    %v604 = vpack.c.bf16 %v598, %v598
    %v606 = vsel %vm456, %v603, 0
    %vm608 = vcmask 1043456
    %v610 = vsel %vm608, %v601, 0
    %612 = vmatprep.subr.bf16.mxu0 0
    %613 = vmatpush1.bf16.msra.mxu0 0
    %614 = vmatprep.subr.bf16.mxu0 0
    %615 = vmatpush1.bf16.msra.mxu0 0
    %616 = vmatprep.subr.bf16.mxu0 0
    %617 = vmatpush1.bf16.msra.mxu0 0
    %618 = vmatprep.subr.bf16.mxu0 0
    %619 = vmatpush1.bf16.msra.mxu0 0
    %620 = vmatprep.subr.bf16.mxu0 0
    %621 = vmatpush1.bf16.msra.mxu0 0
    %622 = vmatprep.subr.bf16.mxu0 0
    %623 = vmatpush1.bf16.msra.mxu0 0
    %624 = vmatprep.subr.bf16.mxu0 0
    %625 = vmatpush1.bf16.msra.mxu0 0
    %626 = vmatprep.subr.bf16.mxu0 0
    %627 = vmatpush1.bf16.msra.mxu0 %v610
    %628 = vmatprep.subr.bf16.mxu0 0
    %629 = vmatpush2.bf16.msra.mxu0 0
    %630 = vmatprep.subr.bf16.mxu0 0
    %631 = vmatpush2.bf16.msra.mxu0 0
    %632 = vmatprep.subr.bf16.mxu0 0
    %633 = vmatpush2.bf16.msra.mxu0 0
    %634 = vmatprep.subr.bf16.mxu0 0
    %635 = vmatpush2.bf16.msra.mxu0 0
    %636 = vmatprep.subr.bf16.mxu0 0
    %637 = vmatpush2.bf16.msra.mxu0 0
    %638 = vmatprep.subr.bf16.mxu0 0
    %639 = vmatpush2.bf16.msra.mxu0 0
    %640 = vmatprep.subr.bf16.mxu0 0
    %641 = vmatpush2.bf16.msra.mxu0 0
    %642 = vmatprep.subr.bf16.mxu0 0
    %643 = vmatpush2.bf16.msra.mxu0 0
    %644 = vmatprep.mubr.bf16.mxu0 0
    %645 = vmatmul.mubr.bf16.gmra.mxu0 %v606
    %v646 = vpop.f32.mrf.mxu0
    %v647 = vadd.f32 0.0, %v646
    %v648 = vpop.f32.mrf.mxu0
    %v649 = vpop.f32.mrf.mxu0
    %v650 = vpop.f32.mrf.mxu0
    %651 = vdwg.mxu0
    %v653 = vsel %vm456, %v604, 0
    %v656 = vsel %vm608, %v602, 0
    %658 = vmatprep.subr.bf16.mxu0 0
    %659 = vmatpush1.bf16.msra.mxu0 0
    %660 = vmatprep.subr.bf16.mxu0 0
    %661 = vmatpush1.bf16.msra.mxu0 0
    %662 = vmatprep.subr.bf16.mxu0 0
    %663 = vmatpush1.bf16.msra.mxu0 0
    %664 = vmatprep.subr.bf16.mxu0 0
    %665 = vmatpush1.bf16.msra.mxu0 0
    %666 = vmatprep.subr.bf16.mxu0 0
    %667 = vmatpush1.bf16.msra.mxu0 0
    %668 = vmatprep.subr.bf16.mxu0 0
    %669 = vmatpush1.bf16.msra.mxu0 0
    %670 = vmatprep.subr.bf16.mxu0 0
    %671 = vmatpush1.bf16.msra.mxu0 0
    %672 = vmatprep.subr.bf16.mxu0 0
    %673 = vmatpush1.bf16.msra.mxu0 %v656
    %674 = vmatprep.subr.bf16.mxu0 0
    %675 = vmatpush2.bf16.msra.mxu0 0
    %676 = vmatprep.subr.bf16.mxu0 0
    %677 = vmatpush2.bf16.msra.mxu0 0
    %678 = vmatprep.subr.bf16.mxu0 0
    %679 = vmatpush2.bf16.msra.mxu0 0
    %680 = vmatprep.subr.bf16.mxu0 0
    %681 = vmatpush2.bf16.msra.mxu0 0
    %682 = vmatprep.subr.bf16.mxu0 0
    %683 = vmatpush2.bf16.msra.mxu0 0
    %684 = vmatprep.subr.bf16.mxu0 0
    %685 = vmatpush2.bf16.msra.mxu0 0
    %686 = vmatprep.subr.bf16.mxu0 0
    %687 = vmatpush2.bf16.msra.mxu0 0
    %688 = vmatprep.subr.bf16.mxu0 0
    %689 = vmatpush2.bf16.msra.mxu0 0
    %690 = vmatprep.mubr.bf16.mxu0 0
    %691 = vmatmul.mubr.bf16.gmra.mxu0 %v653
    %v692 = vpop.f32.mrf.mxu0
    %v693 = vadd.f32 0.0, %v692
    %v694 = vpop.f32.mrf.mxu0
    %v695 = vpop.f32.mrf.mxu0
    %v696 = vpop.f32.mrf.mxu0
    %697 = vdwg.mxu0
    %v699 = vsel %vm456, %v483, 0
    %v702 = vsel %vm608, %v481, 0
    %704 = vmatprep.subr.bf16.mxu0 0
    %705 = vmatpush1.bf16.msra.mxu0 0
    %706 = vmatprep.subr.bf16.mxu0 0
    %707 = vmatpush1.bf16.msra.mxu0 0
    %708 = vmatprep.subr.bf16.mxu0 0
    %709 = vmatpush1.bf16.msra.mxu0 0
    %710 = vmatprep.subr.bf16.mxu0 0
    %711 = vmatpush1.bf16.msra.mxu0 0
    %712 = vmatprep.subr.bf16.mxu0 0
    %713 = vmatpush1.bf16.msra.mxu0 0
    %714 = vmatprep.subr.bf16.mxu0 0
    %715 = vmatpush1.bf16.msra.mxu0 0
    %716 = vmatprep.subr.bf16.mxu0 0
    %717 = vmatpush1.bf16.msra.mxu0 0
    %718 = vmatprep.subr.bf16.mxu0 0
    %719 = vmatpush1.bf16.msra.mxu0 %v702
    %720 = vmatprep.subr.bf16.mxu0 0
    %721 = vmatpush2.bf16.msra.mxu0 0
    %722 = vmatprep.subr.bf16.mxu0 0
    %723 = vmatpush2.bf16.msra.mxu0 0
    %724 = vmatprep.subr.bf16.mxu0 0
    %725 = vmatpush2.bf16.msra.mxu0 0
    %726 = vmatprep.subr.bf16.mxu0 0
    %727 = vmatpush2.bf16.msra.mxu0 0
    %728 = vmatprep.subr.bf16.mxu0 0
    %729 = vmatpush2.bf16.msra.mxu0 0
    %730 = vmatprep.subr.bf16.mxu0 0
    %731 = vmatpush2.bf16.msra.mxu0 0
    %732 = vmatprep.subr.bf16.mxu0 0
    %733 = vmatpush2.bf16.msra.mxu0 0
    %734 = vmatprep.subr.bf16.mxu0 0
    %735 = vmatpush2.bf16.msra.mxu0 0
    %736 = vmatprep.mubr.bf16.mxu0 0
    %737 = vmatmul.mubr.bf16.gmra.mxu0 %v699
    %v738 = vpop.f32.mrf.mxu0
    %v739 = vadd.f32 %v647, %v738
    %v740 = vpop.f32.mrf.mxu0
    %v741 = vpop.f32.mrf.mxu0
    %v742 = vpop.f32.mrf.mxu0
    %743 = vdwg.mxu0
    %v745 = vsel %vm456, %v484, 0
    %v748 = vsel %vm608, %v482, 0
    %750 = vmatprep.subr.bf16.mxu0 0
    %751 = vmatpush1.bf16.msra.mxu0 0
    %752 = vmatprep.subr.bf16.mxu0 0
    %753 = vmatpush1.bf16.msra.mxu0 0
    %754 = vmatprep.subr.bf16.mxu0 0
    %755 = vmatpush1.bf16.msra.mxu0 0
    %756 = vmatprep.subr.bf16.mxu0 0
    %757 = vmatpush1.bf16.msra.mxu0 0
    %758 = vmatprep.subr.bf16.mxu0 0
    %759 = vmatpush1.bf16.msra.mxu0 0
    %760 = vmatprep.subr.bf16.mxu0 0
    %761 = vmatpush1.bf16.msra.mxu0 0
    %762 = vmatprep.subr.bf16.mxu0 0
    %763 = vmatpush1.bf16.msra.mxu0 0
    %764 = vmatprep.subr.bf16.mxu0 0
    %765 = vmatpush1.bf16.msra.mxu0 %v748
    %766 = vmatprep.subr.bf16.mxu0 0
    %767 = vmatpush2.bf16.msra.mxu0 0
    %768 = vmatprep.subr.bf16.mxu0 0
    %769 = vmatpush2.bf16.msra.mxu0 0
    %770 = vmatprep.subr.bf16.mxu0 0
    %771 = vmatpush2.bf16.msra.mxu0 0
    %772 = vmatprep.subr.bf16.mxu0 0
    %773 = vmatpush2.bf16.msra.mxu0 0
    %774 = vmatprep.subr.bf16.mxu0 0
    %775 = vmatpush2.bf16.msra.mxu0 0
    %776 = vmatprep.subr.bf16.mxu0 0
    %777 = vmatpush2.bf16.msra.mxu0 0
    %778 = vmatprep.subr.bf16.mxu0 0
    %779 = vmatpush2.bf16.msra.mxu0 0
    %780 = vmatprep.subr.bf16.mxu0 0
    %781 = vmatpush2.bf16.msra.mxu0 0
    %782 = vmatprep.mubr.bf16.mxu0 0
    %783 = vmatmul.mubr.bf16.gmra.mxu0 %v745
    %v784 = vpop.f32.mrf.mxu0
    %v785 = vadd.f32 %v693, %v784
    %v786 = vpop.f32.mrf.mxu0
    %v787 = vpop.f32.mrf.mxu0
    %v788 = vpop.f32.mrf.mxu0
    %789 = vdwg.mxu0
    %v790 = vmul.f32 %v222, %v89
    %v791 = vmul.f32 %v225, %v89
    %v792 = vpack.c.bf16 %v790, %v790
    %v793 = vpack.c.bf16 %v791, %v791
    %v795 = vsel %vm183, %v792, 0
    %797 = vmatprep.subr.bf16.mxu0 0
    %798 = vmatpush1.bf16.xpose.msra.mxu0 0
    %799 = vmatprep.subr.bf16.mxu0 0
    %800 = vmatpush1.bf16.xpose.msra.mxu0 0
    %801 = vmatprep.subr.bf16.mxu0 0
    %802 = vmatpush1.bf16.xpose.msra.mxu0 0
    %803 = vmatprep.subr.bf16.mxu0 0
    %804 = vmatpush1.bf16.xpose.msra.mxu0 0
    %805 = vmatprep.subr.bf16.mxu0 0
    %806 = vmatpush1.bf16.xpose.msra.mxu0 0
    %807 = vmatprep.subr.bf16.mxu0 0
    %808 = vmatpush1.bf16.xpose.msra.mxu0 0
    %809 = vmatprep.subr.bf16.mxu0 0
    %810 = vmatpush1.bf16.xpose.msra.mxu0 0
    %811 = vmatprep.subr.bf16.mxu0 0
    %812 = vmatpush1.bf16.xpose.msra.mxu0 %v366
    %813 = vmatprep.subr.bf16.mxu0 0
    %814 = vmatpush2.bf16.xpose.msra.mxu0 0
    %815 = vmatprep.subr.bf16.mxu0 0
    %816 = vmatpush2.bf16.xpose.msra.mxu0 0
    %817 = vmatprep.subr.bf16.mxu0 0
    %818 = vmatpush2.bf16.xpose.msra.mxu0 0
    %819 = vmatprep.subr.bf16.mxu0 0
    %820 = vmatpush2.bf16.xpose.msra.mxu0 0
    %821 = vmatprep.subr.bf16.mxu0 0
    %822 = vmatpush2.bf16.xpose.msra.mxu0 0
    %823 = vmatprep.subr.bf16.mxu0 0
    %824 = vmatpush2.bf16.xpose.msra.mxu0 0
    %825 = vmatprep.subr.bf16.mxu0 0
    %826 = vmatpush2.bf16.xpose.msra.mxu0 0
    %827 = vmatprep.subr.bf16.mxu0 0
    %828 = vmatpush2.bf16.xpose.msra.mxu0 0
    %829 = vmatprep.mubr.bf16.mxu0 0
    %830 = vmatmul.mubr.bf16.gmra.mxu0 %v795
    %v831 = vpop.f32.mrf.mxu0
    %v832 = vadd.f32 0.0, %v831
    %v833 = vpop.f32.mrf.mxu0
    %v834 = vpop.f32.mrf.mxu0
    %v835 = vpop.f32.mrf.mxu0
    %836 = vdwg.mxu0
    %v838 = vsel %vm183, %v793, 0
    %840 = vmatprep.subr.bf16.mxu0 0
    %841 = vmatpush1.bf16.xpose.msra.mxu0 0
    %842 = vmatprep.subr.bf16.mxu0 0
    %843 = vmatpush1.bf16.xpose.msra.mxu0 0
    %844 = vmatprep.subr.bf16.mxu0 0
    %845 = vmatpush1.bf16.xpose.msra.mxu0 0
    %846 = vmatprep.subr.bf16.mxu0 0
    %847 = vmatpush1.bf16.xpose.msra.mxu0 0
    %848 = vmatprep.subr.bf16.mxu0 0
    %849 = vmatpush1.bf16.xpose.msra.mxu0 0
    %850 = vmatprep.subr.bf16.mxu0 0
    %851 = vmatpush1.bf16.xpose.msra.mxu0 0
    %852 = vmatprep.subr.bf16.mxu0 0
    %853 = vmatpush1.bf16.xpose.msra.mxu0 0
    %854 = vmatprep.subr.bf16.mxu0 0
    %855 = vmatpush1.bf16.xpose.msra.mxu0 %v412
    %856 = vmatprep.subr.bf16.mxu0 0
    %857 = vmatpush2.bf16.xpose.msra.mxu0 0
    %858 = vmatprep.subr.bf16.mxu0 0
    %859 = vmatpush2.bf16.xpose.msra.mxu0 0
    %860 = vmatprep.subr.bf16.mxu0 0
    %861 = vmatpush2.bf16.xpose.msra.mxu0 0
    %862 = vmatprep.subr.bf16.mxu0 0
    %863 = vmatpush2.bf16.xpose.msra.mxu0 0
    %864 = vmatprep.subr.bf16.mxu0 0
    %865 = vmatpush2.bf16.xpose.msra.mxu0 0
    %866 = vmatprep.subr.bf16.mxu0 0
    %867 = vmatpush2.bf16.xpose.msra.mxu0 0
    %868 = vmatprep.subr.bf16.mxu0 0
    %869 = vmatpush2.bf16.xpose.msra.mxu0 0
    %870 = vmatprep.subr.bf16.mxu0 0
    %871 = vmatpush2.bf16.xpose.msra.mxu0 0
    %872 = vmatprep.mubr.bf16.mxu0 0
    %873 = vmatmul.mubr.bf16.gmra.mxu0 %v838
    %v874 = vpop.f32.mrf.mxu0
    %v875 = vadd.f32 0.0, %v874
    %v876 = vpop.f32.mrf.mxu0
    %v877 = vpop.f32.mrf.mxu0
    %v878 = vpop.f32.mrf.mxu0
    %879 = vdwg.mxu0
    %v880 = vmul.f32 %v832, 0.35355338
    %v881 = vmul.f32 %v875, 0.35355338
    %v882 = vsel %vm456, %v880, -inf
    %883 = vmax.xlane.f32.xlu0 %v882
    %v884 = vpop.xlane.xlu0 %883
    %v885 = vsel %vm456, %v881, -inf
    %886 = vmax.xlane.f32.xlu0 %v885
    %v887 = vpop.xlane.xlu0 %886
    %v888 = vsub.f32 %v880, %v884
    %v889 = vsub.f32 %v881, %v887
    %v890 = vmul.f32 %v888, 1.442695
    %v891 = vpow.pop %v890
    %v892 = vmul.f32 %v889, 1.442695
    %v893 = vpow.pop %v892
    %v894 = vsel %vm456, %v891, 0.0
    %895 = vadd.xlane.f32.xlu0 %v894
    %v896 = vpop.xlane.xlu0 %895
    %v897 = vsel %vm456, %v893, 0.0
    %898 = vadd.xlane.f32.xlu0 %v897
    %v899 = vpop.xlane.xlu0 %898
    %v900 = vrcp.pop %v896
    %v901 = vrcp.pop %v899
    %v902 = vmul.f32 %v891, %v900
    %v903 = vmul.f32 %v893, %v901
    %v904 = vmul.f32 %v350, %v89
    %v905 = vmul.f32 %v353, %v89
    %v906 = vpack.c.bf16 %v904, %v904
    %v907 = vpack.c.bf16 %v905, %v905
    %v908 = vpack.c.bf16 %v902, %v902
    %v909 = vpack.c.bf16 %v903, %v903
    %v911 = vsel %vm456, %v908, 0
    %v914 = vsel %vm608, %v906, 0
    %916 = vmatprep.subr.bf16.mxu0 0
    %917 = vmatpush1.bf16.msra.mxu0 0
    %918 = vmatprep.subr.bf16.mxu0 0
    %919 = vmatpush1.bf16.msra.mxu0 0
    %920 = vmatprep.subr.bf16.mxu0 0
    %921 = vmatpush1.bf16.msra.mxu0 0
    %922 = vmatprep.subr.bf16.mxu0 0
    %923 = vmatpush1.bf16.msra.mxu0 0
    %924 = vmatprep.subr.bf16.mxu0 0
    %925 = vmatpush1.bf16.msra.mxu0 0
    %926 = vmatprep.subr.bf16.mxu0 0
    %927 = vmatpush1.bf16.msra.mxu0 0
    %928 = vmatprep.subr.bf16.mxu0 0
    %929 = vmatpush1.bf16.msra.mxu0 0
    %930 = vmatprep.subr.bf16.mxu0 0
    %931 = vmatpush1.bf16.msra.mxu0 %v914
    %932 = vmatprep.subr.bf16.mxu0 0
    %933 = vmatpush2.bf16.msra.mxu0 0
    %934 = vmatprep.subr.bf16.mxu0 0
    %935 = vmatpush2.bf16.msra.mxu0 0
    %936 = vmatprep.subr.bf16.mxu0 0
    %937 = vmatpush2.bf16.msra.mxu0 0
    %938 = vmatprep.subr.bf16.mxu0 0
    %939 = vmatpush2.bf16.msra.mxu0 0
    %940 = vmatprep.subr.bf16.mxu0 0
    %941 = vmatpush2.bf16.msra.mxu0 0
    %942 = vmatprep.subr.bf16.mxu0 0
    %943 = vmatpush2.bf16.msra.mxu0 0
    %944 = vmatprep.subr.bf16.mxu0 0
    %945 = vmatpush2.bf16.msra.mxu0 0
    %946 = vmatprep.subr.bf16.mxu0 0
    %947 = vmatpush2.bf16.msra.mxu0 0
    %948 = vmatprep.mubr.bf16.mxu0 0
    %949 = vmatmul.mubr.bf16.gmra.mxu0 %v911
    %v950 = vpop.f32.mrf.mxu0
    %v951 = vadd.f32 0.0, %v950
    %v952 = vpop.f32.mrf.mxu0
    %v953 = vpop.f32.mrf.mxu0
    %v954 = vpop.f32.mrf.mxu0
    %955 = vdwg.mxu0
    %v957 = vsel %vm456, %v909, 0
    %v960 = vsel %vm608, %v907, 0
    %962 = vmatprep.subr.bf16.mxu0 0
    %963 = vmatpush1.bf16.msra.mxu0 0
    %964 = vmatprep.subr.bf16.mxu0 0
    %965 = vmatpush1.bf16.msra.mxu0 0
    %966 = vmatprep.subr.bf16.mxu0 0
    %967 = vmatpush1.bf16.msra.mxu0 0
    %968 = vmatprep.subr.bf16.mxu0 0
    %969 = vmatpush1.bf16.msra.mxu0 0
    %970 = vmatprep.subr.bf16.mxu0 0
    %971 = vmatpush1.bf16.msra.mxu0 0
    %972 = vmatprep.subr.bf16.mxu0 0
    %973 = vmatpush1.bf16.msra.mxu0 0
    %974 = vmatprep.subr.bf16.mxu0 0
    %975 = vmatpush1.bf16.msra.mxu0 0
    %976 = vmatprep.subr.bf16.mxu0 0
    %977 = vmatpush1.bf16.msra.mxu0 %v960
    %978 = vmatprep.subr.bf16.mxu0 0
    %979 = vmatpush2.bf16.msra.mxu0 0
    %980 = vmatprep.subr.bf16.mxu0 0
    %981 = vmatpush2.bf16.msra.mxu0 0
    %982 = vmatprep.subr.bf16.mxu0 0
    %983 = vmatpush2.bf16.msra.mxu0 0
    %984 = vmatprep.subr.bf16.mxu0 0
    %985 = vmatpush2.bf16.msra.mxu0 0
    %986 = vmatprep.subr.bf16.mxu0 0
    %987 = vmatpush2.bf16.msra.mxu0 0
    %988 = vmatprep.subr.bf16.mxu0 0
    %989 = vmatpush2.bf16.msra.mxu0 0
    %990 = vmatprep.subr.bf16.mxu0 0
    %991 = vmatpush2.bf16.msra.mxu0 0
    %992 = vmatprep.subr.bf16.mxu0 0
    %993 = vmatpush2.bf16.msra.mxu0 0
    %994 = vmatprep.mubr.bf16.mxu0 0
    %995 = vmatmul.mubr.bf16.gmra.mxu0 %v957
    %v996 = vpop.f32.mrf.mxu0
    %v997 = vadd.f32 0.0, %v996
    %v998 = vpop.f32.mrf.mxu0
    %v999 = vpop.f32.mrf.mxu0
    %v1000 = vpop.f32.mrf.mxu0
    %1001 = vdwg.mxu0
    %v1002 = vadd.f32 %v739, %v951
    %v1003 = vadd.f32 %v785, %v997
    %v1004 = vmul.f32 %v222, %v94
    %v1005 = vmul.f32 %v225, %v94
    %v1006 = vpack.c.bf16 %v1004, %v1004
    %v1007 = vpack.c.bf16 %v1005, %v1005
    %v1009 = vsel %vm183, %v1006, 0
    %1011 = vmatprep.subr.bf16.mxu0 0
    %1012 = vmatpush1.bf16.xpose.msra.mxu0 0
    %1013 = vmatprep.subr.bf16.mxu0 0
    %1014 = vmatpush1.bf16.xpose.msra.mxu0 0
    %1015 = vmatprep.subr.bf16.mxu0 0
    %1016 = vmatpush1.bf16.xpose.msra.mxu0 0
    %1017 = vmatprep.subr.bf16.mxu0 0
    %1018 = vmatpush1.bf16.xpose.msra.mxu0 0
    %1019 = vmatprep.subr.bf16.mxu0 0
    %1020 = vmatpush1.bf16.xpose.msra.mxu0 0
    %1021 = vmatprep.subr.bf16.mxu0 0
    %1022 = vmatpush1.bf16.xpose.msra.mxu0 0
    %1023 = vmatprep.subr.bf16.mxu0 0
    %1024 = vmatpush1.bf16.xpose.msra.mxu0 0
    %1025 = vmatprep.subr.bf16.mxu0 0
    %1026 = vmatpush1.bf16.xpose.msra.mxu0 %v366
    %1027 = vmatprep.subr.bf16.mxu0 0
    %1028 = vmatpush2.bf16.xpose.msra.mxu0 0
    %1029 = vmatprep.subr.bf16.mxu0 0
    %1030 = vmatpush2.bf16.xpose.msra.mxu0 0
    %1031 = vmatprep.subr.bf16.mxu0 0
    %1032 = vmatpush2.bf16.xpose.msra.mxu0 0
    %1033 = vmatprep.subr.bf16.mxu0 0
    %1034 = vmatpush2.bf16.xpose.msra.mxu0 0
    %1035 = vmatprep.subr.bf16.mxu0 0
    %1036 = vmatpush2.bf16.xpose.msra.mxu0 0
    %1037 = vmatprep.subr.bf16.mxu0 0
    %1038 = vmatpush2.bf16.xpose.msra.mxu0 0
    %1039 = vmatprep.subr.bf16.mxu0 0
    %1040 = vmatpush2.bf16.xpose.msra.mxu0 0
    %1041 = vmatprep.subr.bf16.mxu0 0
    %1042 = vmatpush2.bf16.xpose.msra.mxu0 0
    %1043 = vmatprep.mubr.bf16.mxu0 0
    %1044 = vmatmul.mubr.bf16.gmra.mxu0 %v1009
    %v1045 = vpop.f32.mrf.mxu0
    %v1046 = vadd.f32 0.0, %v1045
    %v1047 = vpop.f32.mrf.mxu0
    %v1048 = vpop.f32.mrf.mxu0
    %v1049 = vpop.f32.mrf.mxu0
    %1050 = vdwg.mxu0
    %v1052 = vsel %vm183, %v1007, 0
    %1054 = vmatprep.subr.bf16.mxu0 0
    %1055 = vmatpush1.bf16.xpose.msra.mxu0 0
    %1056 = vmatprep.subr.bf16.mxu0 0
    %1057 = vmatpush1.bf16.xpose.msra.mxu0 0
    %1058 = vmatprep.subr.bf16.mxu0 0
    %1059 = vmatpush1.bf16.xpose.msra.mxu0 0
    %1060 = vmatprep.subr.bf16.mxu0 0
    %1061 = vmatpush1.bf16.xpose.msra.mxu0 0
    %1062 = vmatprep.subr.bf16.mxu0 0
    %1063 = vmatpush1.bf16.xpose.msra.mxu0 0
    %1064 = vmatprep.subr.bf16.mxu0 0
    %1065 = vmatpush1.bf16.xpose.msra.mxu0 0
    %1066 = vmatprep.subr.bf16.mxu0 0
    %1067 = vmatpush1.bf16.xpose.msra.mxu0 0
    %1068 = vmatprep.subr.bf16.mxu0 0
    %1069 = vmatpush1.bf16.xpose.msra.mxu0 %v412
    %1070 = vmatprep.subr.bf16.mxu0 0
    %1071 = vmatpush2.bf16.xpose.msra.mxu0 0
    %1072 = vmatprep.subr.bf16.mxu0 0
    %1073 = vmatpush2.bf16.xpose.msra.mxu0 0
    %1074 = vmatprep.subr.bf16.mxu0 0
    %1075 = vmatpush2.bf16.xpose.msra.mxu0 0
    %1076 = vmatprep.subr.bf16.mxu0 0
    %1077 = vmatpush2.bf16.xpose.msra.mxu0 0
    %1078 = vmatprep.subr.bf16.mxu0 0
    %1079 = vmatpush2.bf16.xpose.msra.mxu0 0
    %1080 = vmatprep.subr.bf16.mxu0 0
    %1081 = vmatpush2.bf16.xpose.msra.mxu0 0
    %1082 = vmatprep.subr.bf16.mxu0 0
    %1083 = vmatpush2.bf16.xpose.msra.mxu0 0
    %1084 = vmatprep.subr.bf16.mxu0 0
    %1085 = vmatpush2.bf16.xpose.msra.mxu0 0
    %1086 = vmatprep.mubr.bf16.mxu0 0
    %1087 = vmatmul.mubr.bf16.gmra.mxu0 %v1052
    %v1088 = vpop.f32.mrf.mxu0
    %v1089 = vadd.f32 0.0, %v1088
    %v1090 = vpop.f32.mrf.mxu0
    %v1091 = vpop.f32.mrf.mxu0
    %v1092 = vpop.f32.mrf.mxu0
    %1093 = vdwg.mxu0
    %v1094 = vmul.f32 %v1046, 0.35355338
    %v1095 = vmul.f32 %v1089, 0.35355338
    %v1096 = vsel %vm456, %v1094, -inf
    %1097 = vmax.xlane.f32.xlu0 %v1096
    %v1098 = vpop.xlane.xlu0 %1097
    %v1099 = vsel %vm456, %v1095, -inf
    %1100 = vmax.xlane.f32.xlu0 %v1099
    %v1101 = vpop.xlane.xlu0 %1100
    %v1102 = vsub.f32 %v1094, %v1098
    %v1103 = vsub.f32 %v1095, %v1101
    %v1104 = vmul.f32 %v1102, 1.442695
    %v1105 = vpow.pop %v1104
    %v1106 = vmul.f32 %v1103, 1.442695
    %v1107 = vpow.pop %v1106
    %v1108 = vsel %vm456, %v1105, 0.0
    %1109 = vadd.xlane.f32.xlu0 %v1108
    %v1110 = vpop.xlane.xlu0 %1109
    %v1111 = vsel %vm456, %v1107, 0.0
    %1112 = vadd.xlane.f32.xlu0 %v1111
    %v1113 = vpop.xlane.xlu0 %1112
    %v1114 = vrcp.pop %v1110
    %v1115 = vrcp.pop %v1113
    %v1116 = vmul.f32 %v1105, %v1114
    %v1117 = vmul.f32 %v1107, %v1115
    %v1118 = vmul.f32 %v350, %v94
    %v1119 = vmul.f32 %v353, %v94
    %v1120 = vpack.c.bf16 %v1118, %v1118
    %v1121 = vpack.c.bf16 %v1119, %v1119
    %v1122 = vpack.c.bf16 %v1116, %v1116
    %v1123 = vpack.c.bf16 %v1117, %v1117
    %v1125 = vsel %vm456, %v1122, 0
    %v1128 = vsel %vm608, %v1120, 0
    %1130 = vmatprep.subr.bf16.mxu0 0
    %1131 = vmatpush1.bf16.msra.mxu0 0
    %1132 = vmatprep.subr.bf16.mxu0 0
    %1133 = vmatpush1.bf16.msra.mxu0 0
    %1134 = vmatprep.subr.bf16.mxu0 0
    %1135 = vmatpush1.bf16.msra.mxu0 0
    %1136 = vmatprep.subr.bf16.mxu0 0
    %1137 = vmatpush1.bf16.msra.mxu0 0
    %1138 = vmatprep.subr.bf16.mxu0 0
    %1139 = vmatpush1.bf16.msra.mxu0 0
    %1140 = vmatprep.subr.bf16.mxu0 0
    %1141 = vmatpush1.bf16.msra.mxu0 0
    %1142 = vmatprep.subr.bf16.mxu0 0
    %1143 = vmatpush1.bf16.msra.mxu0 0
    %1144 = vmatprep.subr.bf16.mxu0 0
    %1145 = vmatpush1.bf16.msra.mxu0 %v1128
    %1146 = vmatprep.subr.bf16.mxu0 0
    %1147 = vmatpush2.bf16.msra.mxu0 0
    %1148 = vmatprep.subr.bf16.mxu0 0
    %1149 = vmatpush2.bf16.msra.mxu0 0
    %1150 = vmatprep.subr.bf16.mxu0 0
    %1151 = vmatpush2.bf16.msra.mxu0 0
    %1152 = vmatprep.subr.bf16.mxu0 0
    %1153 = vmatpush2.bf16.msra.mxu0 0
    %1154 = vmatprep.subr.bf16.mxu0 0
    %1155 = vmatpush2.bf16.msra.mxu0 0
    %1156 = vmatprep.subr.bf16.mxu0 0
    %1157 = vmatpush2.bf16.msra.mxu0 0
    %1158 = vmatprep.subr.bf16.mxu0 0
    %1159 = vmatpush2.bf16.msra.mxu0 0
    %1160 = vmatprep.subr.bf16.mxu0 0
    %1161 = vmatpush2.bf16.msra.mxu0 0
    %1162 = vmatprep.mubr.bf16.mxu0 0
    %1163 = vmatmul.mubr.bf16.gmra.mxu0 %v1125
    %v1164 = vpop.f32.mrf.mxu0
    %v1165 = vadd.f32 0.0, %v1164
    %v1166 = vpop.f32.mrf.mxu0
    %v1167 = vpop.f32.mrf.mxu0
    %v1168 = vpop.f32.mrf.mxu0
    %1169 = vdwg.mxu0
    %v1171 = vsel %vm456, %v1123, 0
    %v1174 = vsel %vm608, %v1121, 0
    %1176 = vmatprep.subr.bf16.mxu0 0
    %1177 = vmatpush1.bf16.msra.mxu0 0
    %1178 = vmatprep.subr.bf16.mxu0 0
    %1179 = vmatpush1.bf16.msra.mxu0 0
    %1180 = vmatprep.subr.bf16.mxu0 0
    %1181 = vmatpush1.bf16.msra.mxu0 0
    %1182 = vmatprep.subr.bf16.mxu0 0
    %1183 = vmatpush1.bf16.msra.mxu0 0
    %1184 = vmatprep.subr.bf16.mxu0 0
    %1185 = vmatpush1.bf16.msra.mxu0 0
    %1186 = vmatprep.subr.bf16.mxu0 0
    %1187 = vmatpush1.bf16.msra.mxu0 0
    %1188 = vmatprep.subr.bf16.mxu0 0
    %1189 = vmatpush1.bf16.msra.mxu0 0
    %1190 = vmatprep.subr.bf16.mxu0 0
    %1191 = vmatpush1.bf16.msra.mxu0 %v1174
    %1192 = vmatprep.subr.bf16.mxu0 0
    %1193 = vmatpush2.bf16.msra.mxu0 0
    %1194 = vmatprep.subr.bf16.mxu0 0
    %1195 = vmatpush2.bf16.msra.mxu0 0
    %1196 = vmatprep.subr.bf16.mxu0 0
    %1197 = vmatpush2.bf16.msra.mxu0 0
    %1198 = vmatprep.subr.bf16.mxu0 0
    %1199 = vmatpush2.bf16.msra.mxu0 0
    %1200 = vmatprep.subr.bf16.mxu0 0
    %1201 = vmatpush2.bf16.msra.mxu0 0
    %1202 = vmatprep.subr.bf16.mxu0 0
    %1203 = vmatpush2.bf16.msra.mxu0 0
    %1204 = vmatprep.subr.bf16.mxu0 0
    %1205 = vmatpush2.bf16.msra.mxu0 0
    %1206 = vmatprep.subr.bf16.mxu0 0
    %1207 = vmatpush2.bf16.msra.mxu0 0
    %1208 = vmatprep.mubr.bf16.mxu0 0
    %1209 = vmatmul.mubr.bf16.gmra.mxu0 %v1171
    %v1210 = vpop.f32.mrf.mxu0
    %v1211 = vadd.f32 0.0, %v1210
    %v1212 = vpop.f32.mrf.mxu0
    %v1213 = vpop.f32.mrf.mxu0
    %v1214 = vpop.f32.mrf.mxu0
    %1215 = vdwg.mxu0
    %v1216 = vadd.f32 %v1002, %v1165
    %v1217 = vadd.f32 %v1003, %v1211
    %v1218 = vpack.c.bf16 %v1217, %v1216
    %v1219 = vld [vmem:[%s10] sm:$0xf]
    %v1220 = vld [vmem:[%s10 + $0x4] sm:$0xf]
    %v1221 = vld [vmem:[%s10 + $0x8] sm:$0xf]
    %v1222 = vld [vmem:[%s10 + $0xc] sm:$0xf]
    %v1223 = vld [vmem:[%s11] sm:$0x1]
    %v1225 = vlaneseq
    %v1226 = vshrl.u32 %v1225, 7
    %v1227 = vsub.s32 0, %v1226
    %v1228 = vrot.slane %v1223, %v1227
    %v1234 = vunpack.c.l.b16 %v1219
    %v1235 = vunpack.c.l.b16 %v1220
    %v1236 = vunpack.c.l.b16 %v1221
    %v1237 = vunpack.c.l.b16 %v1222
    %v1238 = vpack.c.b16 %v1235, %v1234
    %v1239 = vpack.c.b16 %v1237, %v1236
    %v1243 = vsel %vm183, %v1218, 0
    %1245 = vmatprep.subr.bf16.mxu0 0
    %1246 = vmatpush1.bf16.msra.mxu0 0
    %1247 = vmatprep.subr.bf16.mxu0 0
    %1248 = vmatpush1.bf16.msra.mxu0 0
    %1249 = vmatprep.subr.bf16.mxu0 0
    %1250 = vmatpush1.bf16.msra.mxu0 0
    %1251 = vmatprep.subr.bf16.mxu0 0
    %1252 = vmatpush1.bf16.msra.mxu0 0
    %1253 = vmatprep.subr.bf16.mxu0 0
    %1254 = vmatpush1.bf16.msra.mxu0 0
    %1255 = vmatprep.subr.bf16.mxu0 0
    %1256 = vmatpush1.bf16.msra.mxu0 0
    %1257 = vmatprep.subr.bf16.mxu0 0
    %1258 = vmatpush1.bf16.msra.mxu0 %v1239
    %1259 = vmatprep.subr.bf16.mxu0 0
    %1260 = vmatpush1.bf16.msra.mxu0 %v1238
    %1261 = vmatprep.subr.bf16.mxu0 0
    %1262 = vmatpush2.bf16.msra.mxu0 0
    %1263 = vmatprep.subr.bf16.mxu0 0
    %1264 = vmatpush2.bf16.msra.mxu0 0
    %1265 = vmatprep.subr.bf16.mxu0 0
    %1266 = vmatpush2.bf16.msra.mxu0 0
    %1267 = vmatprep.subr.bf16.mxu0 0
    %1268 = vmatpush2.bf16.msra.mxu0 0
    %1269 = vmatprep.subr.bf16.mxu0 0
    %1270 = vmatpush2.bf16.msra.mxu0 0
    %1271 = vmatprep.subr.bf16.mxu0 0
    %1272 = vmatpush2.bf16.msra.mxu0 0
    %1273 = vmatprep.subr.bf16.mxu0 0
    %1274 = vmatpush2.bf16.msra.mxu0 0
    %1275 = vmatprep.subr.bf16.mxu0 0
    %1276 = vmatpush2.bf16.msra.mxu0 0
    %1277 = vmatprep.mubr.bf16.mxu0 0
    %1278 = vmatmul.mubr.bf16.gmra.mxu0 %v1243
    %v1279 = vpop.f32.mrf.mxu0
    %v1280 = vadd.f32 %v1228, %v1279
    %v1281 = vpop.f32.mrf.mxu0
    %v1282 = vpop.f32.mrf.mxu0
    %v1283 = vadd.f32 %v1228, %v1282
    %v1284 = vpop.f32.mrf.mxu0
    %1285 = vdwg.mxu0
    %v1286 = vadd.f32 %v157, %v1280
    %v1287 = vadd.f32 %v158, %v1283
    %v1288 = vsel %vm183, %v1286, 0.0
    %1289 = vadd.xlane.f32.xlu0 %v1288
    %v1290 = vpop.xlane.xlu0 %1289
    %v1291 = vsel %vm183, %v1287, 0.0
    %1292 = vadd.xlane.f32.xlu0 %v1291
    %v1293 = vpop.xlane.xlu0 %1292
    %v1294 = vrcp.pop 32.0
    %v1295 = vmul.f32 %v1290, %v1294
    %v1296 = vmul.f32 %v1293, %v1294
    %v1297 = vsub.f32 %v1286, %v1295
    %v1298 = vsub.f32 %v1287, %v1296
    %v1299 = vmul.f32 %v1297, %v1297
    %v1300 = vmul.f32 %v1298, %v1298
    %v1301 = vsel %vm183, %v1299, 0.0
    %1302 = vadd.xlane.f32.xlu0 %v1301
    %v1303 = vpop.xlane.xlu0 %1302
    %v1304 = vsel %vm183, %v1300, 0.0
    %1305 = vadd.xlane.f32.xlu0 %v1304
    %v1306 = vpop.xlane.xlu0 %1305
    %v1307 = vmul.f32 %v1303, %v1294
    %v1308 = vmul.f32 %v1306, %v1294
    %v1309 = vadd.f32 %v1307, 1e-05
    %v1310 = vadd.f32 %v1308, 1e-05
    %v1311 = vrsqrt.pop %v1309
    %v1312 = vrsqrt.pop %v1310
    %v1313 = vmul.f32 %v1297, %v1311
    %v1314 = vmul.f32 %v1298, %v1312
    %v1315 = vld [vmem:[%s12] sm:$0x1]
    %v1317 = vlaneseq
    %v1318 = vshrl.u32 %v1317, 7
    %v1319 = vsub.s32 0, %v1318
    %v1320 = vrot.slane %v1315, %v1319
    %v1322 = vmul.f32 %v1313, %v1320
    %v1323 = vmul.f32 %v1314, %v1320
    %v1324 = vld [vmem:[%s13] sm:$0x1]
    %v1326 = vlaneseq
    %v1327 = vshrl.u32 %v1326, 7
    %v1328 = vsub.s32 0, %v1327
    %v1329 = vrot.slane %v1324, %v1328
    %v1331 = vadd.f32 %v1322, %v1329
    %v1332 = vadd.f32 %v1323, %v1329
    %v1333 = vpack.c.bf16 %v1332, %v1331
    %v1334 = vld [vmem:[%s14] sm:$0xf]
    %v1335 = vld [vmem:[%s14 + $0x4] sm:$0xf]
    %v1336 = vld [vmem:[%s14 + $0x8] sm:$0xf]
    %v1337 = vld [vmem:[%s14 + $0xc] sm:$0xf]
    %v1338 = vld [vmem:[%s15] sm:$0x1]
    %v1340 = vlaneseq
    %v1341 = vshrl.u32 %v1340, 7
    %v1342 = vsub.s32 0, %v1341
    %v1343 = vrot.slane %v1338, %v1342
    %v1349 = vunpack.c.l.b16 %v1334
    %v1350 = vunpack.c.l.b16 %v1335
    %v1351 = vunpack.c.l.b16 %v1336
    %v1352 = vunpack.c.l.b16 %v1337
    %v1353 = vpack.c.b16 %v1350, %v1349
    %v1354 = vpack.c.b16 %v1352, %v1351
    %v1358 = vsel %vm183, %v1333, 0
    %1360 = vmatprep.subr.bf16.mxu0 0
    %1361 = vmatpush1.bf16.msra.mxu0 0
    %1362 = vmatprep.subr.bf16.mxu0 0
    %1363 = vmatpush1.bf16.msra.mxu0 0
    %1364 = vmatprep.subr.bf16.mxu0 0
    %1365 = vmatpush1.bf16.msra.mxu0 0
    %1366 = vmatprep.subr.bf16.mxu0 0
    %1367 = vmatpush1.bf16.msra.mxu0 0
    %1368 = vmatprep.subr.bf16.mxu0 0
    %1369 = vmatpush1.bf16.msra.mxu0 0
    %1370 = vmatprep.subr.bf16.mxu0 0
    %1371 = vmatpush1.bf16.msra.mxu0 0
    %1372 = vmatprep.subr.bf16.mxu0 0
    %1373 = vmatpush1.bf16.msra.mxu0 %v1354
    %1374 = vmatprep.subr.bf16.mxu0 0
    %1375 = vmatpush1.bf16.msra.mxu0 %v1353
    %1376 = vmatprep.subr.bf16.mxu0 0
    %1377 = vmatpush2.bf16.msra.mxu0 0
    %1378 = vmatprep.subr.bf16.mxu0 0
    %1379 = vmatpush2.bf16.msra.mxu0 0
    %1380 = vmatprep.subr.bf16.mxu0 0
    %1381 = vmatpush2.bf16.msra.mxu0 0
    %1382 = vmatprep.subr.bf16.mxu0 0
    %1383 = vmatpush2.bf16.msra.mxu0 0
    %1384 = vmatprep.subr.bf16.mxu0 0
    %1385 = vmatpush2.bf16.msra.mxu0 0
    %1386 = vmatprep.subr.bf16.mxu0 0
    %1387 = vmatpush2.bf16.msra.mxu0 0
    %1388 = vmatprep.subr.bf16.mxu0 0
    %1389 = vmatpush2.bf16.msra.mxu0 0
    %1390 = vmatprep.subr.bf16.mxu0 0
    %1391 = vmatpush2.bf16.msra.mxu0 0
    %1392 = vmatprep.mubr.bf16.mxu0 0
    %1393 = vmatmul.mubr.bf16.gmra.mxu0 %v1358
    %v1394 = vpop.f32.mrf.mxu0
    %v1395 = vadd.f32 %v1343, %v1394
    %v1396 = vpop.f32.mrf.mxu0
    %v1397 = vpop.f32.mrf.mxu0
    %v1398 = vadd.f32 %v1343, %v1397
    %v1399 = vpop.f32.mrf.mxu0
    %1400 = vdwg.mxu0
    %v1401 = vmax.f32 %v1395, 0.0
    %v1402 = vmax.f32 %v1398, 0.0
    %v1403 = vpack.c.bf16 %v1402, %v1401
    %v1404 = vld [vmem:[%s16] sm:$0xf]
    %v1405 = vld [vmem:[%s16 + $0x4] sm:$0xf]
    %v1406 = vld [vmem:[%s16 + $0x8] sm:$0xf]
    %v1407 = vld [vmem:[%s16 + $0xc] sm:$0xf]
    %v1408 = vld [vmem:[%s16 + $0x10] sm:$0xf]
    %v1409 = vld [vmem:[%s16 + $0x14] sm:$0xf]
    %v1410 = vld [vmem:[%s16 + $0x18] sm:$0xf]
    %v1411 = vld [vmem:[%s16 + $0x1c] sm:$0xf]
    %v1412 = vld [vmem:[%s17] sm:$0x1]
    %v1414 = vlaneseq
    %v1415 = vshrl.u32 %v1414, 7
    %v1416 = vsub.s32 0, %v1415
    %v1417 = vrot.slane %v1412, %v1416
    %v1427 = vunpack.c.l.b16 %v1404
    %v1428 = vunpack.c.l.b16 %v1405
    %v1429 = vunpack.c.l.b16 %v1406
    %v1430 = vunpack.c.l.b16 %v1407
    %v1431 = vunpack.c.l.b16 %v1408
    %v1432 = vunpack.c.l.b16 %v1409
    %v1433 = vunpack.c.l.b16 %v1410
    %v1434 = vunpack.c.l.b16 %v1411
    %v1435 = vpack.c.b16 %v1428, %v1427
    %v1436 = vpack.c.b16 %v1430, %v1429
    %v1437 = vpack.c.b16 %v1432, %v1431
    %v1438 = vpack.c.b16 %v1434, %v1433
    %vm1443 = vcmask 523264
    %v1445 = vsel %vm1443, %v1403, 0
    %1447 = vmatprep.subr.bf16.mxu0 0
    %1448 = vmatpush1.bf16.msra.mxu0 0
    %1449 = vmatprep.subr.bf16.mxu0 0
    %1450 = vmatpush1.bf16.msra.mxu0 0
    %1451 = vmatprep.subr.bf16.mxu0 0
    %1452 = vmatpush1.bf16.msra.mxu0 0
    %1453 = vmatprep.subr.bf16.mxu0 0
    %1454 = vmatpush1.bf16.msra.mxu0 0
    %1455 = vmatprep.subr.bf16.mxu0 0
    %1456 = vmatpush1.bf16.msra.mxu0 %v1438
    %1457 = vmatprep.subr.bf16.mxu0 0
    %1458 = vmatpush1.bf16.msra.mxu0 %v1437
    %1459 = vmatprep.subr.bf16.mxu0 0
    %1460 = vmatpush1.bf16.msra.mxu0 %v1436
    %1461 = vmatprep.subr.bf16.mxu0 0
    %1462 = vmatpush1.bf16.msra.mxu0 %v1435
    %1463 = vmatprep.subr.bf16.mxu0 0
    %1464 = vmatpush2.bf16.msra.mxu0 0
    %1465 = vmatprep.subr.bf16.mxu0 0
    %1466 = vmatpush2.bf16.msra.mxu0 0
    %1467 = vmatprep.subr.bf16.mxu0 0
    %1468 = vmatpush2.bf16.msra.mxu0 0
    %1469 = vmatprep.subr.bf16.mxu0 0
    %1470 = vmatpush2.bf16.msra.mxu0 0
    %1471 = vmatprep.subr.bf16.mxu0 0
    %1472 = vmatpush2.bf16.msra.mxu0 0
    %1473 = vmatprep.subr.bf16.mxu0 0
    %1474 = vmatpush2.bf16.msra.mxu0 0
    %1475 = vmatprep.subr.bf16.mxu0 0
    %1476 = vmatpush2.bf16.msra.mxu0 0
    %1477 = vmatprep.subr.bf16.mxu0 0
    %1478 = vmatpush2.bf16.msra.mxu0 0
    %1479 = vmatprep.mubr.bf16.mxu0 0
    %1480 = vmatmul.mubr.bf16.gmra.mxu0 %v1445
    %v1481 = vpop.f32.mrf.mxu0
    %v1482 = vadd.f32 %v1417, %v1481
    %v1483 = vpop.f32.mrf.mxu0
    %v1484 = vpop.f32.mrf.mxu0
    %v1485 = vadd.f32 %v1417, %v1484
    %v1486 = vpop.f32.mrf.mxu0
    %1487 = vdwg.mxu0
    %v1488 = vadd.f32 %v1331, %v1482
    %v1489 = vadd.f32 %v1332, %v1485
    %v1490 = vsel %vm183, %v1488, 0.0
    %1491 = vadd.xlane.f32.xlu0 %v1490
    %v1492 = vpop.xlane.xlu0 %1491
    %v1493 = vsel %vm183, %v1489, 0.0
    %1494 = vadd.xlane.f32.xlu0 %v1493
    %v1495 = vpop.xlane.xlu0 %1494
    %v1496 = vmul.f32 %v1492, %v1294
    %v1497 = vmul.f32 %v1495, %v1294
    %v1498 = vsub.f32 %v1488, %v1496
    %v1499 = vsub.f32 %v1489, %v1497
    %v1500 = vmul.f32 %v1498, %v1498
    %v1501 = vmul.f32 %v1499, %v1499
    %v1502 = vsel %vm183, %v1500, 0.0
    %1503 = vadd.xlane.f32.xlu0 %v1502
    %v1504 = vpop.xlane.xlu0 %1503
    %v1505 = vsel %vm183, %v1501, 0.0
    %1506 = vadd.xlane.f32.xlu0 %v1505
    %v1507 = vpop.xlane.xlu0 %1506
    %v1508 = vmul.f32 %v1504, %v1294
    %v1509 = vmul.f32 %v1507, %v1294
    %v1510 = vadd.f32 %v1508, 1e-05
    %v1511 = vadd.f32 %v1509, 1e-05
    %v1512 = vrsqrt.pop %v1510
    %v1513 = vrsqrt.pop %v1511
    %v1514 = vmul.f32 %v1498, %v1512
    %v1515 = vmul.f32 %v1499, %v1513
    %v1516 = vld [vmem:[%s18] sm:$0x1]
    %v1518 = vlaneseq
    %v1519 = vshrl.u32 %v1518, 7
    %v1520 = vsub.s32 0, %v1519
    %v1521 = vrot.slane %v1516, %v1520
    %v1523 = vmul.f32 %v1514, %v1521
    %v1524 = vmul.f32 %v1515, %v1521
    %v1525 = vld [vmem:[%s19] sm:$0x1]
    %v1527 = vlaneseq
    %v1528 = vshrl.u32 %v1527, 7
    %v1529 = vsub.s32 0, %v1528
    %v1530 = vrot.slane %v1525, %v1529
    %v1532 = vadd.f32 %v1523, %v1530
    %v1533 = vadd.f32 %v1524, %v1530
    %v1534 = vpack.c.bf16 %v1533, %v1532
    %s1535 = scalar_lea.vmem %s4, 16
    %v1536 = vld [vmem:[%s1535] sm:$0xf]
    %v1537 = vld [vmem:[%s1535 + $0x4] sm:$0xf]
    %v1538 = vld [vmem:[%s1535 + $0x8] sm:$0xf]
    %v1539 = vld [vmem:[%s1535 + $0xc] sm:$0xf]
    %s1540 = scalar_lea.vmem %s5, 1
    %v1541 = vld [vmem:[%s1540] sm:$0x1]
    %v1543 = vlaneseq
    %v1544 = vshrl.u32 %v1543, 7
    %v1545 = vsub.s32 0, %v1544
    %v1546 = vrot.slane %v1541, %v1545
    %v1552 = vunpack.c.l.b16 %v1536
    %v1553 = vunpack.c.l.b16 %v1537
    %v1554 = vunpack.c.l.b16 %v1538
    %v1555 = vunpack.c.l.b16 %v1539
    %v1556 = vpack.c.b16 %v1553, %v1552
    %v1557 = vpack.c.b16 %v1555, %v1554
    %v1561 = vsel %vm183, %v1534, 0
    %1563 = vmatprep.subr.bf16.mxu0 0
    %1564 = vmatpush1.bf16.msra.mxu0 0
    %1565 = vmatprep.subr.bf16.mxu0 0
    %1566 = vmatpush1.bf16.msra.mxu0 0
    %1567 = vmatprep.subr.bf16.mxu0 0
    %1568 = vmatpush1.bf16.msra.mxu0 0
    %1569 = vmatprep.subr.bf16.mxu0 0
    %1570 = vmatpush1.bf16.msra.mxu0 0
    %1571 = vmatprep.subr.bf16.mxu0 0
    %1572 = vmatpush1.bf16.msra.mxu0 0
    %1573 = vmatprep.subr.bf16.mxu0 0
    %1574 = vmatpush1.bf16.msra.mxu0 0
    %1575 = vmatprep.subr.bf16.mxu0 0
    %1576 = vmatpush1.bf16.msra.mxu0 %v1557
    %1577 = vmatprep.subr.bf16.mxu0 0
    %1578 = vmatpush1.bf16.msra.mxu0 %v1556
    %1579 = vmatprep.subr.bf16.mxu0 0
    %1580 = vmatpush2.bf16.msra.mxu0 0
    %1581 = vmatprep.subr.bf16.mxu0 0
    %1582 = vmatpush2.bf16.msra.mxu0 0
    %1583 = vmatprep.subr.bf16.mxu0 0
    %1584 = vmatpush2.bf16.msra.mxu0 0
    %1585 = vmatprep.subr.bf16.mxu0 0
    %1586 = vmatpush2.bf16.msra.mxu0 0
    %1587 = vmatprep.subr.bf16.mxu0 0
    %1588 = vmatpush2.bf16.msra.mxu0 0
    %1589 = vmatprep.subr.bf16.mxu0 0
    %1590 = vmatpush2.bf16.msra.mxu0 0
    %1591 = vmatprep.subr.bf16.mxu0 0
    %1592 = vmatpush2.bf16.msra.mxu0 0
    %1593 = vmatprep.subr.bf16.mxu0 0
    %1594 = vmatpush2.bf16.msra.mxu0 0
    %1595 = vmatprep.mubr.bf16.mxu0 0
    %1596 = vmatmul.mubr.bf16.gmra.mxu0 %v1561
    %v1597 = vpop.f32.mrf.mxu0
    %v1598 = vadd.f32 %v1546, %v1597
    %v1599 = vpop.f32.mrf.mxu0
    %v1600 = vpop.f32.mrf.mxu0
    %v1601 = vadd.f32 %v1546, %v1600
    %v1602 = vpop.f32.mrf.mxu0
    %1603 = vdwg.mxu0
    %s1604 = scalar_lea.vmem %s6, 16
    %v1605 = vld [vmem:[%s1604] sm:$0xf]
    %v1606 = vld [vmem:[%s1604 + $0x4] sm:$0xf]
    %v1607 = vld [vmem:[%s1604 + $0x8] sm:$0xf]
    %v1608 = vld [vmem:[%s1604 + $0xc] sm:$0xf]
    %s1609 = scalar_lea.vmem %s7, 1
    %v1610 = vld [vmem:[%s1609] sm:$0x1]
    %v1612 = vlaneseq
    %v1613 = vshrl.u32 %v1612, 7
    %v1614 = vsub.s32 0, %v1613
    %v1615 = vrot.slane %v1610, %v1614
    %v1621 = vunpack.c.l.b16 %v1605
    %v1622 = vunpack.c.l.b16 %v1606
    %v1623 = vunpack.c.l.b16 %v1607
    %v1624 = vunpack.c.l.b16 %v1608
    %v1625 = vpack.c.b16 %v1622, %v1621
    %v1626 = vpack.c.b16 %v1624, %v1623
    %1629 = vmatprep.subr.bf16.mxu0 0
    %1630 = vmatpush1.bf16.msra.mxu0 0
    %1631 = vmatprep.subr.bf16.mxu0 0
    %1632 = vmatpush1.bf16.msra.mxu0 0
    %1633 = vmatprep.subr.bf16.mxu0 0
    %1634 = vmatpush1.bf16.msra.mxu0 0
    %1635 = vmatprep.subr.bf16.mxu0 0
    %1636 = vmatpush1.bf16.msra.mxu0 0
    %1637 = vmatprep.subr.bf16.mxu0 0
    %1638 = vmatpush1.bf16.msra.mxu0 0
    %1639 = vmatprep.subr.bf16.mxu0 0
    %1640 = vmatpush1.bf16.msra.mxu0 0
    %1641 = vmatprep.subr.bf16.mxu0 0
    %1642 = vmatpush1.bf16.msra.mxu0 %v1626
    %1643 = vmatprep.subr.bf16.mxu0 0
    %1644 = vmatpush1.bf16.msra.mxu0 %v1625
    %1645 = vmatprep.subr.bf16.mxu0 0
    %1646 = vmatpush2.bf16.msra.mxu0 0
    %1647 = vmatprep.subr.bf16.mxu0 0
    %1648 = vmatpush2.bf16.msra.mxu0 0
    %1649 = vmatprep.subr.bf16.mxu0 0
    %1650 = vmatpush2.bf16.msra.mxu0 0
    %1651 = vmatprep.subr.bf16.mxu0 0
    %1652 = vmatpush2.bf16.msra.mxu0 0
    %1653 = vmatprep.subr.bf16.mxu0 0
    %1654 = vmatpush2.bf16.msra.mxu0 0
    %1655 = vmatprep.subr.bf16.mxu0 0
    %1656 = vmatpush2.bf16.msra.mxu0 0
    %1657 = vmatprep.subr.bf16.mxu0 0
    %1658 = vmatpush2.bf16.msra.mxu0 0
    %1659 = vmatprep.subr.bf16.mxu0 0
    %1660 = vmatpush2.bf16.msra.mxu0 0
    %1661 = vmatprep.mubr.bf16.mxu0 0
    %1662 = vmatmul.mubr.bf16.gmra.mxu0 %v1561
    %v1663 = vpop.f32.mrf.mxu0
    %v1664 = vadd.f32 %v1615, %v1663
    %v1665 = vpop.f32.mrf.mxu0
    %v1666 = vpop.f32.mrf.mxu0
    %v1667 = vadd.f32 %v1615, %v1666
    %v1668 = vpop.f32.mrf.mxu0
    %1669 = vdwg.mxu0
    %s1670 = scalar_lea.vmem %s8, 16
    %v1671 = vld [vmem:[%s1670] sm:$0xf]
    %v1672 = vld [vmem:[%s1670 + $0x4] sm:$0xf]
    %v1673 = vld [vmem:[%s1670 + $0x8] sm:$0xf]
    %v1674 = vld [vmem:[%s1670 + $0xc] sm:$0xf]
    %s1675 = scalar_lea.vmem %s9, 1
    %v1676 = vld [vmem:[%s1675] sm:$0x1]
    %v1678 = vlaneseq
    %v1679 = vshrl.u32 %v1678, 7
    %v1680 = vsub.s32 0, %v1679
    %v1681 = vrot.slane %v1676, %v1680
    %v1687 = vunpack.c.l.b16 %v1671
    %v1688 = vunpack.c.l.b16 %v1672
    %v1689 = vunpack.c.l.b16 %v1673
    %v1690 = vunpack.c.l.b16 %v1674
    %v1691 = vpack.c.b16 %v1688, %v1687
    %v1692 = vpack.c.b16 %v1690, %v1689
    %1695 = vmatprep.subr.bf16.mxu0 0
    %1696 = vmatpush1.bf16.msra.mxu0 0
    %1697 = vmatprep.subr.bf16.mxu0 0
    %1698 = vmatpush1.bf16.msra.mxu0 0
    %1699 = vmatprep.subr.bf16.mxu0 0
    %1700 = vmatpush1.bf16.msra.mxu0 0
    %1701 = vmatprep.subr.bf16.mxu0 0
    %1702 = vmatpush1.bf16.msra.mxu0 0
    %1703 = vmatprep.subr.bf16.mxu0 0
    %1704 = vmatpush1.bf16.msra.mxu0 0
    %1705 = vmatprep.subr.bf16.mxu0 0
    %1706 = vmatpush1.bf16.msra.mxu0 0
    %1707 = vmatprep.subr.bf16.mxu0 0
    %1708 = vmatpush1.bf16.msra.mxu0 %v1692
    %1709 = vmatprep.subr.bf16.mxu0 0
    %1710 = vmatpush1.bf16.msra.mxu0 %v1691
    %1711 = vmatprep.subr.bf16.mxu0 0
    %1712 = vmatpush2.bf16.msra.mxu0 0
    %1713 = vmatprep.subr.bf16.mxu0 0
    %1714 = vmatpush2.bf16.msra.mxu0 0
    %1715 = vmatprep.subr.bf16.mxu0 0
    %1716 = vmatpush2.bf16.msra.mxu0 0
    %1717 = vmatprep.subr.bf16.mxu0 0
    %1718 = vmatpush2.bf16.msra.mxu0 0
    %1719 = vmatprep.subr.bf16.mxu0 0
    %1720 = vmatpush2.bf16.msra.mxu0 0
    %1721 = vmatprep.subr.bf16.mxu0 0
    %1722 = vmatpush2.bf16.msra.mxu0 0
    %1723 = vmatprep.subr.bf16.mxu0 0
    %1724 = vmatpush2.bf16.msra.mxu0 0
    %1725 = vmatprep.subr.bf16.mxu0 0
    %1726 = vmatpush2.bf16.msra.mxu0 0
    %1727 = vmatprep.mubr.bf16.mxu0 0
    %1728 = vmatmul.mubr.bf16.gmra.mxu0 %v1561
    %v1729 = vpop.f32.mrf.mxu0
    %v1730 = vadd.f32 %v1681, %v1729
    %v1731 = vpop.f32.mrf.mxu0
    %v1732 = vpop.f32.mrf.mxu0
    %v1733 = vadd.f32 %v1681, %v1732
    %v1734 = vpop.f32.mrf.mxu0
    %1735 = vdwg.mxu0
    %v1736 = vpack.c.bf16 %v1664, %v1664
    %v1737 = vpack.c.bf16 %v1667, %v1667
    %v1738 = vmul.f32 %v1598, %v79
    %v1739 = vmul.f32 %v1601, %v79
    %v1740 = vpack.c.bf16 %v1738, %v1738
    %v1741 = vpack.c.bf16 %v1739, %v1739
    %v1743 = vsel %vm183, %v1740, 0
    %v1746 = vsel %vm183, %v1736, 0
    %1748 = vmatprep.subr.bf16.mxu0 0
    %1749 = vmatpush1.bf16.xpose.msra.mxu0 0
    %1750 = vmatprep.subr.bf16.mxu0 0
    %1751 = vmatpush1.bf16.xpose.msra.mxu0 0
    %1752 = vmatprep.subr.bf16.mxu0 0
    %1753 = vmatpush1.bf16.xpose.msra.mxu0 0
    %1754 = vmatprep.subr.bf16.mxu0 0
    %1755 = vmatpush1.bf16.xpose.msra.mxu0 0
    %1756 = vmatprep.subr.bf16.mxu0 0
    %1757 = vmatpush1.bf16.xpose.msra.mxu0 0
    %1758 = vmatprep.subr.bf16.mxu0 0
    %1759 = vmatpush1.bf16.xpose.msra.mxu0 0
    %1760 = vmatprep.subr.bf16.mxu0 0
    %1761 = vmatpush1.bf16.xpose.msra.mxu0 0
    %1762 = vmatprep.subr.bf16.mxu0 0
    %1763 = vmatpush1.bf16.xpose.msra.mxu0 %v1746
    %1764 = vmatprep.subr.bf16.mxu0 0
    %1765 = vmatpush2.bf16.xpose.msra.mxu0 0
    %1766 = vmatprep.subr.bf16.mxu0 0
    %1767 = vmatpush2.bf16.xpose.msra.mxu0 0
    %1768 = vmatprep.subr.bf16.mxu0 0
    %1769 = vmatpush2.bf16.xpose.msra.mxu0 0
    %1770 = vmatprep.subr.bf16.mxu0 0
    %1771 = vmatpush2.bf16.xpose.msra.mxu0 0
    %1772 = vmatprep.subr.bf16.mxu0 0
    %1773 = vmatpush2.bf16.xpose.msra.mxu0 0
    %1774 = vmatprep.subr.bf16.mxu0 0
    %1775 = vmatpush2.bf16.xpose.msra.mxu0 0
    %1776 = vmatprep.subr.bf16.mxu0 0
    %1777 = vmatpush2.bf16.xpose.msra.mxu0 0
    %1778 = vmatprep.subr.bf16.mxu0 0
    %1779 = vmatpush2.bf16.xpose.msra.mxu0 0
    %1780 = vmatprep.mubr.bf16.mxu0 0
    %1781 = vmatmul.mubr.bf16.gmra.mxu0 %v1743
    %v1782 = vpop.f32.mrf.mxu0
    %v1783 = vadd.f32 0.0, %v1782
    %v1784 = vpop.f32.mrf.mxu0
    %v1785 = vpop.f32.mrf.mxu0
    %v1786 = vpop.f32.mrf.mxu0
    %1787 = vdwg.mxu0
    %v1789 = vsel %vm183, %v1741, 0
    %v1792 = vsel %vm183, %v1737, 0
    %1794 = vmatprep.subr.bf16.mxu0 0
    %1795 = vmatpush1.bf16.xpose.msra.mxu0 0
    %1796 = vmatprep.subr.bf16.mxu0 0
    %1797 = vmatpush1.bf16.xpose.msra.mxu0 0
    %1798 = vmatprep.subr.bf16.mxu0 0
    %1799 = vmatpush1.bf16.xpose.msra.mxu0 0
    %1800 = vmatprep.subr.bf16.mxu0 0
    %1801 = vmatpush1.bf16.xpose.msra.mxu0 0
    %1802 = vmatprep.subr.bf16.mxu0 0
    %1803 = vmatpush1.bf16.xpose.msra.mxu0 0
    %1804 = vmatprep.subr.bf16.mxu0 0
    %1805 = vmatpush1.bf16.xpose.msra.mxu0 0
    %1806 = vmatprep.subr.bf16.mxu0 0
    %1807 = vmatpush1.bf16.xpose.msra.mxu0 0
    %1808 = vmatprep.subr.bf16.mxu0 0
    %1809 = vmatpush1.bf16.xpose.msra.mxu0 %v1792
    %1810 = vmatprep.subr.bf16.mxu0 0
    %1811 = vmatpush2.bf16.xpose.msra.mxu0 0
    %1812 = vmatprep.subr.bf16.mxu0 0
    %1813 = vmatpush2.bf16.xpose.msra.mxu0 0
    %1814 = vmatprep.subr.bf16.mxu0 0
    %1815 = vmatpush2.bf16.xpose.msra.mxu0 0
    %1816 = vmatprep.subr.bf16.mxu0 0
    %1817 = vmatpush2.bf16.xpose.msra.mxu0 0
    %1818 = vmatprep.subr.bf16.mxu0 0
    %1819 = vmatpush2.bf16.xpose.msra.mxu0 0
    %1820 = vmatprep.subr.bf16.mxu0 0
    %1821 = vmatpush2.bf16.xpose.msra.mxu0 0
    %1822 = vmatprep.subr.bf16.mxu0 0
    %1823 = vmatpush2.bf16.xpose.msra.mxu0 0
    %1824 = vmatprep.subr.bf16.mxu0 0
    %1825 = vmatpush2.bf16.xpose.msra.mxu0 0
    %1826 = vmatprep.mubr.bf16.mxu0 0
    %1827 = vmatmul.mubr.bf16.gmra.mxu0 %v1789
    %v1828 = vpop.f32.mrf.mxu0
    %v1829 = vadd.f32 0.0, %v1828
    %v1830 = vpop.f32.mrf.mxu0
    %v1831 = vpop.f32.mrf.mxu0
    %v1832 = vpop.f32.mrf.mxu0
    %1833 = vdwg.mxu0
    %v1834 = vmul.f32 %v1783, 0.35355338
    %v1835 = vmul.f32 %v1829, 0.35355338
    %v1836 = vsel %vm456, %v1834, -inf
    %1837 = vmax.xlane.f32.xlu0 %v1836
    %v1838 = vpop.xlane.xlu0 %1837
    %v1839 = vsel %vm456, %v1835, -inf
    %1840 = vmax.xlane.f32.xlu0 %v1839
    %v1841 = vpop.xlane.xlu0 %1840
    %v1842 = vsub.f32 %v1834, %v1838
    %v1843 = vsub.f32 %v1835, %v1841
    %v1844 = vmul.f32 %v1842, 1.442695
    %v1845 = vpow.pop %v1844
    %v1846 = vmul.f32 %v1843, 1.442695
    %v1847 = vpow.pop %v1846
    %v1848 = vsel %vm456, %v1845, 0.0
    %1849 = vadd.xlane.f32.xlu0 %v1848
    %v1850 = vpop.xlane.xlu0 %1849
    %v1851 = vsel %vm456, %v1847, 0.0
    %1852 = vadd.xlane.f32.xlu0 %v1851
    %v1853 = vpop.xlane.xlu0 %1852
    %v1854 = vrcp.pop %v1850
    %v1855 = vrcp.pop %v1853
    %v1856 = vmul.f32 %v1845, %v1854
    %v1857 = vmul.f32 %v1847, %v1855
    %v1858 = vmul.f32 %v1730, %v79
    %v1859 = vmul.f32 %v1733, %v79
    %v1860 = vpack.c.bf16 %v1858, %v1858
    %v1861 = vpack.c.bf16 %v1859, %v1859
    %v1862 = vpack.c.bf16 %v1856, %v1856
    %v1863 = vpack.c.bf16 %v1857, %v1857
    %v1864 = vmul.f32 %v1598, %v84
    %v1865 = vmul.f32 %v1601, %v84
    %v1866 = vpack.c.bf16 %v1864, %v1864
    %v1867 = vpack.c.bf16 %v1865, %v1865
    %v1869 = vsel %vm183, %v1866, 0
    %1871 = vmatprep.subr.bf16.mxu0 0
    %1872 = vmatpush1.bf16.xpose.msra.mxu0 0
    %1873 = vmatprep.subr.bf16.mxu0 0
    %1874 = vmatpush1.bf16.xpose.msra.mxu0 0
    %1875 = vmatprep.subr.bf16.mxu0 0
    %1876 = vmatpush1.bf16.xpose.msra.mxu0 0
    %1877 = vmatprep.subr.bf16.mxu0 0
    %1878 = vmatpush1.bf16.xpose.msra.mxu0 0
    %1879 = vmatprep.subr.bf16.mxu0 0
    %1880 = vmatpush1.bf16.xpose.msra.mxu0 0
    %1881 = vmatprep.subr.bf16.mxu0 0
    %1882 = vmatpush1.bf16.xpose.msra.mxu0 0
    %1883 = vmatprep.subr.bf16.mxu0 0
    %1884 = vmatpush1.bf16.xpose.msra.mxu0 0
    %1885 = vmatprep.subr.bf16.mxu0 0
    %1886 = vmatpush1.bf16.xpose.msra.mxu0 %v1746
    %1887 = vmatprep.subr.bf16.mxu0 0
    %1888 = vmatpush2.bf16.xpose.msra.mxu0 0
    %1889 = vmatprep.subr.bf16.mxu0 0
    %1890 = vmatpush2.bf16.xpose.msra.mxu0 0
    %1891 = vmatprep.subr.bf16.mxu0 0
    %1892 = vmatpush2.bf16.xpose.msra.mxu0 0
    %1893 = vmatprep.subr.bf16.mxu0 0
    %1894 = vmatpush2.bf16.xpose.msra.mxu0 0
    %1895 = vmatprep.subr.bf16.mxu0 0
    %1896 = vmatpush2.bf16.xpose.msra.mxu0 0
    %1897 = vmatprep.subr.bf16.mxu0 0
    %1898 = vmatpush2.bf16.xpose.msra.mxu0 0
    %1899 = vmatprep.subr.bf16.mxu0 0
    %1900 = vmatpush2.bf16.xpose.msra.mxu0 0
    %1901 = vmatprep.subr.bf16.mxu0 0
    %1902 = vmatpush2.bf16.xpose.msra.mxu0 0
    %1903 = vmatprep.mubr.bf16.mxu0 0
    %1904 = vmatmul.mubr.bf16.gmra.mxu0 %v1869
    %v1905 = vpop.f32.mrf.mxu0
    %v1906 = vadd.f32 0.0, %v1905
    %v1907 = vpop.f32.mrf.mxu0
    %v1908 = vpop.f32.mrf.mxu0
    %v1909 = vpop.f32.mrf.mxu0
    %1910 = vdwg.mxu0
    %v1912 = vsel %vm183, %v1867, 0
    %1914 = vmatprep.subr.bf16.mxu0 0
    %1915 = vmatpush1.bf16.xpose.msra.mxu0 0
    %1916 = vmatprep.subr.bf16.mxu0 0
    %1917 = vmatpush1.bf16.xpose.msra.mxu0 0
    %1918 = vmatprep.subr.bf16.mxu0 0
    %1919 = vmatpush1.bf16.xpose.msra.mxu0 0
    %1920 = vmatprep.subr.bf16.mxu0 0
    %1921 = vmatpush1.bf16.xpose.msra.mxu0 0
    %1922 = vmatprep.subr.bf16.mxu0 0
    %1923 = vmatpush1.bf16.xpose.msra.mxu0 0
    %1924 = vmatprep.subr.bf16.mxu0 0
    %1925 = vmatpush1.bf16.xpose.msra.mxu0 0
    %1926 = vmatprep.subr.bf16.mxu0 0
    %1927 = vmatpush1.bf16.xpose.msra.mxu0 0
    %1928 = vmatprep.subr.bf16.mxu0 0
    %1929 = vmatpush1.bf16.xpose.msra.mxu0 %v1792
    %1930 = vmatprep.subr.bf16.mxu0 0
    %1931 = vmatpush2.bf16.xpose.msra.mxu0 0
    %1932 = vmatprep.subr.bf16.mxu0 0
    %1933 = vmatpush2.bf16.xpose.msra.mxu0 0
    %1934 = vmatprep.subr.bf16.mxu0 0
    %1935 = vmatpush2.bf16.xpose.msra.mxu0 0
    %1936 = vmatprep.subr.bf16.mxu0 0
    %1937 = vmatpush2.bf16.xpose.msra.mxu0 0
    %1938 = vmatprep.subr.bf16.mxu0 0
    %1939 = vmatpush2.bf16.xpose.msra.mxu0 0
    %1940 = vmatprep.subr.bf16.mxu0 0
    %1941 = vmatpush2.bf16.xpose.msra.mxu0 0
    %1942 = vmatprep.subr.bf16.mxu0 0
    %1943 = vmatpush2.bf16.xpose.msra.mxu0 0
    %1944 = vmatprep.subr.bf16.mxu0 0
    %1945 = vmatpush2.bf16.xpose.msra.mxu0 0
    %1946 = vmatprep.mubr.bf16.mxu0 0
    %1947 = vmatmul.mubr.bf16.gmra.mxu0 %v1912
    %v1948 = vpop.f32.mrf.mxu0
    %v1949 = vadd.f32 0.0, %v1948
    %v1950 = vpop.f32.mrf.mxu0
    %v1951 = vpop.f32.mrf.mxu0
    %v1952 = vpop.f32.mrf.mxu0
    %1953 = vdwg.mxu0
    %v1954 = vmul.f32 %v1906, 0.35355338
    %v1955 = vmul.f32 %v1949, 0.35355338
    %v1956 = vsel %vm456, %v1954, -inf
    %1957 = vmax.xlane.f32.xlu0 %v1956
    %v1958 = vpop.xlane.xlu0 %1957
    %v1959 = vsel %vm456, %v1955, -inf
    %1960 = vmax.xlane.f32.xlu0 %v1959
    %v1961 = vpop.xlane.xlu0 %1960
    %v1962 = vsub.f32 %v1954, %v1958
    %v1963 = vsub.f32 %v1955, %v1961
    %v1964 = vmul.f32 %v1962, 1.442695
    %v1965 = vpow.pop %v1964
    %v1966 = vmul.f32 %v1963, 1.442695
    %v1967 = vpow.pop %v1966
    %v1968 = vsel %vm456, %v1965, 0.0
    %1969 = vadd.xlane.f32.xlu0 %v1968
    %v1970 = vpop.xlane.xlu0 %1969
    %v1971 = vsel %vm456, %v1967, 0.0
    %1972 = vadd.xlane.f32.xlu0 %v1971
    %v1973 = vpop.xlane.xlu0 %1972
    %v1974 = vrcp.pop %v1970
    %v1975 = vrcp.pop %v1973
    %v1976 = vmul.f32 %v1965, %v1974
    %v1977 = vmul.f32 %v1967, %v1975
    %v1978 = vmul.f32 %v1730, %v84
    %v1979 = vmul.f32 %v1733, %v84
    %v1980 = vpack.c.bf16 %v1978, %v1978
    %v1981 = vpack.c.bf16 %v1979, %v1979
    %v1982 = vpack.c.bf16 %v1976, %v1976
    %v1983 = vpack.c.bf16 %v1977, %v1977
    %v1985 = vsel %vm456, %v1982, 0
    %v1988 = vsel %vm608, %v1980, 0
    %1990 = vmatprep.subr.bf16.mxu0 0
    %1991 = vmatpush1.bf16.msra.mxu0 0
    %1992 = vmatprep.subr.bf16.mxu0 0
    %1993 = vmatpush1.bf16.msra.mxu0 0
    %1994 = vmatprep.subr.bf16.mxu0 0
    %1995 = vmatpush1.bf16.msra.mxu0 0
    %1996 = vmatprep.subr.bf16.mxu0 0
    %1997 = vmatpush1.bf16.msra.mxu0 0
    %1998 = vmatprep.subr.bf16.mxu0 0
    %1999 = vmatpush1.bf16.msra.mxu0 0
    %2000 = vmatprep.subr.bf16.mxu0 0
    %2001 = vmatpush1.bf16.msra.mxu0 0
    %2002 = vmatprep.subr.bf16.mxu0 0
    %2003 = vmatpush1.bf16.msra.mxu0 0
    %2004 = vmatprep.subr.bf16.mxu0 0
    %2005 = vmatpush1.bf16.msra.mxu0 %v1988
    %2006 = vmatprep.subr.bf16.mxu0 0
    %2007 = vmatpush2.bf16.msra.mxu0 0
    %2008 = vmatprep.subr.bf16.mxu0 0
    %2009 = vmatpush2.bf16.msra.mxu0 0
    %2010 = vmatprep.subr.bf16.mxu0 0
    %2011 = vmatpush2.bf16.msra.mxu0 0
    %2012 = vmatprep.subr.bf16.mxu0 0
    %2013 = vmatpush2.bf16.msra.mxu0 0
    %2014 = vmatprep.subr.bf16.mxu0 0
    %2015 = vmatpush2.bf16.msra.mxu0 0
    %2016 = vmatprep.subr.bf16.mxu0 0
    %2017 = vmatpush2.bf16.msra.mxu0 0
    %2018 = vmatprep.subr.bf16.mxu0 0
    %2019 = vmatpush2.bf16.msra.mxu0 0
    %2020 = vmatprep.subr.bf16.mxu0 0
    %2021 = vmatpush2.bf16.msra.mxu0 0
    %2022 = vmatprep.mubr.bf16.mxu0 0
    %2023 = vmatmul.mubr.bf16.gmra.mxu0 %v1985
    %v2024 = vpop.f32.mrf.mxu0
    %v2025 = vadd.f32 0.0, %v2024
    %v2026 = vpop.f32.mrf.mxu0
    %v2027 = vpop.f32.mrf.mxu0
    %v2028 = vpop.f32.mrf.mxu0
    %2029 = vdwg.mxu0
    %v2031 = vsel %vm456, %v1983, 0
    %v2034 = vsel %vm608, %v1981, 0
    %2036 = vmatprep.subr.bf16.mxu0 0
    %2037 = vmatpush1.bf16.msra.mxu0 0
    %2038 = vmatprep.subr.bf16.mxu0 0
    %2039 = vmatpush1.bf16.msra.mxu0 0
    %2040 = vmatprep.subr.bf16.mxu0 0
    %2041 = vmatpush1.bf16.msra.mxu0 0
    %2042 = vmatprep.subr.bf16.mxu0 0
    %2043 = vmatpush1.bf16.msra.mxu0 0
    %2044 = vmatprep.subr.bf16.mxu0 0
    %2045 = vmatpush1.bf16.msra.mxu0 0
    %2046 = vmatprep.subr.bf16.mxu0 0
    %2047 = vmatpush1.bf16.msra.mxu0 0
    %2048 = vmatprep.subr.bf16.mxu0 0
    %2049 = vmatpush1.bf16.msra.mxu0 0
    %2050 = vmatprep.subr.bf16.mxu0 0
    %2051 = vmatpush1.bf16.msra.mxu0 %v2034
    %2052 = vmatprep.subr.bf16.mxu0 0
    %2053 = vmatpush2.bf16.msra.mxu0 0
    %2054 = vmatprep.subr.bf16.mxu0 0
    %2055 = vmatpush2.bf16.msra.mxu0 0
    %2056 = vmatprep.subr.bf16.mxu0 0
    %2057 = vmatpush2.bf16.msra.mxu0 0
    %2058 = vmatprep.subr.bf16.mxu0 0
    %2059 = vmatpush2.bf16.msra.mxu0 0
    %2060 = vmatprep.subr.bf16.mxu0 0
    %2061 = vmatpush2.bf16.msra.mxu0 0
    %2062 = vmatprep.subr.bf16.mxu0 0
    %2063 = vmatpush2.bf16.msra.mxu0 0
    %2064 = vmatprep.subr.bf16.mxu0 0
    %2065 = vmatpush2.bf16.msra.mxu0 0
    %2066 = vmatprep.subr.bf16.mxu0 0
    %2067 = vmatpush2.bf16.msra.mxu0 0
    %2068 = vmatprep.mubr.bf16.mxu0 0
    %2069 = vmatmul.mubr.bf16.gmra.mxu0 %v2031
    %v2070 = vpop.f32.mrf.mxu0
    %v2071 = vadd.f32 0.0, %v2070
    %v2072 = vpop.f32.mrf.mxu0
    %v2073 = vpop.f32.mrf.mxu0
    %v2074 = vpop.f32.mrf.mxu0
    %2075 = vdwg.mxu0
    %v2077 = vsel %vm456, %v1862, 0
    %v2080 = vsel %vm608, %v1860, 0
    %2082 = vmatprep.subr.bf16.mxu0 0
    %2083 = vmatpush1.bf16.msra.mxu0 0
    %2084 = vmatprep.subr.bf16.mxu0 0
    %2085 = vmatpush1.bf16.msra.mxu0 0
    %2086 = vmatprep.subr.bf16.mxu0 0
    %2087 = vmatpush1.bf16.msra.mxu0 0
    %2088 = vmatprep.subr.bf16.mxu0 0
    %2089 = vmatpush1.bf16.msra.mxu0 0
    %2090 = vmatprep.subr.bf16.mxu0 0
    %2091 = vmatpush1.bf16.msra.mxu0 0
    %2092 = vmatprep.subr.bf16.mxu0 0
    %2093 = vmatpush1.bf16.msra.mxu0 0
    %2094 = vmatprep.subr.bf16.mxu0 0
    %2095 = vmatpush1.bf16.msra.mxu0 0
    %2096 = vmatprep.subr.bf16.mxu0 0
    %2097 = vmatpush1.bf16.msra.mxu0 %v2080
    %2098 = vmatprep.subr.bf16.mxu0 0
    %2099 = vmatpush2.bf16.msra.mxu0 0
    %2100 = vmatprep.subr.bf16.mxu0 0
    %2101 = vmatpush2.bf16.msra.mxu0 0
    %2102 = vmatprep.subr.bf16.mxu0 0
    %2103 = vmatpush2.bf16.msra.mxu0 0
    %2104 = vmatprep.subr.bf16.mxu0 0
    %2105 = vmatpush2.bf16.msra.mxu0 0
    %2106 = vmatprep.subr.bf16.mxu0 0
    %2107 = vmatpush2.bf16.msra.mxu0 0
    %2108 = vmatprep.subr.bf16.mxu0 0
    %2109 = vmatpush2.bf16.msra.mxu0 0
    %2110 = vmatprep.subr.bf16.mxu0 0
    %2111 = vmatpush2.bf16.msra.mxu0 0
    %2112 = vmatprep.subr.bf16.mxu0 0
    %2113 = vmatpush2.bf16.msra.mxu0 0
    %2114 = vmatprep.mubr.bf16.mxu0 0
    %2115 = vmatmul.mubr.bf16.gmra.mxu0 %v2077
    %v2116 = vpop.f32.mrf.mxu0
    %v2117 = vadd.f32 %v2025, %v2116
    %v2118 = vpop.f32.mrf.mxu0
    %v2119 = vpop.f32.mrf.mxu0
    %v2120 = vpop.f32.mrf.mxu0
    %2121 = vdwg.mxu0
    %v2123 = vsel %vm456, %v1863, 0
    %v2126 = vsel %vm608, %v1861, 0
    %2128 = vmatprep.subr.bf16.mxu0 0
    %2129 = vmatpush1.bf16.msra.mxu0 0
    %2130 = vmatprep.subr.bf16.mxu0 0
    %2131 = vmatpush1.bf16.msra.mxu0 0
    %2132 = vmatprep.subr.bf16.mxu0 0
    %2133 = vmatpush1.bf16.msra.mxu0 0
    %2134 = vmatprep.subr.bf16.mxu0 0
    %2135 = vmatpush1.bf16.msra.mxu0 0
    %2136 = vmatprep.subr.bf16.mxu0 0
    %2137 = vmatpush1.bf16.msra.mxu0 0
    %2138 = vmatprep.subr.bf16.mxu0 0
    %2139 = vmatpush1.bf16.msra.mxu0 0
    %2140 = vmatprep.subr.bf16.mxu0 0
    %2141 = vmatpush1.bf16.msra.mxu0 0
    %2142 = vmatprep.subr.bf16.mxu0 0
    %2143 = vmatpush1.bf16.msra.mxu0 %v2126
    %2144 = vmatprep.subr.bf16.mxu0 0
    %2145 = vmatpush2.bf16.msra.mxu0 0
    %2146 = vmatprep.subr.bf16.mxu0 0
    %2147 = vmatpush2.bf16.msra.mxu0 0
    %2148 = vmatprep.subr.bf16.mxu0 0
    %2149 = vmatpush2.bf16.msra.mxu0 0
    %2150 = vmatprep.subr.bf16.mxu0 0
    %2151 = vmatpush2.bf16.msra.mxu0 0
    %2152 = vmatprep.subr.bf16.mxu0 0
    %2153 = vmatpush2.bf16.msra.mxu0 0
    %2154 = vmatprep.subr.bf16.mxu0 0
    %2155 = vmatpush2.bf16.msra.mxu0 0
    %2156 = vmatprep.subr.bf16.mxu0 0
    %2157 = vmatpush2.bf16.msra.mxu0 0
    %2158 = vmatprep.subr.bf16.mxu0 0
    %2159 = vmatpush2.bf16.msra.mxu0 0
    %2160 = vmatprep.mubr.bf16.mxu0 0
    %2161 = vmatmul.mubr.bf16.gmra.mxu0 %v2123
    %v2162 = vpop.f32.mrf.mxu0
    %v2163 = vadd.f32 %v2071, %v2162
    %v2164 = vpop.f32.mrf.mxu0
    %v2165 = vpop.f32.mrf.mxu0
    %v2166 = vpop.f32.mrf.mxu0
    %2167 = vdwg.mxu0
    %v2168 = vmul.f32 %v1598, %v89
    %v2169 = vmul.f32 %v1601, %v89
    %v2170 = vpack.c.bf16 %v2168, %v2168
    %v2171 = vpack.c.bf16 %v2169, %v2169
    %v2173 = vsel %vm183, %v2170, 0
    %2175 = vmatprep.subr.bf16.mxu0 0
    %2176 = vmatpush1.bf16.xpose.msra.mxu0 0
    %2177 = vmatprep.subr.bf16.mxu0 0
    %2178 = vmatpush1.bf16.xpose.msra.mxu0 0
    %2179 = vmatprep.subr.bf16.mxu0 0
    %2180 = vmatpush1.bf16.xpose.msra.mxu0 0
    %2181 = vmatprep.subr.bf16.mxu0 0
    %2182 = vmatpush1.bf16.xpose.msra.mxu0 0
    %2183 = vmatprep.subr.bf16.mxu0 0
    %2184 = vmatpush1.bf16.xpose.msra.mxu0 0
    %2185 = vmatprep.subr.bf16.mxu0 0
    %2186 = vmatpush1.bf16.xpose.msra.mxu0 0
    %2187 = vmatprep.subr.bf16.mxu0 0
    %2188 = vmatpush1.bf16.xpose.msra.mxu0 0
    %2189 = vmatprep.subr.bf16.mxu0 0
    %2190 = vmatpush1.bf16.xpose.msra.mxu0 %v1746
    %2191 = vmatprep.subr.bf16.mxu0 0
    %2192 = vmatpush2.bf16.xpose.msra.mxu0 0
    %2193 = vmatprep.subr.bf16.mxu0 0
    %2194 = vmatpush2.bf16.xpose.msra.mxu0 0
    %2195 = vmatprep.subr.bf16.mxu0 0
    %2196 = vmatpush2.bf16.xpose.msra.mxu0 0
    %2197 = vmatprep.subr.bf16.mxu0 0
    %2198 = vmatpush2.bf16.xpose.msra.mxu0 0
    %2199 = vmatprep.subr.bf16.mxu0 0
    %2200 = vmatpush2.bf16.xpose.msra.mxu0 0
    %2201 = vmatprep.subr.bf16.mxu0 0
    %2202 = vmatpush2.bf16.xpose.msra.mxu0 0
    %2203 = vmatprep.subr.bf16.mxu0 0
    %2204 = vmatpush2.bf16.xpose.msra.mxu0 0
    %2205 = vmatprep.subr.bf16.mxu0 0
    %2206 = vmatpush2.bf16.xpose.msra.mxu0 0
    %2207 = vmatprep.mubr.bf16.mxu0 0
    %2208 = vmatmul.mubr.bf16.gmra.mxu0 %v2173
    %v2209 = vpop.f32.mrf.mxu0
    %v2210 = vadd.f32 0.0, %v2209
    %v2211 = vpop.f32.mrf.mxu0
    %v2212 = vpop.f32.mrf.mxu0
    %v2213 = vpop.f32.mrf.mxu0
    %2214 = vdwg.mxu0
    %v2216 = vsel %vm183, %v2171, 0
    %2218 = vmatprep.subr.bf16.mxu0 0
    %2219 = vmatpush1.bf16.xpose.msra.mxu0 0
    %2220 = vmatprep.subr.bf16.mxu0 0
    %2221 = vmatpush1.bf16.xpose.msra.mxu0 0
    %2222 = vmatprep.subr.bf16.mxu0 0
    %2223 = vmatpush1.bf16.xpose.msra.mxu0 0
    %2224 = vmatprep.subr.bf16.mxu0 0
    %2225 = vmatpush1.bf16.xpose.msra.mxu0 0
    %2226 = vmatprep.subr.bf16.mxu0 0
    %2227 = vmatpush1.bf16.xpose.msra.mxu0 0
    %2228 = vmatprep.subr.bf16.mxu0 0
    %2229 = vmatpush1.bf16.xpose.msra.mxu0 0
    %2230 = vmatprep.subr.bf16.mxu0 0
    %2231 = vmatpush1.bf16.xpose.msra.mxu0 0
    %2232 = vmatprep.subr.bf16.mxu0 0
    %2233 = vmatpush1.bf16.xpose.msra.mxu0 %v1792
    %2234 = vmatprep.subr.bf16.mxu0 0
    %2235 = vmatpush2.bf16.xpose.msra.mxu0 0
    %2236 = vmatprep.subr.bf16.mxu0 0
    %2237 = vmatpush2.bf16.xpose.msra.mxu0 0
    %2238 = vmatprep.subr.bf16.mxu0 0
    %2239 = vmatpush2.bf16.xpose.msra.mxu0 0
    %2240 = vmatprep.subr.bf16.mxu0 0
    %2241 = vmatpush2.bf16.xpose.msra.mxu0 0
    %2242 = vmatprep.subr.bf16.mxu0 0
    %2243 = vmatpush2.bf16.xpose.msra.mxu0 0
    %2244 = vmatprep.subr.bf16.mxu0 0
    %2245 = vmatpush2.bf16.xpose.msra.mxu0 0
    %2246 = vmatprep.subr.bf16.mxu0 0
    %2247 = vmatpush2.bf16.xpose.msra.mxu0 0
    %2248 = vmatprep.subr.bf16.mxu0 0
    %2249 = vmatpush2.bf16.xpose.msra.mxu0 0
    %2250 = vmatprep.mubr.bf16.mxu0 0
    %2251 = vmatmul.mubr.bf16.gmra.mxu0 %v2216
    %v2252 = vpop.f32.mrf.mxu0
    %v2253 = vadd.f32 0.0, %v2252
    %v2254 = vpop.f32.mrf.mxu0
    %v2255 = vpop.f32.mrf.mxu0
    %v2256 = vpop.f32.mrf.mxu0
    %2257 = vdwg.mxu0
    %v2258 = vmul.f32 %v2210, 0.35355338
    %v2259 = vmul.f32 %v2253, 0.35355338
    %v2260 = vsel %vm456, %v2258, -inf
    %2261 = vmax.xlane.f32.xlu0 %v2260
    %v2262 = vpop.xlane.xlu0 %2261
    %v2263 = vsel %vm456, %v2259, -inf
    %2264 = vmax.xlane.f32.xlu0 %v2263
    %v2265 = vpop.xlane.xlu0 %2264
    %v2266 = vsub.f32 %v2258, %v2262
    %v2267 = vsub.f32 %v2259, %v2265
    %v2268 = vmul.f32 %v2266, 1.442695
    %v2269 = vpow.pop %v2268
    %v2270 = vmul.f32 %v2267, 1.442695
    %v2271 = vpow.pop %v2270
    %v2272 = vsel %vm456, %v2269, 0.0
    %2273 = vadd.xlane.f32.xlu0 %v2272
    %v2274 = vpop.xlane.xlu0 %2273
    %v2275 = vsel %vm456, %v2271, 0.0
    %2276 = vadd.xlane.f32.xlu0 %v2275
    %v2277 = vpop.xlane.xlu0 %2276
    %v2278 = vrcp.pop %v2274
    %v2279 = vrcp.pop %v2277
    %v2280 = vmul.f32 %v2269, %v2278
    %v2281 = vmul.f32 %v2271, %v2279
    %v2282 = vmul.f32 %v1730, %v89
    %v2283 = vmul.f32 %v1733, %v89
    %v2284 = vpack.c.bf16 %v2282, %v2282
    %v2285 = vpack.c.bf16 %v2283, %v2283
    %v2286 = vpack.c.bf16 %v2280, %v2280
    %v2287 = vpack.c.bf16 %v2281, %v2281
    %v2289 = vsel %vm456, %v2286, 0
    %v2292 = vsel %vm608, %v2284, 0
    %2294 = vmatprep.subr.bf16.mxu0 0
    %2295 = vmatpush1.bf16.msra.mxu0 0
    %2296 = vmatprep.subr.bf16.mxu0 0
    %2297 = vmatpush1.bf16.msra.mxu0 0
    %2298 = vmatprep.subr.bf16.mxu0 0
    %2299 = vmatpush1.bf16.msra.mxu0 0
    %2300 = vmatprep.subr.bf16.mxu0 0
    %2301 = vmatpush1.bf16.msra.mxu0 0
    %2302 = vmatprep.subr.bf16.mxu0 0
    %2303 = vmatpush1.bf16.msra.mxu0 0
    %2304 = vmatprep.subr.bf16.mxu0 0
    %2305 = vmatpush1.bf16.msra.mxu0 0
    %2306 = vmatprep.subr.bf16.mxu0 0
    %2307 = vmatpush1.bf16.msra.mxu0 0
    %2308 = vmatprep.subr.bf16.mxu0 0
    %2309 = vmatpush1.bf16.msra.mxu0 %v2292
    %2310 = vmatprep.subr.bf16.mxu0 0
    %2311 = vmatpush2.bf16.msra.mxu0 0
    %2312 = vmatprep.subr.bf16.mxu0 0
    %2313 = vmatpush2.bf16.msra.mxu0 0
    %2314 = vmatprep.subr.bf16.mxu0 0
    %2315 = vmatpush2.bf16.msra.mxu0 0
    %2316 = vmatprep.subr.bf16.mxu0 0
    %2317 = vmatpush2.bf16.msra.mxu0 0
    %2318 = vmatprep.subr.bf16.mxu0 0
    %2319 = vmatpush2.bf16.msra.mxu0 0
    %2320 = vmatprep.subr.bf16.mxu0 0
    %2321 = vmatpush2.bf16.msra.mxu0 0
    %2322 = vmatprep.subr.bf16.mxu0 0
    %2323 = vmatpush2.bf16.msra.mxu0 0
    %2324 = vmatprep.subr.bf16.mxu0 0
    %2325 = vmatpush2.bf16.msra.mxu0 0
    %2326 = vmatprep.mubr.bf16.mxu0 0
    %2327 = vmatmul.mubr.bf16.gmra.mxu0 %v2289
    %v2328 = vpop.f32.mrf.mxu0
    %v2329 = vadd.f32 0.0, %v2328
    %v2330 = vpop.f32.mrf.mxu0
    %v2331 = vpop.f32.mrf.mxu0
    %v2332 = vpop.f32.mrf.mxu0
    %2333 = vdwg.mxu0
    %v2335 = vsel %vm456, %v2287, 0
    %v2338 = vsel %vm608, %v2285, 0
    %2340 = vmatprep.subr.bf16.mxu0 0
    %2341 = vmatpush1.bf16.msra.mxu0 0
    %2342 = vmatprep.subr.bf16.mxu0 0
    %2343 = vmatpush1.bf16.msra.mxu0 0
    %2344 = vmatprep.subr.bf16.mxu0 0
    %2345 = vmatpush1.bf16.msra.mxu0 0
    %2346 = vmatprep.subr.bf16.mxu0 0
    %2347 = vmatpush1.bf16.msra.mxu0 0
    %2348 = vmatprep.subr.bf16.mxu0 0
    %2349 = vmatpush1.bf16.msra.mxu0 0
    %2350 = vmatprep.subr.bf16.mxu0 0
    %2351 = vmatpush1.bf16.msra.mxu0 0
    %2352 = vmatprep.subr.bf16.mxu0 0
    %2353 = vmatpush1.bf16.msra.mxu0 0
    %2354 = vmatprep.subr.bf16.mxu0 0
    %2355 = vmatpush1.bf16.msra.mxu0 %v2338
    %2356 = vmatprep.subr.bf16.mxu0 0
    %2357 = vmatpush2.bf16.msra.mxu0 0
    %2358 = vmatprep.subr.bf16.mxu0 0
    %2359 = vmatpush2.bf16.msra.mxu0 0
    %2360 = vmatprep.subr.bf16.mxu0 0
    %2361 = vmatpush2.bf16.msra.mxu0 0
    %2362 = vmatprep.subr.bf16.mxu0 0
    %2363 = vmatpush2.bf16.msra.mxu0 0
    %2364 = vmatprep.subr.bf16.mxu0 0
    %2365 = vmatpush2.bf16.msra.mxu0 0
    %2366 = vmatprep.subr.bf16.mxu0 0
    %2367 = vmatpush2.bf16.msra.mxu0 0
    %2368 = vmatprep.subr.bf16.mxu0 0
    %2369 = vmatpush2.bf16.msra.mxu0 0
    %2370 = vmatprep.subr.bf16.mxu0 0
    %2371 = vmatpush2.bf16.msra.mxu0 0
    %2372 = vmatprep.mubr.bf16.mxu0 0
    %2373 = vmatmul.mubr.bf16.gmra.mxu0 %v2335
    %v2374 = vpop.f32.mrf.mxu0
    %v2375 = vadd.f32 0.0, %v2374
    %v2376 = vpop.f32.mrf.mxu0
    %v2377 = vpop.f32.mrf.mxu0
    %v2378 = vpop.f32.mrf.mxu0
    %2379 = vdwg.mxu0
    %v2380 = vadd.f32 %v2117, %v2329
    %v2381 = vadd.f32 %v2163, %v2375
    %v2382 = vmul.f32 %v1598, %v94
    %v2383 = vmul.f32 %v1601, %v94
    %v2384 = vpack.c.bf16 %v2382, %v2382
    %v2385 = vpack.c.bf16 %v2383, %v2383
    %v2387 = vsel %vm183, %v2384, 0
    %2389 = vmatprep.subr.bf16.mxu0 0
    %2390 = vmatpush1.bf16.xpose.msra.mxu0 0
    %2391 = vmatprep.subr.bf16.mxu0 0
    %2392 = vmatpush1.bf16.xpose.msra.mxu0 0
    %2393 = vmatprep.subr.bf16.mxu0 0
    %2394 = vmatpush1.bf16.xpose.msra.mxu0 0
    %2395 = vmatprep.subr.bf16.mxu0 0
    %2396 = vmatpush1.bf16.xpose.msra.mxu0 0
    %2397 = vmatprep.subr.bf16.mxu0 0
    %2398 = vmatpush1.bf16.xpose.msra.mxu0 0
    %2399 = vmatprep.subr.bf16.mxu0 0
    %2400 = vmatpush1.bf16.xpose.msra.mxu0 0
    %2401 = vmatprep.subr.bf16.mxu0 0
    %2402 = vmatpush1.bf16.xpose.msra.mxu0 0
    %2403 = vmatprep.subr.bf16.mxu0 0
    %2404 = vmatpush1.bf16.xpose.msra.mxu0 %v1746
    %2405 = vmatprep.subr.bf16.mxu0 0
    %2406 = vmatpush2.bf16.xpose.msra.mxu0 0
    %2407 = vmatprep.subr.bf16.mxu0 0
    %2408 = vmatpush2.bf16.xpose.msra.mxu0 0
    %2409 = vmatprep.subr.bf16.mxu0 0
    %2410 = vmatpush2.bf16.xpose.msra.mxu0 0
    %2411 = vmatprep.subr.bf16.mxu0 0
    %2412 = vmatpush2.bf16.xpose.msra.mxu0 0
    %2413 = vmatprep.subr.bf16.mxu0 0
    %2414 = vmatpush2.bf16.xpose.msra.mxu0 0
    %2415 = vmatprep.subr.bf16.mxu0 0
    %2416 = vmatpush2.bf16.xpose.msra.mxu0 0
    %2417 = vmatprep.subr.bf16.mxu0 0
    %2418 = vmatpush2.bf16.xpose.msra.mxu0 0
    %2419 = vmatprep.subr.bf16.mxu0 0
    %2420 = vmatpush2.bf16.xpose.msra.mxu0 0
    %2421 = vmatprep.mubr.bf16.mxu0 0
    %2422 = vmatmul.mubr.bf16.gmra.mxu0 %v2387
    %v2423 = vpop.f32.mrf.mxu0
    %v2424 = vadd.f32 0.0, %v2423
    %v2425 = vpop.f32.mrf.mxu0
    %v2426 = vpop.f32.mrf.mxu0
    %v2427 = vpop.f32.mrf.mxu0
    %2428 = vdwg.mxu0
    %v2430 = vsel %vm183, %v2385, 0
    %2432 = vmatprep.subr.bf16.mxu0 0
    %2433 = vmatpush1.bf16.xpose.msra.mxu0 0
    %2434 = vmatprep.subr.bf16.mxu0 0
    %2435 = vmatpush1.bf16.xpose.msra.mxu0 0
    %2436 = vmatprep.subr.bf16.mxu0 0
    %2437 = vmatpush1.bf16.xpose.msra.mxu0 0
    %2438 = vmatprep.subr.bf16.mxu0 0
    %2439 = vmatpush1.bf16.xpose.msra.mxu0 0
    %2440 = vmatprep.subr.bf16.mxu0 0
    %2441 = vmatpush1.bf16.xpose.msra.mxu0 0
    %2442 = vmatprep.subr.bf16.mxu0 0
    %2443 = vmatpush1.bf16.xpose.msra.mxu0 0
    %2444 = vmatprep.subr.bf16.mxu0 0
    %2445 = vmatpush1.bf16.xpose.msra.mxu0 0
    %2446 = vmatprep.subr.bf16.mxu0 0
    %2447 = vmatpush1.bf16.xpose.msra.mxu0 %v1792
    %2448 = vmatprep.subr.bf16.mxu0 0
    %2449 = vmatpush2.bf16.xpose.msra.mxu0 0
    %2450 = vmatprep.subr.bf16.mxu0 0
    %2451 = vmatpush2.bf16.xpose.msra.mxu0 0
    %2452 = vmatprep.subr.bf16.mxu0 0
    %2453 = vmatpush2.bf16.xpose.msra.mxu0 0
    %2454 = vmatprep.subr.bf16.mxu0 0
    %2455 = vmatpush2.bf16.xpose.msra.mxu0 0
    %2456 = vmatprep.subr.bf16.mxu0 0
    %2457 = vmatpush2.bf16.xpose.msra.mxu0 0
    %2458 = vmatprep.subr.bf16.mxu0 0
    %2459 = vmatpush2.bf16.xpose.msra.mxu0 0
    %2460 = vmatprep.subr.bf16.mxu0 0
    %2461 = vmatpush2.bf16.xpose.msra.mxu0 0
    %2462 = vmatprep.subr.bf16.mxu0 0
    %2463 = vmatpush2.bf16.xpose.msra.mxu0 0
    %2464 = vmatprep.mubr.bf16.mxu0 0
    %2465 = vmatmul.mubr.bf16.gmra.mxu0 %v2430
    %v2466 = vpop.f32.mrf.mxu0
    %v2467 = vadd.f32 0.0, %v2466
    %v2468 = vpop.f32.mrf.mxu0
    %v2469 = vpop.f32.mrf.mxu0
    %v2470 = vpop.f32.mrf.mxu0
    %2471 = vdwg.mxu0
    %v2472 = vmul.f32 %v2424, 0.35355338
    %v2473 = vmul.f32 %v2467, 0.35355338
    %v2474 = vsel %vm456, %v2472, -inf
    %2475 = vmax.xlane.f32.xlu0 %v2474
    %v2476 = vpop.xlane.xlu0 %2475
    %v2477 = vsel %vm456, %v2473, -inf
    %2478 = vmax.xlane.f32.xlu0 %v2477
    %v2479 = vpop.xlane.xlu0 %2478
    %v2480 = vsub.f32 %v2472, %v2476
    %v2481 = vsub.f32 %v2473, %v2479
    %v2482 = vmul.f32 %v2480, 1.442695
    %v2483 = vpow.pop %v2482
    %v2484 = vmul.f32 %v2481, 1.442695
    %v2485 = vpow.pop %v2484
    %v2486 = vsel %vm456, %v2483, 0.0
    %2487 = vadd.xlane.f32.xlu0 %v2486
    %v2488 = vpop.xlane.xlu0 %2487
    %v2489 = vsel %vm456, %v2485, 0.0
    %2490 = vadd.xlane.f32.xlu0 %v2489
    %v2491 = vpop.xlane.xlu0 %2490
    %v2492 = vrcp.pop %v2488
    %v2493 = vrcp.pop %v2491
    %v2494 = vmul.f32 %v2483, %v2492
    %v2495 = vmul.f32 %v2485, %v2493
    %v2496 = vmul.f32 %v1730, %v94
    %v2497 = vmul.f32 %v1733, %v94
    %v2498 = vpack.c.bf16 %v2496, %v2496
    %v2499 = vpack.c.bf16 %v2497, %v2497
    %v2500 = vpack.c.bf16 %v2494, %v2494
    %v2501 = vpack.c.bf16 %v2495, %v2495
    %v2503 = vsel %vm456, %v2500, 0
    %v2506 = vsel %vm608, %v2498, 0
    %2508 = vmatprep.subr.bf16.mxu0 0
    %2509 = vmatpush1.bf16.msra.mxu0 0
    %2510 = vmatprep.subr.bf16.mxu0 0
    %2511 = vmatpush1.bf16.msra.mxu0 0
    %2512 = vmatprep.subr.bf16.mxu0 0
    %2513 = vmatpush1.bf16.msra.mxu0 0
    %2514 = vmatprep.subr.bf16.mxu0 0
    %2515 = vmatpush1.bf16.msra.mxu0 0
    %2516 = vmatprep.subr.bf16.mxu0 0
    %2517 = vmatpush1.bf16.msra.mxu0 0
    %2518 = vmatprep.subr.bf16.mxu0 0
    %2519 = vmatpush1.bf16.msra.mxu0 0
    %2520 = vmatprep.subr.bf16.mxu0 0
    %2521 = vmatpush1.bf16.msra.mxu0 0
    %2522 = vmatprep.subr.bf16.mxu0 0
    %2523 = vmatpush1.bf16.msra.mxu0 %v2506
    %2524 = vmatprep.subr.bf16.mxu0 0
    %2525 = vmatpush2.bf16.msra.mxu0 0
    %2526 = vmatprep.subr.bf16.mxu0 0
    %2527 = vmatpush2.bf16.msra.mxu0 0
    %2528 = vmatprep.subr.bf16.mxu0 0
    %2529 = vmatpush2.bf16.msra.mxu0 0
    %2530 = vmatprep.subr.bf16.mxu0 0
    %2531 = vmatpush2.bf16.msra.mxu0 0
    %2532 = vmatprep.subr.bf16.mxu0 0
    %2533 = vmatpush2.bf16.msra.mxu0 0
    %2534 = vmatprep.subr.bf16.mxu0 0
    %2535 = vmatpush2.bf16.msra.mxu0 0
    %2536 = vmatprep.subr.bf16.mxu0 0
    %2537 = vmatpush2.bf16.msra.mxu0 0
    %2538 = vmatprep.subr.bf16.mxu0 0
    %2539 = vmatpush2.bf16.msra.mxu0 0
    %2540 = vmatprep.mubr.bf16.mxu0 0
    %2541 = vmatmul.mubr.bf16.gmra.mxu0 %v2503
    %v2542 = vpop.f32.mrf.mxu0
    %v2543 = vadd.f32 0.0, %v2542
    %v2544 = vpop.f32.mrf.mxu0
    %v2545 = vpop.f32.mrf.mxu0
    %v2546 = vpop.f32.mrf.mxu0
    %2547 = vdwg.mxu0
    %v2549 = vsel %vm456, %v2501, 0
    %v2552 = vsel %vm608, %v2499, 0
    %2554 = vmatprep.subr.bf16.mxu0 0
    %2555 = vmatpush1.bf16.msra.mxu0 0
    %2556 = vmatprep.subr.bf16.mxu0 0
    %2557 = vmatpush1.bf16.msra.mxu0 0
    %2558 = vmatprep.subr.bf16.mxu0 0
    %2559 = vmatpush1.bf16.msra.mxu0 0
    %2560 = vmatprep.subr.bf16.mxu0 0
    %2561 = vmatpush1.bf16.msra.mxu0 0
    %2562 = vmatprep.subr.bf16.mxu0 0
    %2563 = vmatpush1.bf16.msra.mxu0 0
    %2564 = vmatprep.subr.bf16.mxu0 0
    %2565 = vmatpush1.bf16.msra.mxu0 0
    %2566 = vmatprep.subr.bf16.mxu0 0
    %2567 = vmatpush1.bf16.msra.mxu0 0
    %2568 = vmatprep.subr.bf16.mxu0 0
    %2569 = vmatpush1.bf16.msra.mxu0 %v2552
    %2570 = vmatprep.subr.bf16.mxu0 0
    %2571 = vmatpush2.bf16.msra.mxu0 0
    %2572 = vmatprep.subr.bf16.mxu0 0
    %2573 = vmatpush2.bf16.msra.mxu0 0
    %2574 = vmatprep.subr.bf16.mxu0 0
    %2575 = vmatpush2.bf16.msra.mxu0 0
    %2576 = vmatprep.subr.bf16.mxu0 0
    %2577 = vmatpush2.bf16.msra.mxu0 0
    %2578 = vmatprep.subr.bf16.mxu0 0
    %2579 = vmatpush2.bf16.msra.mxu0 0
    %2580 = vmatprep.subr.bf16.mxu0 0
    %2581 = vmatpush2.bf16.msra.mxu0 0
    %2582 = vmatprep.subr.bf16.mxu0 0
    %2583 = vmatpush2.bf16.msra.mxu0 0
    %2584 = vmatprep.subr.bf16.mxu0 0
    %2585 = vmatpush2.bf16.msra.mxu0 0
    %2586 = vmatprep.mubr.bf16.mxu0 0
    %2587 = vmatmul.mubr.bf16.gmra.mxu0 %v2549
    %v2588 = vpop.f32.mrf.mxu0
    %v2589 = vadd.f32 0.0, %v2588
    %v2590 = vpop.f32.mrf.mxu0
    %v2591 = vpop.f32.mrf.mxu0
    %v2592 = vpop.f32.mrf.mxu0
    %2593 = vdwg.mxu0
    %v2594 = vadd.f32 %v2380, %v2543
    %v2595 = vadd.f32 %v2381, %v2589
    %v2596 = vpack.c.bf16 %v2595, %v2594
    %s2597 = scalar_lea.vmem %s10, 16
    %v2598 = vld [vmem:[%s2597] sm:$0xf]
    %v2599 = vld [vmem:[%s2597 + $0x4] sm:$0xf]
    %v2600 = vld [vmem:[%s2597 + $0x8] sm:$0xf]
    %v2601 = vld [vmem:[%s2597 + $0xc] sm:$0xf]
    %s2602 = scalar_lea.vmem %s11, 1
    %v2603 = vld [vmem:[%s2602] sm:$0x1]
    %v2605 = vlaneseq
    %v2606 = vshrl.u32 %v2605, 7
    %v2607 = vsub.s32 0, %v2606
    %v2608 = vrot.slane %v2603, %v2607
    %v2614 = vunpack.c.l.b16 %v2598
    %v2615 = vunpack.c.l.b16 %v2599
    %v2616 = vunpack.c.l.b16 %v2600
    %v2617 = vunpack.c.l.b16 %v2601
    %v2618 = vpack.c.b16 %v2615, %v2614
    %v2619 = vpack.c.b16 %v2617, %v2616
    %v2623 = vsel %vm183, %v2596, 0
    %2625 = vmatprep.subr.bf16.mxu0 0
    %2626 = vmatpush1.bf16.msra.mxu0 0
    %2627 = vmatprep.subr.bf16.mxu0 0
    %2628 = vmatpush1.bf16.msra.mxu0 0
    %2629 = vmatprep.subr.bf16.mxu0 0
    %2630 = vmatpush1.bf16.msra.mxu0 0
    %2631 = vmatprep.subr.bf16.mxu0 0
    %2632 = vmatpush1.bf16.msra.mxu0 0
    %2633 = vmatprep.subr.bf16.mxu0 0
    %2634 = vmatpush1.bf16.msra.mxu0 0
    %2635 = vmatprep.subr.bf16.mxu0 0
    %2636 = vmatpush1.bf16.msra.mxu0 0
    %2637 = vmatprep.subr.bf16.mxu0 0
    %2638 = vmatpush1.bf16.msra.mxu0 %v2619
    %2639 = vmatprep.subr.bf16.mxu0 0
    %2640 = vmatpush1.bf16.msra.mxu0 %v2618
    %2641 = vmatprep.subr.bf16.mxu0 0
    %2642 = vmatpush2.bf16.msra.mxu0 0
    %2643 = vmatprep.subr.bf16.mxu0 0
    %2644 = vmatpush2.bf16.msra.mxu0 0
    %2645 = vmatprep.subr.bf16.mxu0 0
    %2646 = vmatpush2.bf16.msra.mxu0 0
    %2647 = vmatprep.subr.bf16.mxu0 0
    %2648 = vmatpush2.bf16.msra.mxu0 0
    %2649 = vmatprep.subr.bf16.mxu0 0
    %2650 = vmatpush2.bf16.msra.mxu0 0
    %2651 = vmatprep.subr.bf16.mxu0 0
    %2652 = vmatpush2.bf16.msra.mxu0 0
    %2653 = vmatprep.subr.bf16.mxu0 0
    %2654 = vmatpush2.bf16.msra.mxu0 0
    %2655 = vmatprep.subr.bf16.mxu0 0
    %2656 = vmatpush2.bf16.msra.mxu0 0
    %2657 = vmatprep.mubr.bf16.mxu0 0
    %2658 = vmatmul.mubr.bf16.gmra.mxu0 %v2623
    %v2659 = vpop.f32.mrf.mxu0
    %v2660 = vadd.f32 %v2608, %v2659
    %v2661 = vpop.f32.mrf.mxu0
    %v2662 = vpop.f32.mrf.mxu0
    %v2663 = vadd.f32 %v2608, %v2662
    %v2664 = vpop.f32.mrf.mxu0
    %2665 = vdwg.mxu0
    %v2666 = vadd.f32 %v1532, %v2660
    %v2667 = vadd.f32 %v1533, %v2663
    %v2668 = vsel %vm183, %v2666, 0.0
    %2669 = vadd.xlane.f32.xlu0 %v2668
    %v2670 = vpop.xlane.xlu0 %2669
    %v2671 = vsel %vm183, %v2667, 0.0
    %2672 = vadd.xlane.f32.xlu0 %v2671
    %v2673 = vpop.xlane.xlu0 %2672
    %v2674 = vmul.f32 %v2670, %v1294
    %v2675 = vmul.f32 %v2673, %v1294
    %v2676 = vsub.f32 %v2666, %v2674
    %v2677 = vsub.f32 %v2667, %v2675
    %v2678 = vmul.f32 %v2676, %v2676
    %v2679 = vmul.f32 %v2677, %v2677
    %v2680 = vsel %vm183, %v2678, 0.0
    %2681 = vadd.xlane.f32.xlu0 %v2680
    %v2682 = vpop.xlane.xlu0 %2681
    %v2683 = vsel %vm183, %v2679, 0.0
    %2684 = vadd.xlane.f32.xlu0 %v2683
    %v2685 = vpop.xlane.xlu0 %2684
    %v2686 = vmul.f32 %v2682, %v1294
    %v2687 = vmul.f32 %v2685, %v1294
    %v2688 = vadd.f32 %v2686, 1e-05
    %v2689 = vadd.f32 %v2687, 1e-05
    %v2690 = vrsqrt.pop %v2688
    %v2691 = vrsqrt.pop %v2689
    %v2692 = vmul.f32 %v2676, %v2690
    %v2693 = vmul.f32 %v2677, %v2691
    %s2694 = scalar_lea.vmem %s12, 1
    %v2695 = vld [vmem:[%s2694] sm:$0x1]
    %v2697 = vlaneseq
    %v2698 = vshrl.u32 %v2697, 7
    %v2699 = vsub.s32 0, %v2698
    %v2700 = vrot.slane %v2695, %v2699
    %v2702 = vmul.f32 %v2692, %v2700
    %v2703 = vmul.f32 %v2693, %v2700
    %s2704 = scalar_lea.vmem %s13, 1
    %v2705 = vld [vmem:[%s2704] sm:$0x1]
    %v2707 = vlaneseq
    %v2708 = vshrl.u32 %v2707, 7
    %v2709 = vsub.s32 0, %v2708
    %v2710 = vrot.slane %v2705, %v2709
    %v2712 = vadd.f32 %v2702, %v2710
    %v2713 = vadd.f32 %v2703, %v2710
    %v2714 = vpack.c.bf16 %v2713, %v2712
    %s2715 = scalar_lea.vmem %s14, 16
    %v2716 = vld [vmem:[%s2715] sm:$0xf]
    %v2717 = vld [vmem:[%s2715 + $0x4] sm:$0xf]
    %v2718 = vld [vmem:[%s2715 + $0x8] sm:$0xf]
    %v2719 = vld [vmem:[%s2715 + $0xc] sm:$0xf]
    %s2720 = scalar_lea.vmem %s15, 1
    %v2721 = vld [vmem:[%s2720] sm:$0x1]
    %v2723 = vlaneseq
    %v2724 = vshrl.u32 %v2723, 7
    %v2725 = vsub.s32 0, %v2724
    %v2726 = vrot.slane %v2721, %v2725
    %v2732 = vunpack.c.l.b16 %v2716
    %v2733 = vunpack.c.l.b16 %v2717
    %v2734 = vunpack.c.l.b16 %v2718
    %v2735 = vunpack.c.l.b16 %v2719
    %v2736 = vpack.c.b16 %v2733, %v2732
    %v2737 = vpack.c.b16 %v2735, %v2734
    %v2741 = vsel %vm183, %v2714, 0
    %2743 = vmatprep.subr.bf16.mxu0 0
    %2744 = vmatpush1.bf16.msra.mxu0 0
    %2745 = vmatprep.subr.bf16.mxu0 0
    %2746 = vmatpush1.bf16.msra.mxu0 0
    %2747 = vmatprep.subr.bf16.mxu0 0
    %2748 = vmatpush1.bf16.msra.mxu0 0
    %2749 = vmatprep.subr.bf16.mxu0 0
    %2750 = vmatpush1.bf16.msra.mxu0 0
    %2751 = vmatprep.subr.bf16.mxu0 0
    %2752 = vmatpush1.bf16.msra.mxu0 0
    %2753 = vmatprep.subr.bf16.mxu0 0
    %2754 = vmatpush1.bf16.msra.mxu0 0
    %2755 = vmatprep.subr.bf16.mxu0 0
    %2756 = vmatpush1.bf16.msra.mxu0 %v2737
    %2757 = vmatprep.subr.bf16.mxu0 0
    %2758 = vmatpush1.bf16.msra.mxu0 %v2736
    %2759 = vmatprep.subr.bf16.mxu0 0
    %2760 = vmatpush2.bf16.msra.mxu0 0
    %2761 = vmatprep.subr.bf16.mxu0 0
    %2762 = vmatpush2.bf16.msra.mxu0 0
    %2763 = vmatprep.subr.bf16.mxu0 0
    %2764 = vmatpush2.bf16.msra.mxu0 0
    %2765 = vmatprep.subr.bf16.mxu0 0
    %2766 = vmatpush2.bf16.msra.mxu0 0
    %2767 = vmatprep.subr.bf16.mxu0 0
    %2768 = vmatpush2.bf16.msra.mxu0 0
    %2769 = vmatprep.subr.bf16.mxu0 0
    %2770 = vmatpush2.bf16.msra.mxu0 0
    %2771 = vmatprep.subr.bf16.mxu0 0
    %2772 = vmatpush2.bf16.msra.mxu0 0
    %2773 = vmatprep.subr.bf16.mxu0 0
    %2774 = vmatpush2.bf16.msra.mxu0 0
    %2775 = vmatprep.mubr.bf16.mxu0 0
    %2776 = vmatmul.mubr.bf16.gmra.mxu0 %v2741
    %v2777 = vpop.f32.mrf.mxu0
    %v2778 = vadd.f32 %v2726, %v2777
    %v2779 = vpop.f32.mrf.mxu0
    %v2780 = vpop.f32.mrf.mxu0
    %v2781 = vadd.f32 %v2726, %v2780
    %v2782 = vpop.f32.mrf.mxu0
    %2783 = vdwg.mxu0
    %v2784 = vmax.f32 %v2778, 0.0
    %v2785 = vmax.f32 %v2781, 0.0
    %v2786 = vpack.c.bf16 %v2785, %v2784
    %s2787 = scalar_lea.vmem %s16, 32
    %v2788 = vld [vmem:[%s2787] sm:$0xf]
    %v2789 = vld [vmem:[%s2787 + $0x4] sm:$0xf]
    %v2790 = vld [vmem:[%s2787 + $0x8] sm:$0xf]
    %v2791 = vld [vmem:[%s2787 + $0xc] sm:$0xf]
    %v2792 = vld [vmem:[%s2787 + $0x10] sm:$0xf]
    %v2793 = vld [vmem:[%s2787 + $0x14] sm:$0xf]
    %v2794 = vld [vmem:[%s2787 + $0x18] sm:$0xf]
    %v2795 = vld [vmem:[%s2787 + $0x1c] sm:$0xf]
    %s2796 = scalar_lea.vmem %s17, 1
    %v2797 = vld [vmem:[%s2796] sm:$0x1]
    %v2799 = vlaneseq
    %v2800 = vshrl.u32 %v2799, 7
    %v2801 = vsub.s32 0, %v2800
    %v2802 = vrot.slane %v2797, %v2801
    %v2812 = vunpack.c.l.b16 %v2788
    %v2813 = vunpack.c.l.b16 %v2789
    %v2814 = vunpack.c.l.b16 %v2790
    %v2815 = vunpack.c.l.b16 %v2791
    %v2816 = vunpack.c.l.b16 %v2792
    %v2817 = vunpack.c.l.b16 %v2793
    %v2818 = vunpack.c.l.b16 %v2794
    %v2819 = vunpack.c.l.b16 %v2795
    %v2820 = vpack.c.b16 %v2813, %v2812
    %v2821 = vpack.c.b16 %v2815, %v2814
    %v2822 = vpack.c.b16 %v2817, %v2816
    %v2823 = vpack.c.b16 %v2819, %v2818
    %v2829 = vsel %vm1443, %v2786, 0
    %2831 = vmatprep.subr.bf16.mxu0 0
    %2832 = vmatpush1.bf16.msra.mxu0 0
    %2833 = vmatprep.subr.bf16.mxu0 0
    %2834 = vmatpush1.bf16.msra.mxu0 0
    %2835 = vmatprep.subr.bf16.mxu0 0
    %2836 = vmatpush1.bf16.msra.mxu0 0
    %2837 = vmatprep.subr.bf16.mxu0 0
    %2838 = vmatpush1.bf16.msra.mxu0 0
    %2839 = vmatprep.subr.bf16.mxu0 0
    %2840 = vmatpush1.bf16.msra.mxu0 %v2823
    %2841 = vmatprep.subr.bf16.mxu0 0
    %2842 = vmatpush1.bf16.msra.mxu0 %v2822
    %2843 = vmatprep.subr.bf16.mxu0 0
    %2844 = vmatpush1.bf16.msra.mxu0 %v2821
    %2845 = vmatprep.subr.bf16.mxu0 0
    %2846 = vmatpush1.bf16.msra.mxu0 %v2820
    %2847 = vmatprep.subr.bf16.mxu0 0
    %2848 = vmatpush2.bf16.msra.mxu0 0
    %2849 = vmatprep.subr.bf16.mxu0 0
    %2850 = vmatpush2.bf16.msra.mxu0 0
    %2851 = vmatprep.subr.bf16.mxu0 0
    %2852 = vmatpush2.bf16.msra.mxu0 0
    %2853 = vmatprep.subr.bf16.mxu0 0
    %2854 = vmatpush2.bf16.msra.mxu0 0
    %2855 = vmatprep.subr.bf16.mxu0 0
    %2856 = vmatpush2.bf16.msra.mxu0 0
    %2857 = vmatprep.subr.bf16.mxu0 0
    %2858 = vmatpush2.bf16.msra.mxu0 0
    %2859 = vmatprep.subr.bf16.mxu0 0
    %2860 = vmatpush2.bf16.msra.mxu0 0
    %2861 = vmatprep.subr.bf16.mxu0 0
    %2862 = vmatpush2.bf16.msra.mxu0 0
    %2863 = vmatprep.mubr.bf16.mxu0 0
    %2864 = vmatmul.mubr.bf16.gmra.mxu0 %v2829
    %v2865 = vpop.f32.mrf.mxu0
    %v2866 = vadd.f32 %v2802, %v2865
    %v2867 = vpop.f32.mrf.mxu0
    %v2868 = vpop.f32.mrf.mxu0
    %v2869 = vadd.f32 %v2802, %v2868
    %v2870 = vpop.f32.mrf.mxu0
    %2871 = vdwg.mxu0
    %v2872 = vadd.f32 %v2712, %v2866
    %v2873 = vadd.f32 %v2713, %v2869
    %v2874 = vsel %vm183, %v2872, 0.0
    %2875 = vadd.xlane.f32.xlu0 %v2874
    %v2876 = vpop.xlane.xlu0 %2875
    %v2877 = vsel %vm183, %v2873, 0.0
    %2878 = vadd.xlane.f32.xlu0 %v2877
    %v2879 = vpop.xlane.xlu0 %2878
    %v2880 = vmul.f32 %v2876, %v1294
    %v2881 = vmul.f32 %v2879, %v1294
    %v2882 = vsub.f32 %v2872, %v2880
    %v2883 = vsub.f32 %v2873, %v2881
    %v2884 = vmul.f32 %v2882, %v2882
    %v2885 = vmul.f32 %v2883, %v2883
    %v2886 = vsel %vm183, %v2884, 0.0
    %2887 = vadd.xlane.f32.xlu0 %v2886
    %v2888 = vpop.xlane.xlu0 %2887
    %v2889 = vsel %vm183, %v2885, 0.0
    %2890 = vadd.xlane.f32.xlu0 %v2889
    %v2891 = vpop.xlane.xlu0 %2890
    %v2892 = vmul.f32 %v2888, %v1294
    %v2893 = vmul.f32 %v2891, %v1294
    %v2894 = vadd.f32 %v2892, 1e-05
    %v2895 = vadd.f32 %v2893, 1e-05
    %v2896 = vrsqrt.pop %v2894
    %v2897 = vrsqrt.pop %v2895
    %v2898 = vmul.f32 %v2882, %v2896
    %v2899 = vmul.f32 %v2883, %v2897
    %s2900 = scalar_lea.vmem %s18, 1
    %v2901 = vld [vmem:[%s2900] sm:$0x1]
    %v2903 = vlaneseq
    %v2904 = vshrl.u32 %v2903, 7
    %v2905 = vsub.s32 0, %v2904
    %v2906 = vrot.slane %v2901, %v2905
    %v2908 = vmul.f32 %v2898, %v2906
    %v2909 = vmul.f32 %v2899, %v2906
    %s2910 = scalar_lea.vmem %s19, 1
    %v2911 = vld [vmem:[%s2910] sm:$0x1]
    %v2913 = vlaneseq
    %v2914 = vshrl.u32 %v2913, 7
    %v2915 = vsub.s32 0, %v2914
    %v2916 = vrot.slane %v2911, %v2915
    %v2918 = vadd.f32 %v2908, %v2916
    %v2919 = vadd.f32 %v2909, %v2916
    %v2920 = vpack.c.bf16 %v2918, %v2918
    %v2921 = vpack.c.bf16 %v2919, %v2919
    %v2922 = vld [vmem:[%s20] sm:$0xf]
    %v2923 = vld [vmem:[%s20 + $0x4] sm:$0xf]
    %v2924 = vld [vmem:[%s20 + $0x8] sm:$0xf]
    %v2925 = vld [vmem:[%s20 + $0xc] sm:$0xf]
    %v2926 = vld [vmem:[%s21] sm:$0x1]
    %v2928 = vlaneseq
    %v2929 = vshrl.u32 %v2928, 7
    %v2930 = vsub.s32 0, %v2929
    %v2931 = vrot.slane %v2926, %v2930
    %v2935 = vunpack.c.l.b16 %v2920
    %v2936 = vunpack.c.l.b16 %v2921
    %v2937 = vrot.slane %v2935, 7
    %v2938 = vrot.slane %v2936, 6
    %vm2939 = vcmask 1041409
    %v2940 = vsel %vm2939, %v2938, %v2937
    %v2941 = vpack.c.b16 %v2940, %v2940
    %v2946 = vunpack.c.l.b16 %v2922
    %v2947 = vunpack.c.l.b16 %v2923
    %v2948 = vunpack.c.l.b16 %v2924
    %v2949 = vunpack.c.l.b16 %v2925
    %v2950 = vpack.c.b16 %v2947, %v2946
    %v2951 = vpack.c.b16 %v2949, %v2948
    %v2955 = vsel %vm183, %v2941, 0
    %2957 = vmatprep.subr.bf16.mxu0 0
    %2958 = vmatpush1.bf16.msra.mxu0 0
    %2959 = vmatprep.subr.bf16.mxu0 0
    %2960 = vmatpush1.bf16.msra.mxu0 0
    %2961 = vmatprep.subr.bf16.mxu0 0
    %2962 = vmatpush1.bf16.msra.mxu0 0
    %2963 = vmatprep.subr.bf16.mxu0 0
    %2964 = vmatpush1.bf16.msra.mxu0 0
    %2965 = vmatprep.subr.bf16.mxu0 0
    %2966 = vmatpush1.bf16.msra.mxu0 0
    %2967 = vmatprep.subr.bf16.mxu0 0
    %2968 = vmatpush1.bf16.msra.mxu0 0
    %2969 = vmatprep.subr.bf16.mxu0 0
    %2970 = vmatpush1.bf16.msra.mxu0 %v2951
    %2971 = vmatprep.subr.bf16.mxu0 0
    %2972 = vmatpush1.bf16.msra.mxu0 %v2950
    %2973 = vmatprep.subr.bf16.mxu0 0
    %2974 = vmatpush2.bf16.msra.mxu0 0
    %2975 = vmatprep.subr.bf16.mxu0 0
    %2976 = vmatpush2.bf16.msra.mxu0 0
    %2977 = vmatprep.subr.bf16.mxu0 0
    %2978 = vmatpush2.bf16.msra.mxu0 0
    %2979 = vmatprep.subr.bf16.mxu0 0
    %2980 = vmatpush2.bf16.msra.mxu0 0
    %2981 = vmatprep.subr.bf16.mxu0 0
    %2982 = vmatpush2.bf16.msra.mxu0 0
    %2983 = vmatprep.subr.bf16.mxu0 0
    %2984 = vmatpush2.bf16.msra.mxu0 0
    %2985 = vmatprep.subr.bf16.mxu0 0
    %2986 = vmatpush2.bf16.msra.mxu0 0
    %2987 = vmatprep.subr.bf16.mxu0 0
    %2988 = vmatpush2.bf16.msra.mxu0 0
    %2989 = vmatprep.mubr.bf16.mxu0 0
    %2990 = vmatmul.mubr.bf16.gmra.mxu0 %v2955
    %v2991 = vpop.f32.mrf.mxu0
    %v2992 = vadd.f32 %v2931, %v2991
    %v2993 = vpop.f32.mrf.mxu0
    %v2994 = vpop.f32.mrf.mxu0
    %v2995 = vpop.f32.mrf.mxu0
    %2996 = vdwg.mxu0
    %vm2997 = vcmask 17408
    %2998 = vst.msk [vmem:[#allocation2] sm:$0x3] %vm2997, %v2992
    // Predicated region
    $region90: #{transformer_main_forward.1} parent=1 // pred_check
      _
    $region91: #{transformer_main_forward.1} parent=1 // pred_check_branch
      %3000 = sbr.rel (0) target = $region93
    $region92: #{transformer_main_forward.1} parent=1 // pred_region
      %s3002 = ssub.s32 32, 32
      %3003 = vsyncadd [#allocation3], %s3002
      %s3005 = sshll.u32 [#allocation2], 4
      %s3006 = int_to_ptr.vmem [resolvable:$true] %s3005
      %3008 = dma.vmem_to_hbm [thread:$0]  %s3006, 32, %s22, [#allocation3]
    $region93: #{transformer_main_forward.1} parent=1 // pred_fallthru
      _
    // Predicated region
    $region94: #{transformer_main_forward.1} parent=1 // pred_check
      _
    $region95: #{transformer_main_forward.1} parent=1 // pred_check_branch
      %3010 = sbr.rel (0) target = $region97
    $region96: #{transformer_main_forward.1} parent=1 // pred_region
      %3011 = dma.done [#allocation3], 32
    $region97: #{transformer_main_forward.1} parent=1 // pred_fallthru
      _
    %3012 = vsyncpa [#allocation3], 1

</llo_original>
